<compile_context>
chip_gen: v7x
topology: tpu7x:2x2x1
jax: 0.10.0
libtpu: 0.0.40
codegen_flags: <defaults>
</compile_context>

<pallas_src>
import functools
import math

import jax
import jax.numpy as jnp
import numpy as np
from jax import lax
from jax.experimental import pallas as pl
from jax.experimental.pallas import tpu as pltpu


# ------------------------- math helpers (used inside the kernel) ------------

def _layernorm(x, gamma, beta, eps=1e-5):
    mean = jnp.mean(x, axis=-1, keepdims=True)
    var = jnp.mean((x - mean) ** 2, axis=-1, keepdims=True)
    return (x - mean) * lax.rsqrt(var + eps) * gamma + beta


def _mha_heads(q, k, v, wo_t, bo, mask_add, n_heads):
    """Multi-head attention core with batch folded into the row dimension.

    q: (Nq, E) f32, k/v: (Nk, E) f32  (already projected + biased)
    wo_t: (E, E) bf16 output projection, pre-transposed (in_dim, out_dim)
    bo: (1, E) f32
    mask_add: (Nq, Nk) f32 additive mask (causal / padding / cross-batch block)
    """
    Nq, E = q.shape
    hd = E // n_heads
    scale = 1.0 / math.sqrt(hd)

    acc = jnp.zeros((Nq, E), jnp.float32)
    for h in range(n_heads):                      # unrolled at trace time
        lo, hi = h * hd, (h + 1) * hd
        qh = q[:, lo:hi].astype(jnp.bfloat16)
        kh = k[:, lo:hi].astype(jnp.bfloat16)
        vh = v[:, lo:hi].astype(jnp.bfloat16)
        # scores = qh @ kh.T expressed via dimension numbers (no transpose)
        s = lax.dot_general(qh, kh, (((1,), (1,)), ((), ())),
                            preferred_element_type=jnp.float32)
        s = s * scale + mask_add
        s = s - jnp.max(s, axis=-1, keepdims=True)
        p = jnp.exp(s)
        p = p * pl.reciprocal(jnp.sum(p, axis=-1, keepdims=True), approx=True)
        ctx = jnp.dot(p.astype(jnp.bfloat16), vh,
                      preferred_element_type=jnp.float32)          # (Nq, hd)
        # fused output projection: accumulate ctx_h @ Wo.T[lo:hi, :]
        acc = acc + jnp.dot(ctx.astype(jnp.bfloat16), wo_t[lo:hi, :],
                            preferred_element_type=jnp.float32)    # (Nq, E)
    return acc + bo


# ------------------------------- Pallas kernel -------------------------------

def _decoder_block_kernel(tgt_ref, src_ref, mself_ref, mcross_ref,
                          sa_wi_t_ref, sa_bi_ref, sa_wo_t_ref, sa_bo_ref,
                          ln1_g_ref, ln1_b_ref,
                          ca_wq_t_ref, ca_bq_ref, ca_wkv_t_ref, ca_bkv_ref,
                          ca_wo_t_ref, ca_bo_ref,
                          ln2_g_ref, ln2_b_ref,
                          w1_t_ref, b1_ref, w2_t_ref, b2_ref,
                          ln3_g_ref, ln3_b_ref,
                          out_ref, *, n_heads):
    x = tgt_ref[...]            # (B*Lt, E) f32
    z = src_ref[...]            # (B*Ls, E) f32
    E = x.shape[-1]

    # --- self attention + residual + ln1 (dropout1 = identity in eval) ---
    qkv = jnp.dot(x.astype(jnp.bfloat16), sa_wi_t_ref[...],
                  preferred_element_type=jnp.float32) + sa_bi_ref[...]
    q, k, v = qkv[:, :E], qkv[:, E:2 * E], qkv[:, 2 * E:]
    dx = _mha_heads(q, k, v, sa_wo_t_ref[...], sa_bo_ref[...],
                    mself_ref[...], n_heads)
    x = _layernorm(x + dx, ln1_g_ref[...], ln1_b_ref[...])

    # --- cross attention + residual + ln2 (dropout2 = identity) ---
    q = jnp.dot(x.astype(jnp.bfloat16), ca_wq_t_ref[...],
                preferred_element_type=jnp.float32) + ca_bq_ref[...]
    kv = jnp.dot(z.astype(jnp.bfloat16), ca_wkv_t_ref[...],
                 preferred_element_type=jnp.float32) + ca_bkv_ref[...]
    k, v = kv[:, :E], kv[:, E:]
    dx = _mha_heads(q, k, v, ca_wo_t_ref[...], ca_bo_ref[...],
                    mcross_ref[...], n_heads)
    x = _layernorm(x + dx, ln2_g_ref[...], ln2_b_ref[...])

    # --- MLP + residual + ln3 (inner dropout & dropout3 = identity) ---
    h = jnp.maximum(
        jnp.dot(x.astype(jnp.bfloat16), w1_t_ref[...],
                preferred_element_type=jnp.float32) + b1_ref[...], 0.0)
    dx = jnp.dot(h.astype(jnp.bfloat16), w2_t_ref[...],
                 preferred_element_type=jnp.float32) + b2_ref[...]
    x = _layernorm(x + dx, ln3_g_ref[...], ln3_b_ref[...])

    out_ref[...] = x


# ------------------------------- wrapper -------------------------------------

def tr_decoder_block(tgt_seq, src_seq, params, n_heads,
                     src_pad_mask=None, attn_mask=None):
    """Matches TrDecoderBlock.forward (eval mode).

    tgt_seq: (Lt, B, E)  src_seq: (Ls, B, E)
    src_pad_mask: bool (B, Ls) (True = ignore)   attn_mask: float (Lt, Lt) additive
    returns: (Lt, B, E)
    """
    Lt, B, E = tgt_seq.shape
    Ls = src_seq.shape[0]
    Nt, Ns = B * Lt, B * Ls
    NEG = jnp.float32(-1e9)

    # batch-first, flattened rows
    tgt2d = jnp.transpose(tgt_seq, (1, 0, 2)).reshape(Nt, E).astype(jnp.float32)
    src2d = jnp.transpose(src_seq, (1, 0, 2)).reshape(Ns, E).astype(jnp.float32)

    if attn_mask is None:
        amask = jnp.zeros((Lt, Lt), jnp.float32)
    else:
        amask = attn_mask.astype(jnp.float32)
    if src_pad_mask is None:
        pmask = jnp.zeros((B, Ls), jnp.float32)
    else:
        pmask = jnp.where(src_pad_mask, NEG, 0.0).astype(jnp.float32)

    # block-diagonal batch mask (prevents attention across batch elements)
    same_b = jnp.arange(B)[:, None] == jnp.arange(B)[None, :]        # (B, B)
    m_self = jnp.where(same_b[:, None, :, None],
                       amask[None, :, None, :], NEG)                 # (B,Lt,B,Lt)
    m_self = m_self.reshape(Nt, Nt)
    m_cross = jnp.where(same_b[:, None, :, None],
                        pmask[None, None, :, :], NEG)                # (B,1,B,Ls)
    m_cross = jnp.broadcast_to(m_cross, (B, Lt, B, Ls)).reshape(Nt, Ns)

    bf16 = jnp.bfloat16
    f32 = jnp.float32
    # pre-transposed (in_dim, out_dim) bf16 weights; f32 biases / LN params
    sa_wi_t = params["sa_wi"].T.astype(bf16)                 # (E, 3E)
    sa_bi = params["sa_bi"].astype(f32)                      # (1, 3E)
    sa_wo_t = params["sa_wo"].T.astype(bf16)                 # (E, E)
    sa_bo = params["sa_bo"].astype(f32)
    ca_wq_t = params["ca_wi"][:E].T.astype(bf16)             # (E, E)
    ca_bq = params["ca_bi"][:, :E].astype(f32)               # (1, E)
    ca_wkv_t = params["ca_wi"][E:].T.astype(bf16)            # (E, 2E)
    ca_bkv = params["ca_bi"][:, E:].astype(f32)              # (1, 2E)
    ca_wo_t = params["ca_wo"].T.astype(bf16)
    ca_bo = params["ca_bo"].astype(f32)
    w1_t = params["w1"].T.astype(bf16)                       # (E, Hd)
    b1 = params["b1"].astype(f32)
    w2_t = params["w2"].T.astype(bf16)                       # (Hd, E)
    b2 = params["b2"].astype(f32)
    ln1_g, ln1_b = params["ln1_g"].astype(f32), params["ln1_b"].astype(f32)
    ln2_g, ln2_b = params["ln2_g"].astype(f32), params["ln2_b"].astype(f32)
    ln3_g, ln3_b = params["ln3_g"].astype(f32), params["ln3_b"].astype(f32)

    operands = [tgt2d, src2d, m_self, m_cross,
                sa_wi_t, sa_bi, sa_wo_t, sa_bo, ln1_g, ln1_b,
                ca_wq_t, ca_bq, ca_wkv_t, ca_bkv, ca_wo_t, ca_bo, ln2_g, ln2_b,
                w1_t, b1, w2_t, b2, ln3_g, ln3_b]

    in_specs = [pl.BlockSpec(a.shape, lambda i, nd=a.ndim: (0,) * nd)
                for a in operands]

    out2d = pl.pallas_call(
        functools.partial(_decoder_block_kernel, n_heads=n_heads),
        out_shape=jax.ShapeDtypeStruct((Nt, E), jnp.float32),
        grid=(1,),
        in_specs=in_specs,
        out_specs=pl.BlockSpec((Nt, E), lambda i: (0, 0)),
        compiler_params=pltpu.CompilerParams(
            dimension_semantics=("arbitrary",)),
    )(*operands)

    return jnp.transpose(out2d.reshape(B, Lt, E), (1, 0, 2))  # (Lt, B, E)


# ------------------------- pure-JAX reference (for checking) -----------------

def _ref_mha(q_in, k_in, v_in, w_in, b_in, w_out, b_out, add_mask, n_heads):
    Lq, E = q_in.shape
    Lk = k_in.shape[0]
    hd = E // n_heads
    wq, wk, wv = w_in[:E], w_in[E:2 * E], w_in[2 * E:]
    bq, bk, bv = b_in[:E], b_in[E:2 * E], b_in[2 * E:]
    q = jnp.dot(q_in, wq.T) + bq
    k = jnp.dot(k_in, wk.T) + bk
    v = jnp.dot(v_in, wv.T) + bv
    qh = q.reshape(Lq, n_heads, hd).transpose(1, 0, 2)
    kh = k.reshape(Lk, n_heads, hd).transpose(1, 0, 2)
    vh = v.reshape(Lk, n_heads, hd).transpose(1, 0, 2)
    scores = jnp.einsum("hqd,hkd->hqk", qh, kh) / jnp.sqrt(jnp.float32(hd))
    scores = scores + add_mask
    scores = scores - jnp.max(scores, axis=-1, keepdims=True)
    p = jnp.exp(scores)
    p = p / jnp.sum(p, axis=-1, keepdims=True)
    oh = jnp.einsum("hqk,hkd->hqd", p, vh)
    o = oh.transpose(1, 0, 2).reshape(Lq, E)
    return jnp.dot(o, w_out.T) + b_out


def _ref_forward(tgt_seq, src_seq, params, n_heads, amask, pmask3):
    Lt, B, E = tgt_seq.shape
    outs = []
    for b in range(B):
        x = tgt_seq[:, b].astype(jnp.float32)
        z = src_seq[:, b].astype(jnp.float32)
        dx = _ref_mha(x, x, x, params["sa_wi"], params["sa_bi"][0],
                      params["sa_wo"], params["sa_bo"][0],
                      amask[None, :, :], n_heads)
        x = _layernorm(x + dx, params["ln1_g"][0], params["ln1_b"][0])
        dx = _ref_mha(x, z, z, params["ca_wi"], params["ca_bi"][0],
                      params["ca_wo"], params["ca_bo"][0],
                      pmask3[b][None, :, :], n_heads)
        x = _layernorm(x + dx, params["ln2_g"][0], params["ln2_b"][0])
        h = jnp.maximum(jnp.dot(x, params["w1"].T) + params["b1"][0], 0.0)
        dx = jnp.dot(h, params["w2"].T) + params["b2"][0]
        x = _layernorm(x + dx, params["ln3_g"][0], params["ln3_b"][0])
        outs.append(x)
    return jnp.stack(outs, axis=1)


# ------------------------------- main ----------------------------------------

def _init_params(key, n_features, n_hidden):
    E, Hd = n_features, n_hidden
    ks = jax.random.split(key, 16)
    s = 0.1
    return {
        "sa_wi": s * jax.random.normal(ks[0], (3 * E, E), jnp.float32),
        "sa_bi": s * jax.random.normal(ks[1], (1, 3 * E), jnp.float32),
        "sa_wo": s * jax.random.normal(ks[2], (E, E), jnp.float32),
        "sa_bo": s * jax.random.normal(ks[3], (1, E), jnp.float32),
        "ln1_g": 1.0 + s * jax.random.normal(ks[4], (1, E), jnp.float32),
        "ln1_b": s * jax.random.normal(ks[5], (1, E), jnp.float32),
        "ca_wi": s * jax.random.normal(ks[6], (3 * E, E), jnp.float32),
        "ca_bi": s * jax.random.normal(ks[7], (1, 3 * E), jnp.float32),
        "ca_wo": s * jax.random.normal(ks[8], (E, E), jnp.float32),
        "ca_bo": s * jax.random.normal(ks[9], (1, E), jnp.float32),
        "ln2_g": 1.0 + s * jax.random.normal(ks[10], (1, E), jnp.float32),
        "ln2_b": s * jax.random.normal(ks[11], (1, E), jnp.float32),
        "w1": s * jax.random.normal(ks[12], (Hd, E), jnp.float32),
        "b1": s * jax.random.normal(ks[13], (1, Hd), jnp.float32),
        "w2": s * jax.random.normal(ks[14], (E, Hd), jnp.float32),
        "b2": s * jax.random.normal(ks[15], (1, E), jnp.float32),
        "ln3_g": jnp.ones((1, E), jnp.float32),
        "ln3_b": jnp.zeros((1, E), jnp.float32),
    }


if __name__ == "__main__":
    n_features = 32
    n_heads = 4
    n_hidden = 64
    B, Lt, Ls = 2, 8, 10

    key = jax.random.PRNGKey(0)
    k_tgt, k_src, k_par = jax.random.split(key, 3)

    tgt_seq = jax.random.normal(k_tgt, (Lt, B, n_features), jnp.float32)
    src_seq = jax.random.normal(k_src, (Ls, B, n_features), jnp.float32)

    # causal (subsequent) mask for self-attention: additive, -1e9 above diag
    causal = jnp.triu(jnp.ones((Lt, Lt), bool), k=1)
    attn_mask = jnp.where(causal, -1e9, 0.0).astype(jnp.float32)

    # pad the last 3 source positions of batch element 1
    src_pad_mask = jnp.zeros((B, Ls), bool).at[1, Ls - 3:].set(True)

    params = _init_params(k_par, n_features, n_hidden)

    out = tr_decoder_block(tgt_seq, src_seq, params, n_heads,
                           src_pad_mask=src_pad_mask, attn_mask=attn_mask)
    out = jax.block_until_ready(out)

    pmask3 = jnp.where(src_pad_mask, -1e9, 0.0).reshape(B, 1, Ls).astype(jnp.float32)
    ref = _ref_forward(tgt_seq, src_seq, params, n_heads, attn_mask, pmask3)
    # bf16 matmul operands inside the kernel -> slightly looser tolerance
    np.testing.assert_allclose(np.asarray(out), np.asarray(ref),
                               rtol=5e-2, atol=5e-2)

    assert out.shape == (Lt, B, n_features)
    print("KERNEL_OK")
</pallas_src>

<mosaic_0001>
module attributes {stable_mosaic.version = 11 : i64} {
  func.func @_decoder_block_kernel(%arg0: i32, %arg1: memref<16x32xf32, #tpu.memory_space<vmem>>, %arg2: memref<20x32xf32, #tpu.memory_space<vmem>>, %arg3: memref<16x16xf32, #tpu.memory_space<vmem>>, %arg4: memref<16x20xf32, #tpu.memory_space<vmem>>, %arg5: memref<32x96xbf16, #tpu.memory_space<vmem>>, %arg6: memref<1x96xf32, #tpu.memory_space<vmem>>, %arg7: memref<32x32xbf16, #tpu.memory_space<vmem>>, %arg8: memref<1x32xf32, #tpu.memory_space<vmem>>, %arg9: memref<1x32xf32, #tpu.memory_space<vmem>>, %arg10: memref<1x32xf32, #tpu.memory_space<vmem>>, %arg11: memref<32x32xbf16, #tpu.memory_space<vmem>>, %arg12: memref<1x32xf32, #tpu.memory_space<vmem>>, %arg13: memref<32x64xbf16, #tpu.memory_space<vmem>>, %arg14: memref<1x64xf32, #tpu.memory_space<vmem>>, %arg15: memref<32x32xbf16, #tpu.memory_space<vmem>>, %arg16: memref<1x32xf32, #tpu.memory_space<vmem>>, %arg17: memref<1x32xf32, #tpu.memory_space<vmem>>, %arg18: memref<1x32xf32, #tpu.memory_space<vmem>>, %arg19: memref<32x64xbf16, #tpu.memory_space<vmem>>, %arg20: memref<1x64xf32, #tpu.memory_space<vmem>>, %arg21: memref<64x32xbf16, #tpu.memory_space<vmem>>, %arg22: memref<1x32xf32, #tpu.memory_space<vmem>>, %arg23: memref<1x32xf32, #tpu.memory_space<vmem>>, %arg24: memref<1x32xf32, #tpu.memory_space<vmem>>, %arg25: memref<16x32xf32, #tpu.memory_space<vmem>>) attributes {dimension_semantics = [#tpu.dimension_semantics<arbitrary>], iteration_bounds = array<i64: 1>, scalar_prefetch = 0 : i64, scratch_operands = 0 : i64, tpu.core_type = #tpu.core_type<tc>, window_params = [{pipeline_mode = #tpu.pipeline_mode<synchronous>, transform_indices = @transform_0, window_bounds = array<i64: 16, 32>}, {pipeline_mode = #tpu.pipeline_mode<synchronous>, transform_indices = @transform_1, window_bounds = array<i64: 20, 32>}, {pipeline_mode = #tpu.pipeline_mode<synchronous>, transform_indices = @transform_2, window_bounds = array<i64: 16, 16>}, {pipeline_mode = #tpu.pipeline_mode<synchronous>, transform_indices = @transform_3, window_bounds = array<i64: 16, 20>}, {pipeline_mode = #tpu.pipeline_mode<synchronous>, transform_indices = @transform_4, window_bounds = array<i64: 32, 96>}, {pipeline_mode = #tpu.pipeline_mode<synchronous>, transform_indices = @transform_5, window_bounds = array<i64: 1, 96>}, {pipeline_mode = #tpu.pipeline_mode<synchronous>, transform_indices = @transform_6, window_bounds = array<i64: 32, 32>}, {pipeline_mode = #tpu.pipeline_mode<synchronous>, transform_indices = @transform_7, window_bounds = array<i64: 1, 32>}, {pipeline_mode = #tpu.pipeline_mode<synchronous>, transform_indices = @transform_8, window_bounds = array<i64: 1, 32>}, {pipeline_mode = #tpu.pipeline_mode<synchronous>, transform_indices = @transform_9, window_bounds = array<i64: 1, 32>}, {pipeline_mode = #tpu.pipeline_mode<synchronous>, transform_indices = @transform_10, window_bounds = array<i64: 32, 32>}, {pipeline_mode = #tpu.pipeline_mode<synchronous>, transform_indices = @transform_11, window_bounds = array<i64: 1, 32>}, {pipeline_mode = #tpu.pipeline_mode<synchronous>, transform_indices = @transform_12, window_bounds = array<i64: 32, 64>}, {pipeline_mode = #tpu.pipeline_mode<synchronous>, transform_indices = @transform_13, window_bounds = array<i64: 1, 64>}, {pipeline_mode = #tpu.pipeline_mode<synchronous>, transform_indices = @transform_14, window_bounds = array<i64: 32, 32>}, {pipeline_mode = #tpu.pipeline_mode<synchronous>, transform_indices = @transform_15, window_bounds = array<i64: 1, 32>}, {pipeline_mode = #tpu.pipeline_mode<synchronous>, transform_indices = @transform_16, window_bounds = array<i64: 1, 32>}, {pipeline_mode = #tpu.pipeline_mode<synchronous>, transform_indices = @transform_17, window_bounds = array<i64: 1, 32>}, {pipeline_mode = #tpu.pipeline_mode<synchronous>, transform_indices = @transform_18, window_bounds = array<i64: 32, 64>}, {pipeline_mode = #tpu.pipeline_mode<synchronous>, transform_indices = @transform_19, window_bounds = array<i64: 1, 64>}, {pipeline_mode = #tpu.pipeline_mode<synchronous>, transform_indices = @transform_20, window_bounds = array<i64: 64, 32>}, {pipeline_mode = #tpu.pipeline_mode<synchronous>, transform_indices = @transform_21, window_bounds = array<i64: 1, 32>}, {pipeline_mode = #tpu.pipeline_mode<synchronous>, transform_indices = @transform_22, window_bounds = array<i64: 1, 32>}, {pipeline_mode = #tpu.pipeline_mode<synchronous>, transform_indices = @transform_23, window_bounds = array<i64: 1, 32>}, {pipeline_mode = #tpu.pipeline_mode<synchronous>, transform_indices = @transform_24, window_bounds = array<i64: 16, 32>}]} {
    %c0 = arith.constant 0 : index
    %c0_0 = arith.constant 0 : index
    %0 = vector.load %arg1[%c0, %c0_0] : memref<16x32xf32, #tpu.memory_space<vmem>>, vector<16x32xf32>
    %c0_1 = arith.constant 0 : index
    %c0_2 = arith.constant 0 : index
    %1 = vector.load %arg2[%c0_1, %c0_2] : memref<20x32xf32, #tpu.memory_space<vmem>>, vector<20x32xf32>
    %2 = arith.truncf %0 : vector<16x32xf32> to vector<16x32xbf16>
    %c0_3 = arith.constant 0 : index
    %c0_4 = arith.constant 0 : index
    %3 = vector.load %arg5[%c0_3, %c0_4] : memref<32x96xbf16, #tpu.memory_space<vmem>>, vector<32x96xbf16>
    %cst = arith.constant dense<0.000000e+00> : vector<16x96xf32>
    %4 = tpu.matmul %2, %3, %cst {dimension_numbers = #tpu.dot_dimension_numbers<[1], [0], [0], [1], [0, 0, 1, 1], [], []>} : vector<16x32xbf16>, vector<32x96xbf16>, vector<16x96xf32> -> vector<16x96xf32>
    %c0_5 = arith.constant 0 : index
    %c0_6 = arith.constant 0 : index
    %5 = vector.load %arg6[%c0_5, %c0_6] : memref<1x96xf32, #tpu.memory_space<vmem>>, vector<1x96xf32>
    %6 = vector.broadcast %5 : vector<1x96xf32> to vector<16x96xf32>
    %7 = arith.addf %4, %6 : vector<16x96xf32>
    %8 = vector.extract_strided_slice %7 {offsets = [0, 0], sizes = [16, 32], strides = [1, 1]} : vector<16x96xf32> to vector<16x32xf32>
    %9 = vector.extract_strided_slice %7 {offsets = [0, 32], sizes = [16, 32], strides = [1, 1]} : vector<16x96xf32> to vector<16x32xf32>
    %10 = vector.extract_strided_slice %7 {offsets = [0, 64], sizes = [16, 32], strides = [1, 1]} : vector<16x96xf32> to vector<16x32xf32>
    %c0_7 = arith.constant 0 : index
    %c0_8 = arith.constant 0 : index
    %11 = vector.load %arg7[%c0_7, %c0_8] : memref<32x32xbf16, #tpu.memory_space<vmem>>, vector<32x32xbf16>
    %c0_9 = arith.constant 0 : index
    %c0_10 = arith.constant 0 : index
    %12 = vector.load %arg8[%c0_9, %c0_10] : memref<1x32xf32, #tpu.memory_space<vmem>>, vector<1x32xf32>
    %c0_11 = arith.constant 0 : index
    %c0_12 = arith.constant 0 : index
    %13 = vector.load %arg3[%c0_11, %c0_12] : memref<16x16xf32, #tpu.memory_space<vmem>>, vector<16x16xf32>
    %cst_13 = arith.constant 0.000000e+00 : f32
    %14 = vector.broadcast %cst_13 : f32 to vector<16x32xf32>
    %15 = vector.extract_strided_slice %8 {offsets = [0, 0], sizes = [16, 8], strides = [1, 1]} : vector<16x32xf32> to vector<16x8xf32>
    %16 = arith.truncf %15 : vector<16x8xf32> to vector<16x8xbf16>
    %17 = vector.extract_strided_slice %9 {offsets = [0, 0], sizes = [16, 8], strides = [1, 1]} : vector<16x32xf32> to vector<16x8xf32>
    %18 = arith.truncf %17 : vector<16x8xf32> to vector<16x8xbf16>
    %19 = vector.extract_strided_slice %10 {offsets = [0, 0], sizes = [16, 8], strides = [1, 1]} : vector<16x32xf32> to vector<16x8xf32>
    %20 = arith.truncf %19 : vector<16x8xf32> to vector<16x8xbf16>
    %cst_14 = arith.constant dense<0.000000e+00> : vector<16x16xf32>
    %21 = tpu.matmul %16, %18, %cst_14 {dimension_numbers = #tpu.dot_dimension_numbers<[1], [1], [0], [0], [0, 0, 1, 0], [], []>} : vector<16x8xbf16>, vector<16x8xbf16>, vector<16x16xf32> -> vector<16x16xf32>
    %cst_15 = arith.constant 0.353553385 : f32
    %22 = vector.broadcast %cst_15 : f32 to vector<16x16xf32>
    %23 = arith.mulf %21, %22 : vector<16x16xf32>
    %24 = arith.addf %23, %13 : vector<16x16xf32>
    %cst_16 = arith.constant dense<0xFF800000> : vector<16xf32>
    %25 = vector.multi_reduction <maximumf>, %24, %cst_16 [1] : vector<16x16xf32> to vector<16xf32>
    %26 = vector.shape_cast %25 : vector<16xf32> to vector<16x1xf32>
    %27 = vector.broadcast %26 : vector<16x1xf32> to vector<16x16xf32>
    %28 = arith.subf %24, %27 : vector<16x16xf32>
    %29 = math.exp %28 : vector<16x16xf32>
    %cst_17 = arith.constant dense<0.000000e+00> : vector<16xf32>
    %30 = vector.multi_reduction <add>, %29, %cst_17 [1] : vector<16x16xf32> to vector<16xf32>
    %31 = vector.shape_cast %30 : vector<16xf32> to vector<16x1xf32>
    %32 = tpu.reciprocal %31 {approx = true} : vector<16x1xf32> -> vector<16x1xf32>
    %33 = vector.broadcast %32 : vector<16x1xf32> to vector<16x16xf32>
    %34 = arith.mulf %29, %33 : vector<16x16xf32>
    %35 = arith.truncf %34 : vector<16x16xf32> to vector<16x16xbf16>
    %cst_18 = arith.constant dense<0.000000e+00> : vector<16x8xf32>
    %36 = tpu.matmul %35, %20, %cst_18 {dimension_numbers = #tpu.dot_dimension_numbers<[1], [0], [0], [1], [0, 0, 1, 1], [], []>} : vector<16x16xbf16>, vector<16x8xbf16>, vector<16x8xf32> -> vector<16x8xf32>
    %37 = arith.truncf %36 : vector<16x8xf32> to vector<16x8xbf16>
    %38 = vector.extract_strided_slice %11 {offsets = [0, 0], sizes = [8, 32], strides = [1, 1]} : vector<32x32xbf16> to vector<8x32xbf16>
    %cst_19 = arith.constant dense<0.000000e+00> : vector<16x32xf32>
    %39 = tpu.matmul %37, %38, %cst_19 {dimension_numbers = #tpu.dot_dimension_numbers<[1], [0], [0], [1], [0, 0, 1, 1], [], []>} : vector<16x8xbf16>, vector<8x32xbf16>, vector<16x32xf32> -> vector<16x32xf32>
    %40 = arith.addf %14, %39 : vector<16x32xf32>
    %41 = vector.extract_strided_slice %8 {offsets = [0, 8], sizes = [16, 8], strides = [1, 1]} : vector<16x32xf32> to vector<16x8xf32>
    %42 = arith.truncf %41 : vector<16x8xf32> to vector<16x8xbf16>
    %43 = vector.extract_strided_slice %9 {offsets = [0, 8], sizes = [16, 8], strides = [1, 1]} : vector<16x32xf32> to vector<16x8xf32>
    %44 = arith.truncf %43 : vector<16x8xf32> to vector<16x8xbf16>
    %45 = vector.extract_strided_slice %10 {offsets = [0, 8], sizes = [16, 8], strides = [1, 1]} : vector<16x32xf32> to vector<16x8xf32>
    %46 = arith.truncf %45 : vector<16x8xf32> to vector<16x8xbf16>
    %cst_20 = arith.constant dense<0.000000e+00> : vector<16x16xf32>
    %47 = tpu.matmul %42, %44, %cst_20 {dimension_numbers = #tpu.dot_dimension_numbers<[1], [1], [0], [0], [0, 0, 1, 0], [], []>} : vector<16x8xbf16>, vector<16x8xbf16>, vector<16x16xf32> -> vector<16x16xf32>
    %cst_21 = arith.constant 0.353553385 : f32
    %48 = vector.broadcast %cst_21 : f32 to vector<16x16xf32>
    %49 = arith.mulf %47, %48 : vector<16x16xf32>
    %50 = arith.addf %49, %13 : vector<16x16xf32>
    %cst_22 = arith.constant dense<0xFF800000> : vector<16xf32>
    %51 = vector.multi_reduction <maximumf>, %50, %cst_22 [1] : vector<16x16xf32> to vector<16xf32>
    %52 = vector.shape_cast %51 : vector<16xf32> to vector<16x1xf32>
    %53 = vector.broadcast %52 : vector<16x1xf32> to vector<16x16xf32>
    %54 = arith.subf %50, %53 : vector<16x16xf32>
    %55 = math.exp %54 : vector<16x16xf32>
    %cst_23 = arith.constant dense<0.000000e+00> : vector<16xf32>
    %56 = vector.multi_reduction <add>, %55, %cst_23 [1] : vector<16x16xf32> to vector<16xf32>
    %57 = vector.shape_cast %56 : vector<16xf32> to vector<16x1xf32>
    %58 = tpu.reciprocal %57 {approx = true} : vector<16x1xf32> -> vector<16x1xf32>
    %59 = vector.broadcast %58 : vector<16x1xf32> to vector<16x16xf32>
    %60 = arith.mulf %55, %59 : vector<16x16xf32>
    %61 = arith.truncf %60 : vector<16x16xf32> to vector<16x16xbf16>
    %cst_24 = arith.constant dense<0.000000e+00> : vector<16x8xf32>
    %62 = tpu.matmul %61, %46, %cst_24 {dimension_numbers = #tpu.dot_dimension_numbers<[1], [0], [0], [1], [0, 0, 1, 1], [], []>} : vector<16x16xbf16>, vector<16x8xbf16>, vector<16x8xf32> -> vector<16x8xf32>
    %63 = arith.truncf %62 : vector<16x8xf32> to vector<16x8xbf16>
    %64 = vector.extract_strided_slice %11 {offsets = [8, 0], sizes = [8, 32], strides = [1, 1]} : vector<32x32xbf16> to vector<8x32xbf16>
    %cst_25 = arith.constant dense<0.000000e+00> : vector<16x32xf32>
    %65 = tpu.matmul %63, %64, %cst_25 {dimension_numbers = #tpu.dot_dimension_numbers<[1], [0], [0], [1], [0, 0, 1, 1], [], []>} : vector<16x8xbf16>, vector<8x32xbf16>, vector<16x32xf32> -> vector<16x32xf32>
    %66 = arith.addf %40, %65 : vector<16x32xf32>
    %67 = vector.extract_strided_slice %8 {offsets = [0, 16], sizes = [16, 8], strides = [1, 1]} : vector<16x32xf32> to vector<16x8xf32>
    %68 = arith.truncf %67 : vector<16x8xf32> to vector<16x8xbf16>
    %69 = vector.extract_strided_slice %9 {offsets = [0, 16], sizes = [16, 8], strides = [1, 1]} : vector<16x32xf32> to vector<16x8xf32>
    %70 = arith.truncf %69 : vector<16x8xf32> to vector<16x8xbf16>
    %71 = vector.extract_strided_slice %10 {offsets = [0, 16], sizes = [16, 8], strides = [1, 1]} : vector<16x32xf32> to vector<16x8xf32>
    %72 = arith.truncf %71 : vector<16x8xf32> to vector<16x8xbf16>
    %cst_26 = arith.constant dense<0.000000e+00> : vector<16x16xf32>
    %73 = tpu.matmul %68, %70, %cst_26 {dimension_numbers = #tpu.dot_dimension_numbers<[1], [1], [0], [0], [0, 0, 1, 0], [], []>} : vector<16x8xbf16>, vector<16x8xbf16>, vector<16x16xf32> -> vector<16x16xf32>
    %cst_27 = arith.constant 0.353553385 : f32
    %74 = vector.broadcast %cst_27 : f32 to vector<16x16xf32>
    %75 = arith.mulf %73, %74 : vector<16x16xf32>
    %76 = arith.addf %75, %13 : vector<16x16xf32>
    %cst_28 = arith.constant dense<0xFF800000> : vector<16xf32>
    %77 = vector.multi_reduction <maximumf>, %76, %cst_28 [1] : vector<16x16xf32> to vector<16xf32>
    %78 = vector.shape_cast %77 : vector<16xf32> to vector<16x1xf32>
    %79 = vector.broadcast %78 : vector<16x1xf32> to vector<16x16xf32>
    %80 = arith.subf %76, %79 : vector<16x16xf32>
    %81 = math.exp %80 : vector<16x16xf32>
    %cst_29 = arith.constant dense<0.000000e+00> : vector<16xf32>
    %82 = vector.multi_reduction <add>, %81, %cst_29 [1] : vector<16x16xf32> to vector<16xf32>
    %83 = vector.shape_cast %82 : vector<16xf32> to vector<16x1xf32>
    %84 = tpu.reciprocal %83 {approx = true} : vector<16x1xf32> -> vector<16x1xf32>
    %85 = vector.broadcast %84 : vector<16x1xf32> to vector<16x16xf32>
    %86 = arith.mulf %81, %85 : vector<16x16xf32>
    %87 = arith.truncf %86 : vector<16x16xf32> to vector<16x16xbf16>
    %cst_30 = arith.constant dense<0.000000e+00> : vector<16x8xf32>
    %88 = tpu.matmul %87, %72, %cst_30 {dimension_numbers = #tpu.dot_dimension_numbers<[1], [0], [0], [1], [0, 0, 1, 1], [], []>} : vector<16x16xbf16>, vector<16x8xbf16>, vector<16x8xf32> -> vector<16x8xf32>
    %89 = arith.truncf %88 : vector<16x8xf32> to vector<16x8xbf16>
    %90 = vector.extract_strided_slice %11 {offsets = [16, 0], sizes = [8, 32], strides = [1, 1]} : vector<32x32xbf16> to vector<8x32xbf16>
    %cst_31 = arith.constant dense<0.000000e+00> : vector<16x32xf32>
    %91 = tpu.matmul %89, %90, %cst_31 {dimension_numbers = #tpu.dot_dimension_numbers<[1], [0], [0], [1], [0, 0, 1, 1], [], []>} : vector<16x8xbf16>, vector<8x32xbf16>, vector<16x32xf32> -> vector<16x32xf32>
    %92 = arith.addf %66, %91 : vector<16x32xf32>
    %93 = vector.extract_strided_slice %8 {offsets = [0, 24], sizes = [16, 8], strides = [1, 1]} : vector<16x32xf32> to vector<16x8xf32>
    %94 = arith.truncf %93 : vector<16x8xf32> to vector<16x8xbf16>
    %95 = vector.extract_strided_slice %9 {offsets = [0, 24], sizes = [16, 8], strides = [1, 1]} : vector<16x32xf32> to vector<16x8xf32>
    %96 = arith.truncf %95 : vector<16x8xf32> to vector<16x8xbf16>
    %97 = vector.extract_strided_slice %10 {offsets = [0, 24], sizes = [16, 8], strides = [1, 1]} : vector<16x32xf32> to vector<16x8xf32>
    %98 = arith.truncf %97 : vector<16x8xf32> to vector<16x8xbf16>
    %cst_32 = arith.constant dense<0.000000e+00> : vector<16x16xf32>
    %99 = tpu.matmul %94, %96, %cst_32 {dimension_numbers = #tpu.dot_dimension_numbers<[1], [1], [0], [0], [0, 0, 1, 0], [], []>} : vector<16x8xbf16>, vector<16x8xbf16>, vector<16x16xf32> -> vector<16x16xf32>
    %cst_33 = arith.constant 0.353553385 : f32
    %100 = vector.broadcast %cst_33 : f32 to vector<16x16xf32>
    %101 = arith.mulf %99, %100 : vector<16x16xf32>
    %102 = arith.addf %101, %13 : vector<16x16xf32>
    %cst_34 = arith.constant dense<0xFF800000> : vector<16xf32>
    %103 = vector.multi_reduction <maximumf>, %102, %cst_34 [1] : vector<16x16xf32> to vector<16xf32>
    %104 = vector.shape_cast %103 : vector<16xf32> to vector<16x1xf32>
    %105 = vector.broadcast %104 : vector<16x1xf32> to vector<16x16xf32>
    %106 = arith.subf %102, %105 : vector<16x16xf32>
    %107 = math.exp %106 : vector<16x16xf32>
    %cst_35 = arith.constant dense<0.000000e+00> : vector<16xf32>
    %108 = vector.multi_reduction <add>, %107, %cst_35 [1] : vector<16x16xf32> to vector<16xf32>
    %109 = vector.shape_cast %108 : vector<16xf32> to vector<16x1xf32>
    %110 = tpu.reciprocal %109 {approx = true} : vector<16x1xf32> -> vector<16x1xf32>
    %111 = vector.broadcast %110 : vector<16x1xf32> to vector<16x16xf32>
    %112 = arith.mulf %107, %111 : vector<16x16xf32>
    %113 = arith.truncf %112 : vector<16x16xf32> to vector<16x16xbf16>
    %cst_36 = arith.constant dense<0.000000e+00> : vector<16x8xf32>
    %114 = tpu.matmul %113, %98, %cst_36 {dimension_numbers = #tpu.dot_dimension_numbers<[1], [0], [0], [1], [0, 0, 1, 1], [], []>} : vector<16x16xbf16>, vector<16x8xbf16>, vector<16x8xf32> -> vector<16x8xf32>
    %115 = arith.truncf %114 : vector<16x8xf32> to vector<16x8xbf16>
    %116 = vector.extract_strided_slice %11 {offsets = [24, 0], sizes = [8, 32], strides = [1, 1]} : vector<32x32xbf16> to vector<8x32xbf16>
    %cst_37 = arith.constant dense<0.000000e+00> : vector<16x32xf32>
    %117 = tpu.matmul %115, %116, %cst_37 {dimension_numbers = #tpu.dot_dimension_numbers<[1], [0], [0], [1], [0, 0, 1, 1], [], []>} : vector<16x8xbf16>, vector<8x32xbf16>, vector<16x32xf32> -> vector<16x32xf32>
    %118 = arith.addf %92, %117 : vector<16x32xf32>
    %119 = vector.broadcast %12 : vector<1x32xf32> to vector<16x32xf32>
    %120 = arith.addf %118, %119 : vector<16x32xf32>
    %121 = arith.addf %0, %120 : vector<16x32xf32>
    %c0_38 = arith.constant 0 : index
    %c0_39 = arith.constant 0 : index
    %122 = vector.load %arg9[%c0_38, %c0_39] : memref<1x32xf32, #tpu.memory_space<vmem>>, vector<1x32xf32>
    %c0_40 = arith.constant 0 : index
    %c0_41 = arith.constant 0 : index
    %123 = vector.load %arg10[%c0_40, %c0_41] : memref<1x32xf32, #tpu.memory_space<vmem>>, vector<1x32xf32>
    %cst_42 = arith.constant dense<0.000000e+00> : vector<16xf32>
    %124 = vector.multi_reduction <add>, %121, %cst_42 [1] : vector<16x32xf32> to vector<16xf32>
    %125 = vector.shape_cast %124 : vector<16xf32> to vector<16x1xf32>
    %cst_43 = arith.constant 3.200000e+01 : f32
    %126 = vector.broadcast %cst_43 : f32 to vector<16x1xf32>
    %127 = arith.divf %125, %126 : vector<16x1xf32>
    %128 = vector.broadcast %127 : vector<16x1xf32> to vector<16x32xf32>
    %129 = arith.subf %121, %128 : vector<16x32xf32>
    %130 = arith.mulf %129, %129 : vector<16x32xf32>
    %cst_44 = arith.constant dense<0.000000e+00> : vector<16xf32>
    %131 = vector.multi_reduction <add>, %130, %cst_44 [1] : vector<16x32xf32> to vector<16xf32>
    %132 = vector.shape_cast %131 : vector<16xf32> to vector<16x1xf32>
    %cst_45 = arith.constant 3.200000e+01 : f32
    %133 = vector.broadcast %cst_45 : f32 to vector<16x1xf32>
    %134 = arith.divf %132, %133 : vector<16x1xf32>
    %135 = vector.broadcast %127 : vector<16x1xf32> to vector<16x32xf32>
    %136 = arith.subf %121, %135 : vector<16x32xf32>
    %cst_46 = arith.constant 9.99999974E-6 : f32
    %137 = vector.broadcast %cst_46 : f32 to vector<16x1xf32>
    %138 = arith.addf %134, %137 : vector<16x1xf32>
    %139 = math.rsqrt %138 : vector<16x1xf32>
    %140 = vector.broadcast %139 : vector<16x1xf32> to vector<16x32xf32>
    %141 = arith.mulf %136, %140 : vector<16x32xf32>
    %142 = vector.broadcast %122 : vector<1x32xf32> to vector<16x32xf32>
    %143 = arith.mulf %141, %142 : vector<16x32xf32>
    %144 = vector.broadcast %123 : vector<1x32xf32> to vector<16x32xf32>
    %145 = arith.addf %143, %144 : vector<16x32xf32>
    %146 = arith.truncf %145 : vector<16x32xf32> to vector<16x32xbf16>
    %c0_47 = arith.constant 0 : index
    %c0_48 = arith.constant 0 : index
    %147 = vector.load %arg11[%c0_47, %c0_48] : memref<32x32xbf16, #tpu.memory_space<vmem>>, vector<32x32xbf16>
    %cst_49 = arith.constant dense<0.000000e+00> : vector<16x32xf32>
    %148 = tpu.matmul %146, %147, %cst_49 {dimension_numbers = #tpu.dot_dimension_numbers<[1], [0], [0], [1], [0, 0, 1, 1], [], []>} : vector<16x32xbf16>, vector<32x32xbf16>, vector<16x32xf32> -> vector<16x32xf32>
    %c0_50 = arith.constant 0 : index
    %c0_51 = arith.constant 0 : index
    %149 = vector.load %arg12[%c0_50, %c0_51] : memref<1x32xf32, #tpu.memory_space<vmem>>, vector<1x32xf32>
    %150 = vector.broadcast %149 : vector<1x32xf32> to vector<16x32xf32>
    %151 = arith.addf %148, %150 : vector<16x32xf32>
    %152 = arith.truncf %1 : vector<20x32xf32> to vector<20x32xbf16>
    %c0_52 = arith.constant 0 : index
    %c0_53 = arith.constant 0 : index
    %153 = vector.load %arg13[%c0_52, %c0_53] : memref<32x64xbf16, #tpu.memory_space<vmem>>, vector<32x64xbf16>
    %cst_54 = arith.constant dense<0.000000e+00> : vector<20x64xf32>
    %154 = tpu.matmul %152, %153, %cst_54 {dimension_numbers = #tpu.dot_dimension_numbers<[1], [0], [0], [1], [0, 0, 1, 1], [], []>} : vector<20x32xbf16>, vector<32x64xbf16>, vector<20x64xf32> -> vector<20x64xf32>
    %c0_55 = arith.constant 0 : index
    %c0_56 = arith.constant 0 : index
    %155 = vector.load %arg14[%c0_55, %c0_56] : memref<1x64xf32, #tpu.memory_space<vmem>>, vector<1x64xf32>
    %156 = vector.broadcast %155 : vector<1x64xf32> to vector<20x64xf32>
    %157 = arith.addf %154, %156 : vector<20x64xf32>
    %158 = vector.extract_strided_slice %157 {offsets = [0, 0], sizes = [20, 32], strides = [1, 1]} : vector<20x64xf32> to vector<20x32xf32>
    %159 = vector.extract_strided_slice %157 {offsets = [0, 32], sizes = [20, 32], strides = [1, 1]} : vector<20x64xf32> to vector<20x32xf32>
    %c0_57 = arith.constant 0 : index
    %c0_58 = arith.constant 0 : index
    %160 = vector.load %arg15[%c0_57, %c0_58] : memref<32x32xbf16, #tpu.memory_space<vmem>>, vector<32x32xbf16>
    %c0_59 = arith.constant 0 : index
    %c0_60 = arith.constant 0 : index
    %161 = vector.load %arg16[%c0_59, %c0_60] : memref<1x32xf32, #tpu.memory_space<vmem>>, vector<1x32xf32>
    %c0_61 = arith.constant 0 : index
    %c0_62 = arith.constant 0 : index
    %162 = vector.load %arg4[%c0_61, %c0_62] : memref<16x20xf32, #tpu.memory_space<vmem>>, vector<16x20xf32>
    %cst_63 = arith.constant 0.000000e+00 : f32
    %163 = vector.broadcast %cst_63 : f32 to vector<16x32xf32>
    %164 = vector.extract_strided_slice %151 {offsets = [0, 0], sizes = [16, 8], strides = [1, 1]} : vector<16x32xf32> to vector<16x8xf32>
    %165 = arith.truncf %164 : vector<16x8xf32> to vector<16x8xbf16>
    %166 = vector.extract_strided_slice %158 {offsets = [0, 0], sizes = [20, 8], strides = [1, 1]} : vector<20x32xf32> to vector<20x8xf32>
    %167 = arith.truncf %166 : vector<20x8xf32> to vector<20x8xbf16>
    %168 = vector.extract_strided_slice %159 {offsets = [0, 0], sizes = [20, 8], strides = [1, 1]} : vector<20x32xf32> to vector<20x8xf32>
    %169 = arith.truncf %168 : vector<20x8xf32> to vector<20x8xbf16>
    %cst_64 = arith.constant dense<0.000000e+00> : vector<16x20xf32>
    %170 = tpu.matmul %165, %167, %cst_64 {dimension_numbers = #tpu.dot_dimension_numbers<[1], [1], [0], [0], [0, 0, 1, 0], [], []>} : vector<16x8xbf16>, vector<20x8xbf16>, vector<16x20xf32> -> vector<16x20xf32>
    %cst_65 = arith.constant 0.353553385 : f32
    %171 = vector.broadcast %cst_65 : f32 to vector<16x20xf32>
    %172 = arith.mulf %170, %171 : vector<16x20xf32>
    %173 = arith.addf %172, %162 : vector<16x20xf32>
    %cst_66 = arith.constant dense<0xFF800000> : vector<16xf32>
    %174 = vector.multi_reduction <maximumf>, %173, %cst_66 [1] : vector<16x20xf32> to vector<16xf32>
    %175 = vector.shape_cast %174 : vector<16xf32> to vector<16x1xf32>
    %176 = vector.broadcast %175 : vector<16x1xf32> to vector<16x20xf32>
    %177 = arith.subf %173, %176 : vector<16x20xf32>
    %178 = math.exp %177 : vector<16x20xf32>
    %cst_67 = arith.constant dense<0.000000e+00> : vector<16xf32>
    %179 = vector.multi_reduction <add>, %178, %cst_67 [1] : vector<16x20xf32> to vector<16xf32>
    %180 = vector.shape_cast %179 : vector<16xf32> to vector<16x1xf32>
    %181 = tpu.reciprocal %180 {approx = true} : vector<16x1xf32> -> vector<16x1xf32>
    %182 = vector.broadcast %181 : vector<16x1xf32> to vector<16x20xf32>
    %183 = arith.mulf %178, %182 : vector<16x20xf32>
    %184 = arith.truncf %183 : vector<16x20xf32> to vector<16x20xbf16>
    %cst_68 = arith.constant dense<0.000000e+00> : vector<16x8xf32>
    %185 = tpu.matmul %184, %169, %cst_68 {dimension_numbers = #tpu.dot_dimension_numbers<[1], [0], [0], [1], [0, 0, 1, 1], [], []>} : vector<16x20xbf16>, vector<20x8xbf16>, vector<16x8xf32> -> vector<16x8xf32>
    %186 = arith.truncf %185 : vector<16x8xf32> to vector<16x8xbf16>
    %187 = vector.extract_strided_slice %160 {offsets = [0, 0], sizes = [8, 32], strides = [1, 1]} : vector<32x32xbf16> to vector<8x32xbf16>
    %cst_69 = arith.constant dense<0.000000e+00> : vector<16x32xf32>
    %188 = tpu.matmul %186, %187, %cst_69 {dimension_numbers = #tpu.dot_dimension_numbers<[1], [0], [0], [1], [0, 0, 1, 1], [], []>} : vector<16x8xbf16>, vector<8x32xbf16>, vector<16x32xf32> -> vector<16x32xf32>
    %189 = arith.addf %163, %188 : vector<16x32xf32>
    %190 = vector.extract_strided_slice %151 {offsets = [0, 8], sizes = [16, 8], strides = [1, 1]} : vector<16x32xf32> to vector<16x8xf32>
    %191 = arith.truncf %190 : vector<16x8xf32> to vector<16x8xbf16>
    %192 = vector.extract_strided_slice %158 {offsets = [0, 8], sizes = [20, 8], strides = [1, 1]} : vector<20x32xf32> to vector<20x8xf32>
    %193 = arith.truncf %192 : vector<20x8xf32> to vector<20x8xbf16>
    %194 = vector.extract_strided_slice %159 {offsets = [0, 8], sizes = [20, 8], strides = [1, 1]} : vector<20x32xf32> to vector<20x8xf32>
    %195 = arith.truncf %194 : vector<20x8xf32> to vector<20x8xbf16>
    %cst_70 = arith.constant dense<0.000000e+00> : vector<16x20xf32>
    %196 = tpu.matmul %191, %193, %cst_70 {dimension_numbers = #tpu.dot_dimension_numbers<[1], [1], [0], [0], [0, 0, 1, 0], [], []>} : vector<16x8xbf16>, vector<20x8xbf16>, vector<16x20xf32> -> vector<16x20xf32>
    %cst_71 = arith.constant 0.353553385 : f32
    %197 = vector.broadcast %cst_71 : f32 to vector<16x20xf32>
    %198 = arith.mulf %196, %197 : vector<16x20xf32>
    %199 = arith.addf %198, %162 : vector<16x20xf32>
    %cst_72 = arith.constant dense<0xFF800000> : vector<16xf32>
    %200 = vector.multi_reduction <maximumf>, %199, %cst_72 [1] : vector<16x20xf32> to vector<16xf32>
    %201 = vector.shape_cast %200 : vector<16xf32> to vector<16x1xf32>
    %202 = vector.broadcast %201 : vector<16x1xf32> to vector<16x20xf32>
    %203 = arith.subf %199, %202 : vector<16x20xf32>
    %204 = math.exp %203 : vector<16x20xf32>
    %cst_73 = arith.constant dense<0.000000e+00> : vector<16xf32>
    %205 = vector.multi_reduction <add>, %204, %cst_73 [1] : vector<16x20xf32> to vector<16xf32>
    %206 = vector.shape_cast %205 : vector<16xf32> to vector<16x1xf32>
    %207 = tpu.reciprocal %206 {approx = true} : vector<16x1xf32> -> vector<16x1xf32>
    %208 = vector.broadcast %207 : vector<16x1xf32> to vector<16x20xf32>
    %209 = arith.mulf %204, %208 : vector<16x20xf32>
    %210 = arith.truncf %209 : vector<16x20xf32> to vector<16x20xbf16>
    %cst_74 = arith.constant dense<0.000000e+00> : vector<16x8xf32>
    %211 = tpu.matmul %210, %195, %cst_74 {dimension_numbers = #tpu.dot_dimension_numbers<[1], [0], [0], [1], [0, 0, 1, 1], [], []>} : vector<16x20xbf16>, vector<20x8xbf16>, vector<16x8xf32> -> vector<16x8xf32>
    %212 = arith.truncf %211 : vector<16x8xf32> to vector<16x8xbf16>
    %213 = vector.extract_strided_slice %160 {offsets = [8, 0], sizes = [8, 32], strides = [1, 1]} : vector<32x32xbf16> to vector<8x32xbf16>
    %cst_75 = arith.constant dense<0.000000e+00> : vector<16x32xf32>
    %214 = tpu.matmul %212, %213, %cst_75 {dimension_numbers = #tpu.dot_dimension_numbers<[1], [0], [0], [1], [0, 0, 1, 1], [], []>} : vector<16x8xbf16>, vector<8x32xbf16>, vector<16x32xf32> -> vector<16x32xf32>
    %215 = arith.addf %189, %214 : vector<16x32xf32>
    %216 = vector.extract_strided_slice %151 {offsets = [0, 16], sizes = [16, 8], strides = [1, 1]} : vector<16x32xf32> to vector<16x8xf32>
    %217 = arith.truncf %216 : vector<16x8xf32> to vector<16x8xbf16>
    %218 = vector.extract_strided_slice %158 {offsets = [0, 16], sizes = [20, 8], strides = [1, 1]} : vector<20x32xf32> to vector<20x8xf32>
    %219 = arith.truncf %218 : vector<20x8xf32> to vector<20x8xbf16>
    %220 = vector.extract_strided_slice %159 {offsets = [0, 16], sizes = [20, 8], strides = [1, 1]} : vector<20x32xf32> to vector<20x8xf32>
    %221 = arith.truncf %220 : vector<20x8xf32> to vector<20x8xbf16>
    %cst_76 = arith.constant dense<0.000000e+00> : vector<16x20xf32>
    %222 = tpu.matmul %217, %219, %cst_76 {dimension_numbers = #tpu.dot_dimension_numbers<[1], [1], [0], [0], [0, 0, 1, 0], [], []>} : vector<16x8xbf16>, vector<20x8xbf16>, vector<16x20xf32> -> vector<16x20xf32>
    %cst_77 = arith.constant 0.353553385 : f32
    %223 = vector.broadcast %cst_77 : f32 to vector<16x20xf32>
    %224 = arith.mulf %222, %223 : vector<16x20xf32>
    %225 = arith.addf %224, %162 : vector<16x20xf32>
    %cst_78 = arith.constant dense<0xFF800000> : vector<16xf32>
    %226 = vector.multi_reduction <maximumf>, %225, %cst_78 [1] : vector<16x20xf32> to vector<16xf32>
    %227 = vector.shape_cast %226 : vector<16xf32> to vector<16x1xf32>
    %228 = vector.broadcast %227 : vector<16x1xf32> to vector<16x20xf32>
    %229 = arith.subf %225, %228 : vector<16x20xf32>
    %230 = math.exp %229 : vector<16x20xf32>
    %cst_79 = arith.constant dense<0.000000e+00> : vector<16xf32>
    %231 = vector.multi_reduction <add>, %230, %cst_79 [1] : vector<16x20xf32> to vector<16xf32>
    %232 = vector.shape_cast %231 : vector<16xf32> to vector<16x1xf32>
    %233 = tpu.reciprocal %232 {approx = true} : vector<16x1xf32> -> vector<16x1xf32>
    %234 = vector.broadcast %233 : vector<16x1xf32> to vector<16x20xf32>
    %235 = arith.mulf %230, %234 : vector<16x20xf32>
    %236 = arith.truncf %235 : vector<16x20xf32> to vector<16x20xbf16>
    %cst_80 = arith.constant dense<0.000000e+00> : vector<16x8xf32>
    %237 = tpu.matmul %236, %221, %cst_80 {dimension_numbers = #tpu.dot_dimension_numbers<[1], [0], [0], [1], [0, 0, 1, 1], [], []>} : vector<16x20xbf16>, vector<20x8xbf16>, vector<16x8xf32> -> vector<16x8xf32>
    %238 = arith.truncf %237 : vector<16x8xf32> to vector<16x8xbf16>
    %239 = vector.extract_strided_slice %160 {offsets = [16, 0], sizes = [8, 32], strides = [1, 1]} : vector<32x32xbf16> to vector<8x32xbf16>
    %cst_81 = arith.constant dense<0.000000e+00> : vector<16x32xf32>
    %240 = tpu.matmul %238, %239, %cst_81 {dimension_numbers = #tpu.dot_dimension_numbers<[1], [0], [0], [1], [0, 0, 1, 1], [], []>} : vector<16x8xbf16>, vector<8x32xbf16>, vector<16x32xf32> -> vector<16x32xf32>
    %241 = arith.addf %215, %240 : vector<16x32xf32>
    %242 = vector.extract_strided_slice %151 {offsets = [0, 24], sizes = [16, 8], strides = [1, 1]} : vector<16x32xf32> to vector<16x8xf32>
    %243 = arith.truncf %242 : vector<16x8xf32> to vector<16x8xbf16>
    %244 = vector.extract_strided_slice %158 {offsets = [0, 24], sizes = [20, 8], strides = [1, 1]} : vector<20x32xf32> to vector<20x8xf32>
    %245 = arith.truncf %244 : vector<20x8xf32> to vector<20x8xbf16>
    %246 = vector.extract_strided_slice %159 {offsets = [0, 24], sizes = [20, 8], strides = [1, 1]} : vector<20x32xf32> to vector<20x8xf32>
    %247 = arith.truncf %246 : vector<20x8xf32> to vector<20x8xbf16>
    %cst_82 = arith.constant dense<0.000000e+00> : vector<16x20xf32>
    %248 = tpu.matmul %243, %245, %cst_82 {dimension_numbers = #tpu.dot_dimension_numbers<[1], [1], [0], [0], [0, 0, 1, 0], [], []>} : vector<16x8xbf16>, vector<20x8xbf16>, vector<16x20xf32> -> vector<16x20xf32>
    %cst_83 = arith.constant 0.353553385 : f32
    %249 = vector.broadcast %cst_83 : f32 to vector<16x20xf32>
    %250 = arith.mulf %248, %249 : vector<16x20xf32>
    %251 = arith.addf %250, %162 : vector<16x20xf32>
    %cst_84 = arith.constant dense<0xFF800000> : vector<16xf32>
    %252 = vector.multi_reduction <maximumf>, %251, %cst_84 [1] : vector<16x20xf32> to vector<16xf32>
    %253 = vector.shape_cast %252 : vector<16xf32> to vector<16x1xf32>
    %254 = vector.broadcast %253 : vector<16x1xf32> to vector<16x20xf32>
    %255 = arith.subf %251, %254 : vector<16x20xf32>
    %256 = math.exp %255 : vector<16x20xf32>
    %cst_85 = arith.constant dense<0.000000e+00> : vector<16xf32>
    %257 = vector.multi_reduction <add>, %256, %cst_85 [1] : vector<16x20xf32> to vector<16xf32>
    %258 = vector.shape_cast %257 : vector<16xf32> to vector<16x1xf32>
    %259 = tpu.reciprocal %258 {approx = true} : vector<16x1xf32> -> vector<16x1xf32>
    %260 = vector.broadcast %259 : vector<16x1xf32> to vector<16x20xf32>
    %261 = arith.mulf %256, %260 : vector<16x20xf32>
    %262 = arith.truncf %261 : vector<16x20xf32> to vector<16x20xbf16>
    %cst_86 = arith.constant dense<0.000000e+00> : vector<16x8xf32>
    %263 = tpu.matmul %262, %247, %cst_86 {dimension_numbers = #tpu.dot_dimension_numbers<[1], [0], [0], [1], [0, 0, 1, 1], [], []>} : vector<16x20xbf16>, vector<20x8xbf16>, vector<16x8xf32> -> vector<16x8xf32>
    %264 = arith.truncf %263 : vector<16x8xf32> to vector<16x8xbf16>
    %265 = vector.extract_strided_slice %160 {offsets = [24, 0], sizes = [8, 32], strides = [1, 1]} : vector<32x32xbf16> to vector<8x32xbf16>
    %cst_87 = arith.constant dense<0.000000e+00> : vector<16x32xf32>
    %266 = tpu.matmul %264, %265, %cst_87 {dimension_numbers = #tpu.dot_dimension_numbers<[1], [0], [0], [1], [0, 0, 1, 1], [], []>} : vector<16x8xbf16>, vector<8x32xbf16>, vector<16x32xf32> -> vector<16x32xf32>
    %267 = arith.addf %241, %266 : vector<16x32xf32>
    %268 = vector.broadcast %161 : vector<1x32xf32> to vector<16x32xf32>
    %269 = arith.addf %267, %268 : vector<16x32xf32>
    %270 = arith.addf %145, %269 : vector<16x32xf32>
    %c0_88 = arith.constant 0 : index
    %c0_89 = arith.constant 0 : index
    %271 = vector.load %arg17[%c0_88, %c0_89] : memref<1x32xf32, #tpu.memory_space<vmem>>, vector<1x32xf32>
    %c0_90 = arith.constant 0 : index
    %c0_91 = arith.constant 0 : index
    %272 = vector.load %arg18[%c0_90, %c0_91] : memref<1x32xf32, #tpu.memory_space<vmem>>, vector<1x32xf32>
    %cst_92 = arith.constant dense<0.000000e+00> : vector<16xf32>
    %273 = vector.multi_reduction <add>, %270, %cst_92 [1] : vector<16x32xf32> to vector<16xf32>
    %274 = vector.shape_cast %273 : vector<16xf32> to vector<16x1xf32>
    %cst_93 = arith.constant 3.200000e+01 : f32
    %275 = vector.broadcast %cst_93 : f32 to vector<16x1xf32>
    %276 = arith.divf %274, %275 : vector<16x1xf32>
    %277 = vector.broadcast %276 : vector<16x1xf32> to vector<16x32xf32>
    %278 = arith.subf %270, %277 : vector<16x32xf32>
    %279 = arith.mulf %278, %278 : vector<16x32xf32>
    %cst_94 = arith.constant dense<0.000000e+00> : vector<16xf32>
    %280 = vector.multi_reduction <add>, %279, %cst_94 [1] : vector<16x32xf32> to vector<16xf32>
    %281 = vector.shape_cast %280 : vector<16xf32> to vector<16x1xf32>
    %cst_95 = arith.constant 3.200000e+01 : f32
    %282 = vector.broadcast %cst_95 : f32 to vector<16x1xf32>
    %283 = arith.divf %281, %282 : vector<16x1xf32>
    %284 = vector.broadcast %276 : vector<16x1xf32> to vector<16x32xf32>
    %285 = arith.subf %270, %284 : vector<16x32xf32>
    %cst_96 = arith.constant 9.99999974E-6 : f32
    %286 = vector.broadcast %cst_96 : f32 to vector<16x1xf32>
    %287 = arith.addf %283, %286 : vector<16x1xf32>
    %288 = math.rsqrt %287 : vector<16x1xf32>
    %289 = vector.broadcast %288 : vector<16x1xf32> to vector<16x32xf32>
    %290 = arith.mulf %285, %289 : vector<16x32xf32>
    %291 = vector.broadcast %271 : vector<1x32xf32> to vector<16x32xf32>
    %292 = arith.mulf %290, %291 : vector<16x32xf32>
    %293 = vector.broadcast %272 : vector<1x32xf32> to vector<16x32xf32>
    %294 = arith.addf %292, %293 : vector<16x32xf32>
    %295 = arith.truncf %294 : vector<16x32xf32> to vector<16x32xbf16>
    %c0_97 = arith.constant 0 : index
    %c0_98 = arith.constant 0 : index
    %296 = vector.load %arg19[%c0_97, %c0_98] : memref<32x64xbf16, #tpu.memory_space<vmem>>, vector<32x64xbf16>
    %cst_99 = arith.constant dense<0.000000e+00> : vector<16x64xf32>
    %297 = tpu.matmul %295, %296, %cst_99 {dimension_numbers = #tpu.dot_dimension_numbers<[1], [0], [0], [1], [0, 0, 1, 1], [], []>} : vector<16x32xbf16>, vector<32x64xbf16>, vector<16x64xf32> -> vector<16x64xf32>
    %c0_100 = arith.constant 0 : index
    %c0_101 = arith.constant 0 : index
    %298 = vector.load %arg20[%c0_100, %c0_101] : memref<1x64xf32, #tpu.memory_space<vmem>>, vector<1x64xf32>
    %299 = vector.broadcast %298 : vector<1x64xf32> to vector<16x64xf32>
    %300 = arith.addf %297, %299 : vector<16x64xf32>
    %cst_102 = arith.constant 0.000000e+00 : f32
    %301 = vector.broadcast %cst_102 : f32 to vector<16x64xf32>
    %302 = arith.maximumf %300, %301 : vector<16x64xf32>
    %303 = arith.truncf %302 : vector<16x64xf32> to vector<16x64xbf16>
    %c0_103 = arith.constant 0 : index
    %c0_104 = arith.constant 0 : index
    %304 = vector.load %arg21[%c0_103, %c0_104] : memref<64x32xbf16, #tpu.memory_space<vmem>>, vector<64x32xbf16>
    %cst_105 = arith.constant dense<0.000000e+00> : vector<16x32xf32>
    %305 = tpu.matmul %303, %304, %cst_105 {dimension_numbers = #tpu.dot_dimension_numbers<[1], [0], [0], [1], [0, 0, 1, 1], [], []>} : vector<16x64xbf16>, vector<64x32xbf16>, vector<16x32xf32> -> vector<16x32xf32>
    %c0_106 = arith.constant 0 : index
    %c0_107 = arith.constant 0 : index
    %306 = vector.load %arg22[%c0_106, %c0_107] : memref<1x32xf32, #tpu.memory_space<vmem>>, vector<1x32xf32>
    %307 = vector.broadcast %306 : vector<1x32xf32> to vector<16x32xf32>
    %308 = arith.addf %305, %307 : vector<16x32xf32>
    %309 = arith.addf %294, %308 : vector<16x32xf32>
    %c0_108 = arith.constant 0 : index
    %c0_109 = arith.constant 0 : index
    %310 = vector.load %arg23[%c0_108, %c0_109] : memref<1x32xf32, #tpu.memory_space<vmem>>, vector<1x32xf32>
    %c0_110 = arith.constant 0 : index
    %c0_111 = arith.constant 0 : index
    %311 = vector.load %arg24[%c0_110, %c0_111] : memref<1x32xf32, #tpu.memory_space<vmem>>, vector<1x32xf32>
    %cst_112 = arith.constant dense<0.000000e+00> : vector<16xf32>
    %312 = vector.multi_reduction <add>, %309, %cst_112 [1] : vector<16x32xf32> to vector<16xf32>
    %313 = vector.shape_cast %312 : vector<16xf32> to vector<16x1xf32>
    %cst_113 = arith.constant 3.200000e+01 : f32
    %314 = vector.broadcast %cst_113 : f32 to vector<16x1xf32>
    %315 = arith.divf %313, %314 : vector<16x1xf32>
    %316 = vector.broadcast %315 : vector<16x1xf32> to vector<16x32xf32>
    %317 = arith.subf %309, %316 : vector<16x32xf32>
    %318 = arith.mulf %317, %317 : vector<16x32xf32>
    %cst_114 = arith.constant dense<0.000000e+00> : vector<16xf32>
    %319 = vector.multi_reduction <add>, %318, %cst_114 [1] : vector<16x32xf32> to vector<16xf32>
    %320 = vector.shape_cast %319 : vector<16xf32> to vector<16x1xf32>
    %cst_115 = arith.constant 3.200000e+01 : f32
    %321 = vector.broadcast %cst_115 : f32 to vector<16x1xf32>
    %322 = arith.divf %320, %321 : vector<16x1xf32>
    %323 = vector.broadcast %315 : vector<16x1xf32> to vector<16x32xf32>
    %324 = arith.subf %309, %323 : vector<16x32xf32>
    %cst_116 = arith.constant 9.99999974E-6 : f32
    %325 = vector.broadcast %cst_116 : f32 to vector<16x1xf32>
    %326 = arith.addf %322, %325 : vector<16x1xf32>
    %327 = math.rsqrt %326 : vector<16x1xf32>
    %328 = vector.broadcast %327 : vector<16x1xf32> to vector<16x32xf32>
    %329 = arith.mulf %324, %328 : vector<16x32xf32>
    %330 = vector.broadcast %310 : vector<1x32xf32> to vector<16x32xf32>
    %331 = arith.mulf %329, %330 : vector<16x32xf32>
    %332 = vector.broadcast %311 : vector<1x32xf32> to vector<16x32xf32>
    %333 = arith.addf %331, %332 : vector<16x32xf32>
    %c0_117 = arith.constant 0 : index
    %c0_118 = arith.constant 0 : index
    %334 = vector.load %arg25[%c0_117, %c0_118] : memref<16x32xf32, #tpu.memory_space<vmem>>, vector<16x32xf32>
    tpu.vector_store %arg25[%c0_117, %c0_118], %333 {strides = array<i32>} : memref<16x32xf32, #tpu.memory_space<vmem>>, vector<16x32xf32>,
    return
  }
  func.func @transform_0(%arg0: i32) -> (i32, i32) {
    %c0_i32 = arith.constant 0 : i32
    %c0_i32_0 = arith.constant 0 : i32
    %c0_i32_1 = arith.constant 0 : i32
    return %c0_i32, %c0_i32_0 : i32, i32
  }
  func.func @transform_1(%arg0: i32) -> (i32, i32) {
    %c0_i32 = arith.constant 0 : i32
    %c0_i32_0 = arith.constant 0 : i32
    %c0_i32_1 = arith.constant 0 : i32
    return %c0_i32, %c0_i32_0 : i32, i32
  }
  func.func @transform_2(%arg0: i32) -> (i32, i32) {
    %c0_i32 = arith.constant 0 : i32
    %c0_i32_0 = arith.constant 0 : i32
    %c0_i32_1 = arith.constant 0 : i32
    return %c0_i32, %c0_i32_0 : i32, i32
  }
  func.func @transform_3(%arg0: i32) -> (i32, i32) {
    %c0_i32 = arith.constant 0 : i32
    %c0_i32_0 = arith.constant 0 : i32
    %c0_i32_1 = arith.constant 0 : i32
    return %c0_i32, %c0_i32_0 : i32, i32
  }
  func.func @transform_4(%arg0: i32) -> (i32, i32) {
    %c0_i32 = arith.constant 0 : i32
    %c0_i32_0 = arith.constant 0 : i32
    %c0_i32_1 = arith.constant 0 : i32
    return %c0_i32, %c0_i32_0 : i32, i32
  }
  func.func @transform_5(%arg0: i32) -> (i32, i32) {
    %c0_i32 = arith.constant 0 : i32
    %c0_i32_0 = arith.constant 0 : i32
    %c0_i32_1 = arith.constant 0 : i32
    return %c0_i32, %c0_i32_0 : i32, i32
  }
  func.func @transform_6(%arg0: i32) -> (i32, i32) {
    %c0_i32 = arith.constant 0 : i32
    %c0_i32_0 = arith.constant 0 : i32
    %c0_i32_1 = arith.constant 0 : i32
    return %c0_i32, %c0_i32_0 : i32, i32
  }
  func.func @transform_7(%arg0: i32) -> (i32, i32) {
    %c0_i32 = arith.constant 0 : i32
    %c0_i32_0 = arith.constant 0 : i32
    %c0_i32_1 = arith.constant 0 : i32
    return %c0_i32, %c0_i32_0 : i32, i32
  }
  func.func @transform_8(%arg0: i32) -> (i32, i32) {
    %c0_i32 = arith.constant 0 : i32
    %c0_i32_0 = arith.constant 0 : i32
    %c0_i32_1 = arith.constant 0 : i32
    return %c0_i32, %c0_i32_0 : i32, i32
  }
  func.func @transform_9(%arg0: i32) -> (i32, i32) {
    %c0_i32 = arith.constant 0 : i32
    %c0_i32_0 = arith.constant 0 : i32
    %c0_i32_1 = arith.constant 0 : i32
    return %c0_i32, %c0_i32_0 : i32, i32
  }
  func.func @transform_10(%arg0: i32) -> (i32, i32) {
    %c0_i32 = arith.constant 0 : i32
    %c0_i32_0 = arith.constant 0 : i32
    %c0_i32_1 = arith.constant 0 : i32
    return %c0_i32, %c0_i32_0 : i32, i32
  }
  func.func @transform_11(%arg0: i32) -> (i32, i32) {
    %c0_i32 = arith.constant 0 : i32
    %c0_i32_0 = arith.constant 0 : i32
    %c0_i32_1 = arith.constant 0 : i32
    return %c0_i32, %c0_i32_0 : i32, i32
  }
  func.func @transform_12(%arg0: i32) -> (i32, i32) {
    %c0_i32 = arith.constant 0 : i32
    %c0_i32_0 = arith.constant 0 : i32
    %c0_i32_1 = arith.constant 0 : i32
    return %c0_i32, %c0_i32_0 : i32, i32
  }
  func.func @transform_13(%arg0: i32) -> (i32, i32) {
    %c0_i32 = arith.constant 0 : i32
    %c0_i32_0 = arith.constant 0 : i32
    %c0_i32_1 = arith.constant 0 : i32
    return %c0_i32, %c0_i32_0 : i32, i32
  }
  func.func @transform_14(%arg0: i32) -> (i32, i32) {
    %c0_i32 = arith.constant 0 : i32
    %c0_i32_0 = arith.constant 0 : i32
    %c0_i32_1 = arith.constant 0 : i32
    return %c0_i32, %c0_i32_0 : i32, i32
  }
  func.func @transform_15(%arg0: i32) -> (i32, i32) {
    %c0_i32 = arith.constant 0 : i32
    %c0_i32_0 = arith.constant 0 : i32
    %c0_i32_1 = arith.constant 0 : i32
    return %c0_i32, %c0_i32_0 : i32, i32
  }
  func.func @transform_16(%arg0: i32) -> (i32, i32) {
    %c0_i32 = arith.constant 0 : i32
    %c0_i32_0 = arith.constant 0 : i32
    %c0_i32_1 = arith.constant 0 : i32
    return %c0_i32, %c0_i32_0 : i32, i32
  }
  func.func @transform_17(%arg0: i32) -> (i32, i32) {
    %c0_i32 = arith.constant 0 : i32
    %c0_i32_0 = arith.constant 0 : i32
    %c0_i32_1 = arith.constant 0 : i32
    return %c0_i32, %c0_i32_0 : i32, i32
  }
  func.func @transform_18(%arg0: i32) -> (i32, i32) {
    %c0_i32 = arith.constant 0 : i32
    %c0_i32_0 = arith.constant 0 : i32
    %c0_i32_1 = arith.constant 0 : i32
    return %c0_i32, %c0_i32_0 : i32, i32
  }
  func.func @transform_19(%arg0: i32) -> (i32, i32) {
    %c0_i32 = arith.constant 0 : i32
    %c0_i32_0 = arith.constant 0 : i32
    %c0_i32_1 = arith.constant 0 : i32
    return %c0_i32, %c0_i32_0 : i32, i32
  }
  func.func @transform_20(%arg0: i32) -> (i32, i32) {
    %c0_i32 = arith.constant 0 : i32
    %c0_i32_0 = arith.constant 0 : i32
    %c0_i32_1 = arith.constant 0 : i32
    return %c0_i32, %c0_i32_0 : i32, i32
  }
  func.func @transform_21(%arg0: i32) -> (i32, i32) {
    %c0_i32 = arith.constant 0 : i32
    %c0_i32_0 = arith.constant 0 : i32
    %c0_i32_1 = arith.constant 0 : i32
    return %c0_i32, %c0_i32_0 : i32, i32
  }
  func.func @transform_22(%arg0: i32) -> (i32, i32) {
    %c0_i32 = arith.constant 0 : i32
    %c0_i32_0 = arith.constant 0 : i32
    %c0_i32_1 = arith.constant 0 : i32
    return %c0_i32, %c0_i32_0 : i32, i32
  }
  func.func @transform_23(%arg0: i32) -> (i32, i32) {
    %c0_i32 = arith.constant 0 : i32
    %c0_i32_0 = arith.constant 0 : i32
    %c0_i32_1 = arith.constant 0 : i32
    return %c0_i32, %c0_i32_0 : i32, i32
  }
  func.func @transform_24(%arg0: i32) -> (i32, i32) {
    %c0_i32 = arith.constant 0 : i32
    %c0_i32_0 = arith.constant 0 : i32
    %c0_i32_1 = arith.constant 0 : i32
    return %c0_i32, %c0_i32_0 : i32, i32
  }
}

</mosaic_0001>

<llo_original>
// kernel: tpu_custom_call.1
$region0: #{tpu_custom_call.1}
  #allocation0 [shape = 'u32[]', space=smem, size = 0x4, offset = 0x4, fixed_abs, tag = 'smem constant byte address 0x4 - core index']
  #allocation1 [shape = 'u32[144,128]{1,0:T(1,128)}', space=vmem, size = 0x12000, scoped, tag = 'internal scratch']
  %s0 = inlined_call_operand.vmem [shape: f32[16,32], index: 0, kind: input, shape index: {}]
  %s1 = inlined_call_operand.vmem [shape: f32[20,32], index: 1, kind: input, shape index: {}]
  %s2 = inlined_call_operand.hbm [shape: f32[16,16], index: 2, kind: input, shape index: {}]
  %s3 = inlined_call_operand.vmem [shape: f32[16,20], index: 3, kind: input, shape index: {}]
  %s4 = inlined_call_operand.hbm [shape: bf16[32,96], index: 4, kind: input, shape index: {}]
  %s5 = inlined_call_operand.hbm [shape: f32[1,96], index: 5, kind: input, shape index: {}]
  %s6 = inlined_call_operand.hbm [shape: bf16[32,32], index: 6, kind: input, shape index: {}]
  %s7 = inlined_call_operand.hbm [shape: f32[1,32], index: 7, kind: input, shape index: {}]
  %s8 = inlined_call_operand.hbm [shape: f32[1,32], index: 8, kind: input, shape index: {}]
  %s9 = inlined_call_operand.hbm [shape: f32[1,32], index: 9, kind: input, shape index: {}]
  %s10 = inlined_call_operand.vmem [shape: bf16[32,32], index: 10, kind: input, shape index: {}]
  %s11 = inlined_call_operand.hbm [shape: f32[1,32], index: 11, kind: input, shape index: {}]
  %s12 = inlined_call_operand.vmem [shape: bf16[32,64], index: 12, kind: input, shape index: {}]
  %s13 = inlined_call_operand.hbm [shape: f32[1,64], index: 13, kind: input, shape index: {}]
  %s14 = inlined_call_operand.hbm [shape: bf16[32,32], index: 14, kind: input, shape index: {}]
  %s15 = inlined_call_operand.hbm [shape: f32[1,32], index: 15, kind: input, shape index: {}]
  %s16 = inlined_call_operand.vmem [shape: f32[1,32], index: 16, kind: input, shape index: {}]
  %s17 = inlined_call_operand.vmem [shape: f32[1,32], index: 17, kind: input, shape index: {}]
  %s18 = inlined_call_operand.vmem [shape: bf16[32,64], index: 18, kind: input, shape index: {}]
  %s19 = inlined_call_operand.vmem [shape: f32[1,64], index: 19, kind: input, shape index: {}]
  %s20 = inlined_call_operand.vmem [shape: bf16[64,32], index: 20, kind: input, shape index: {}]
  %s21 = inlined_call_operand.vmem [shape: f32[1,32], index: 21, kind: input, shape index: {}]
  %s22 = inlined_call_operand.vmem [shape: f32[1,32], index: 22, kind: input, shape index: {}]
  %s23 = inlined_call_operand.vmem [shape: f32[1,32], index: 23, kind: input, shape index: {}]
  %s24 = inlined_call_operand.hbm [shape: f32[16,32], index: 24, kind: output, shape index: {}]
  %s25 = sld [smem:[#allocation0]]
  $region150: #{tpu_custom_call.1} parent=0
    _
  %s27 = ssub.s32 1, %s25
  %s28 = scalar_select 0, %s27, %s25
  $region1: #{tpu_custom_call.1} parent=0
    #allocation2 [shape = 'u8[8192]{0}', space=vmem, size = 0x2000, scoped, tag = 'input window, operand 2, single buffered']
    #allocation3 [shape = 's32[1]{0}', space=sflag, size = 0x4, scoped, tag = 'scoped memory for tpu_custom_call.1']
    #allocation4 [shape = 's32[1]{0}', space=sflag, size = 0x4, scoped, tag = 'scoped memory for tpu_custom_call.1']
    #allocation5 [shape = 'u8[8192]{0}', space=vmem, size = 0x2000, scoped, tag = 'input window, operand 4, single buffered']
    #allocation6 [shape = 's32[1]{0}', space=sflag, size = 0x4, scoped, tag = 'scoped memory for tpu_custom_call.1']
    #allocation7 [shape = 'u8[512]{0}', space=vmem, size = 0x400, scoped, tag = 'input window, operand 5, single buffered']
    #allocation8 [shape = 'u8[8192]{0}', space=vmem, size = 0x2000, scoped, tag = 'input window, operand 6, single buffered']
    #allocation9 [shape = 's32[1]{0}', space=sflag, size = 0x4, scoped, tag = 'scoped memory for tpu_custom_call.1']
    #allocation10 [shape = 'u8[512]{0}', space=vmem, size = 0x400, scoped, tag = 'input window, operand 7, single buffered']
    #allocation11 [shape = 'u8[512]{0}', space=vmem, size = 0x400, scoped, tag = 'input window, operand 8, single buffered']
    #allocation12 [shape = 's32[1]{0}', space=sflag, size = 0x4, scoped, tag = 'scoped memory for tpu_custom_call.1']
    #allocation13 [shape = 'u8[512]{0}', space=vmem, size = 0x400, scoped, tag = 'input window, operand 9, single buffered']
    #allocation14 [shape = 'u8[512]{0}', space=vmem, size = 0x400, scoped, tag = 'input window, operand 11, single buffered']
    #allocation15 [shape = 's32[1]{0}', space=sflag, size = 0x4, scoped, tag = 'scoped memory for tpu_custom_call.1']
    #allocation16 [shape = 'u8[512]{0}', space=vmem, size = 0x400, scoped, tag = 'input window, operand 13, single buffered']
    #allocation17 [shape = 'u8[8192]{0}', space=vmem, size = 0x2000, scoped, tag = 'input window, operand 14, single buffered']
    #allocation18 [shape = 's32[1]{0}', space=sflag, size = 0x4, scoped, tag = 'scoped memory for tpu_custom_call.1']
    #allocation19 [shape = 'u8[512]{0}', space=vmem, size = 0x400, scoped, tag = 'input window, operand 15, single buffered']
    #allocation20 [shape = 'u8[8192]{0}', space=vmem, size = 0x2000, scoped, tag = 'output window, operand 0, single buffered']
    %29 = vsyncpa [#allocation3], 0
    %30 = vsyncpa [#allocation6], 0
    %31 = vsyncpa [#allocation9], 0
    %32 = vsyncpa [#allocation12], 0
    %33 = vsyncpa [#allocation15], 0
    %34 = vsyncpa [#allocation18], 0
    %35 = vsyncpa [#allocation4], 0
    // Predicated region
    $region2: #{tpu_custom_call.1} parent=1 // pred_check
      _
    $region3: #{tpu_custom_call.1} parent=1 // pred_check_branch
      %37 = sbr.rel (0) target = $region5
    $region4: #{tpu_custom_call.1} parent=1 // pred_region
      _
    $region5: #{tpu_custom_call.1} parent=1 // pred_fallthru
      _
    // Predicated region
    $region6: #{tpu_custom_call.1} parent=1 // pred_check
      _
    $region7: #{tpu_custom_call.1} parent=1 // pred_check_branch
      %39 = sbr.rel (0) target = $region9
    $region8: #{tpu_custom_call.1} parent=1 // pred_region
      _
    $region9: #{tpu_custom_call.1} parent=1 // pred_fallthru
      _
    // Predicated region
    $region10: #{tpu_custom_call.1} parent=1 // pred_check
      _
    $region11: #{tpu_custom_call.1} parent=1 // pred_check_branch
      %41 = sbr.rel (0) target = $region13
    $region12: #{tpu_custom_call.1} parent=1 // pred_region
      %s43 = ssub.s32 256, 256
      %44 = vsyncadd [#allocation3], %s43
      %s45 = sshll.u32 [#allocation2], 4
      %s46 = int_to_ptr.vmem [resolvable:$true] %s45
      %51 = dma.hbm_to_vmem [thread:$0]  %s2, 256, %s46, [#allocation3], 128, 128, 8
    $region13: #{tpu_custom_call.1} parent=1 // pred_fallthru
      _
    // Predicated region
    $region14: #{tpu_custom_call.1} parent=1 // pred_check
      _
    $region15: #{tpu_custom_call.1} parent=1 // pred_check_branch
      %53 = sbr.rel (0) target = $region17
    $region16: #{tpu_custom_call.1} parent=1 // pred_region
      _
    $region17: #{tpu_custom_call.1} parent=1 // pred_fallthru
      _
    // Predicated region
    $region18: #{tpu_custom_call.1} parent=1 // pred_check
      _
    $region19: #{tpu_custom_call.1} parent=1 // pred_check_branch
      %55 = sbr.rel (0) target = $region21
    $region20: #{tpu_custom_call.1} parent=1 // pred_region
      %s57 = ssub.s32 256, 256
      %58 = vsyncadd [#allocation6], %s57
      %s59 = sshll.u32 [#allocation5], 4
      %s60 = int_to_ptr.vmem [resolvable:$true] %s59
      %65 = dma.hbm_to_vmem [thread:$0]  %s4, 256, %s60, [#allocation6], 64, 64, 4
    $region21: #{tpu_custom_call.1} parent=1 // pred_fallthru
      _
    // Predicated region
    $region22: #{tpu_custom_call.1} parent=1 // pred_check
      _
    $region23: #{tpu_custom_call.1} parent=1 // pred_check_branch
      %67 = sbr.rel (0) target = $region25
    $region24: #{tpu_custom_call.1} parent=1 // pred_region
      %s69 = ssub.s32 16, 16
      %70 = vsyncadd [#allocation6], %s69
      %s72 = sshll.u32 [#allocation7], 4
      %s73 = int_to_ptr.vmem [resolvable:$true] %s72
      %75 = dma.hbm_to_vmem [thread:$0]  %s5, 16, %s73, [#allocation6]
    $region25: #{tpu_custom_call.1} parent=1 // pred_fallthru
      _
    // Predicated region
    $region26: #{tpu_custom_call.1} parent=1 // pred_check
      _
    $region27: #{tpu_custom_call.1} parent=1 // pred_check_branch
      %77 = sbr.rel (0) target = $region29
    $region28: #{tpu_custom_call.1} parent=1 // pred_region
      %s79 = ssub.s32 256, 256
      %80 = vsyncadd [#allocation9], %s79
      %s81 = sshll.u32 [#allocation8], 4
      %s82 = int_to_ptr.vmem [resolvable:$true] %s81
      %87 = dma.hbm_to_vmem [thread:$0]  %s6, 256, %s82, [#allocation9], 64, 64, 4
    $region29: #{tpu_custom_call.1} parent=1 // pred_fallthru
      _
    // Predicated region
    $region30: #{tpu_custom_call.1} parent=1 // pred_check
      _
    $region31: #{tpu_custom_call.1} parent=1 // pred_check_branch
      %89 = sbr.rel (0) target = $region33
    $region32: #{tpu_custom_call.1} parent=1 // pred_region
      %s91 = ssub.s32 16, 16
      %92 = vsyncadd [#allocation9], %s91
      %s94 = sshll.u32 [#allocation10], 4
      %s95 = int_to_ptr.vmem [resolvable:$true] %s94
      %97 = dma.hbm_to_vmem [thread:$0]  %s7, 16, %s95, [#allocation9]
    $region33: #{tpu_custom_call.1} parent=1 // pred_fallthru
      _
    // Predicated region
    $region34: #{tpu_custom_call.1} parent=1 // pred_check
      _
    $region35: #{tpu_custom_call.1} parent=1 // pred_check_branch
      %99 = sbr.rel (0) target = $region37
    $region36: #{tpu_custom_call.1} parent=1 // pred_region
      %s101 = ssub.s32 16, 16
      %102 = vsyncadd [#allocation12], %s101
      %s104 = sshll.u32 [#allocation11], 4
      %s105 = int_to_ptr.vmem [resolvable:$true] %s104
      %107 = dma.hbm_to_vmem [thread:$0]  %s8, 16, %s105, [#allocation12]
    $region37: #{tpu_custom_call.1} parent=1 // pred_fallthru
      _
    // Predicated region
    $region38: #{tpu_custom_call.1} parent=1 // pred_check
      _
    $region39: #{tpu_custom_call.1} parent=1 // pred_check_branch
      %109 = sbr.rel (0) target = $region41
    $region40: #{tpu_custom_call.1} parent=1 // pred_region
      %s111 = ssub.s32 16, 16
      %112 = vsyncadd [#allocation12], %s111
      %s114 = sshll.u32 [#allocation13], 4
      %s115 = int_to_ptr.vmem [resolvable:$true] %s114
      %117 = dma.hbm_to_vmem [thread:$0]  %s9, 16, %s115, [#allocation12]
    $region41: #{tpu_custom_call.1} parent=1 // pred_fallthru
      _
    // Predicated region
    $region42: #{tpu_custom_call.1} parent=1 // pred_check
      _
    $region43: #{tpu_custom_call.1} parent=1 // pred_check_branch
      %119 = sbr.rel (0) target = $region45
    $region44: #{tpu_custom_call.1} parent=1 // pred_region
      _
    $region45: #{tpu_custom_call.1} parent=1 // pred_fallthru
      _
    // Predicated region
    $region46: #{tpu_custom_call.1} parent=1 // pred_check
      _
    $region47: #{tpu_custom_call.1} parent=1 // pred_check_branch
      %121 = sbr.rel (0) target = $region49
    $region48: #{tpu_custom_call.1} parent=1 // pred_region
      %s123 = ssub.s32 16, 16
      %124 = vsyncadd [#allocation15], %s123
      %s126 = sshll.u32 [#allocation14], 4
      %s127 = int_to_ptr.vmem [resolvable:$true] %s126
      %129 = dma.hbm_to_vmem [thread:$0]  %s11, 16, %s127, [#allocation15]
    $region49: #{tpu_custom_call.1} parent=1 // pred_fallthru
      _
    // Predicated region
    $region50: #{tpu_custom_call.1} parent=1 // pred_check
      _
    $region51: #{tpu_custom_call.1} parent=1 // pred_check_branch
      %131 = sbr.rel (0) target = $region53
    $region52: #{tpu_custom_call.1} parent=1 // pred_region
      _
    $region53: #{tpu_custom_call.1} parent=1 // pred_fallthru
      _
    // Predicated region
    $region54: #{tpu_custom_call.1} parent=1 // pred_check
      _
    $region55: #{tpu_custom_call.1} parent=1 // pred_check_branch
      %133 = sbr.rel (0) target = $region57
    $region56: #{tpu_custom_call.1} parent=1 // pred_region
      %s135 = ssub.s32 16, 16
      %136 = vsyncadd [#allocation15], %s135
      %s138 = sshll.u32 [#allocation16], 4
      %s139 = int_to_ptr.vmem [resolvable:$true] %s138
      %141 = dma.hbm_to_vmem [thread:$0]  %s13, 16, %s139, [#allocation15]
    $region57: #{tpu_custom_call.1} parent=1 // pred_fallthru
      _
    // Predicated region
    $region58: #{tpu_custom_call.1} parent=1 // pred_check
      _
    $region59: #{tpu_custom_call.1} parent=1 // pred_check_branch
      %143 = sbr.rel (0) target = $region61
    $region60: #{tpu_custom_call.1} parent=1 // pred_region
      %s145 = ssub.s32 256, 256
      %146 = vsyncadd [#allocation18], %s145
      %s147 = sshll.u32 [#allocation17], 4
      %s148 = int_to_ptr.vmem [resolvable:$true] %s147
      %153 = dma.hbm_to_vmem [thread:$0]  %s14, 256, %s148, [#allocation18], 64, 64, 4
    $region61: #{tpu_custom_call.1} parent=1 // pred_fallthru
      _
    // Predicated region
    $region62: #{tpu_custom_call.1} parent=1 // pred_check
      _
    $region63: #{tpu_custom_call.1} parent=1 // pred_check_branch
      %155 = sbr.rel (0) target = $region65
    $region64: #{tpu_custom_call.1} parent=1 // pred_region
      %s157 = ssub.s32 16, 16
      %158 = vsyncadd [#allocation18], %s157
      %s160 = sshll.u32 [#allocation19], 4
      %s161 = int_to_ptr.vmem [resolvable:$true] %s160
      %163 = dma.hbm_to_vmem [thread:$0]  %s15, 16, %s161, [#allocation18]
    $region65: #{tpu_custom_call.1} parent=1 // pred_fallthru
      _
    // Predicated region
    $region66: #{tpu_custom_call.1} parent=1 // pred_check
      _
    $region67: #{tpu_custom_call.1} parent=1 // pred_check_branch
      %165 = sbr.rel (0) target = $region69
    $region68: #{tpu_custom_call.1} parent=1 // pred_region
      _
    $region69: #{tpu_custom_call.1} parent=1 // pred_fallthru
      _
    // Predicated region
    $region70: #{tpu_custom_call.1} parent=1 // pred_check
      _
    $region71: #{tpu_custom_call.1} parent=1 // pred_check_branch
      %167 = sbr.rel (0) target = $region73
    $region72: #{tpu_custom_call.1} parent=1 // pred_region
      _
    $region73: #{tpu_custom_call.1} parent=1 // pred_fallthru
      _
    // Predicated region
    $region74: #{tpu_custom_call.1} parent=1 // pred_check
      _
    $region75: #{tpu_custom_call.1} parent=1 // pred_check_branch
      %169 = sbr.rel (0) target = $region77
    $region76: #{tpu_custom_call.1} parent=1 // pred_region
      _
    $region77: #{tpu_custom_call.1} parent=1 // pred_fallthru
      _
    // Predicated region
    $region78: #{tpu_custom_call.1} parent=1 // pred_check
      _
    $region79: #{tpu_custom_call.1} parent=1 // pred_check_branch
      %171 = sbr.rel (0) target = $region81
    $region80: #{tpu_custom_call.1} parent=1 // pred_region
      _
    $region81: #{tpu_custom_call.1} parent=1 // pred_fallthru
      _
    // Predicated region
    $region82: #{tpu_custom_call.1} parent=1 // pred_check
      _
    $region83: #{tpu_custom_call.1} parent=1 // pred_check_branch
      %173 = sbr.rel (0) target = $region85
    $region84: #{tpu_custom_call.1} parent=1 // pred_region
      _
    $region85: #{tpu_custom_call.1} parent=1 // pred_fallthru
      _
    // Predicated region
    $region86: #{tpu_custom_call.1} parent=1 // pred_check
      _
    $region87: #{tpu_custom_call.1} parent=1 // pred_check_branch
      %175 = sbr.rel (0) target = $region89
    $region88: #{tpu_custom_call.1} parent=1 // pred_region
      _
    $region89: #{tpu_custom_call.1} parent=1 // pred_fallthru
      _
    // Predicated region
    $region90: #{tpu_custom_call.1} parent=1 // pred_check
      _
    $region91: #{tpu_custom_call.1} parent=1 // pred_check_branch
      %177 = sbr.rel (0) target = $region93
    $region92: #{tpu_custom_call.1} parent=1 // pred_region
      _
    $region93: #{tpu_custom_call.1} parent=1 // pred_fallthru
      _
    // Predicated region
    $region94: #{tpu_custom_call.1} parent=1 // pred_check
      _
    $region95: #{tpu_custom_call.1} parent=1 // pred_check_branch
      %179 = sbr.rel (0) target = $region97
    $region96: #{tpu_custom_call.1} parent=1 // pred_region
      _
    $region97: #{tpu_custom_call.1} parent=1 // pred_fallthru
      _
    // Predicated region
    $region98: #{tpu_custom_call.1} parent=1 // pred_check
      _
    $region99: #{tpu_custom_call.1} parent=1 // pred_check_branch
      %181 = sbr.rel (0) target = $region101
    $region100: #{tpu_custom_call.1} parent=1 // pred_region
      %182 = dma.done [#allocation3], 256
    $region101: #{tpu_custom_call.1} parent=1 // pred_fallthru
      _
    // Predicated region
    $region102: #{tpu_custom_call.1} parent=1 // pred_check
      _
    $region103: #{tpu_custom_call.1} parent=1 // pred_check_branch
      %184 = sbr.rel (0) target = $region105
    $region104: #{tpu_custom_call.1} parent=1 // pred_region
      %185 = dma.done [#allocation6], 256
    $region105: #{tpu_custom_call.1} parent=1 // pred_fallthru
      _
    // Predicated region
    $region106: #{tpu_custom_call.1} parent=1 // pred_check
      _
    $region107: #{tpu_custom_call.1} parent=1 // pred_check_branch
      %187 = sbr.rel (0) target = $region109
    $region108: #{tpu_custom_call.1} parent=1 // pred_region
      %188 = dma.done [#allocation6], 16
    $region109: #{tpu_custom_call.1} parent=1 // pred_fallthru
      _
    // Predicated region
    $region110: #{tpu_custom_call.1} parent=1 // pred_check
      _
    $region111: #{tpu_custom_call.1} parent=1 // pred_check_branch
      %190 = sbr.rel (0) target = $region113
    $region112: #{tpu_custom_call.1} parent=1 // pred_region
      %191 = dma.done [#allocation9], 256
    $region113: #{tpu_custom_call.1} parent=1 // pred_fallthru
      _
    // Predicated region
    $region114: #{tpu_custom_call.1} parent=1 // pred_check
      _
    $region115: #{tpu_custom_call.1} parent=1 // pred_check_branch
      %193 = sbr.rel (0) target = $region117
    $region116: #{tpu_custom_call.1} parent=1 // pred_region
      %194 = dma.done [#allocation9], 16
    $region117: #{tpu_custom_call.1} parent=1 // pred_fallthru
      _
    // Predicated region
    $region118: #{tpu_custom_call.1} parent=1 // pred_check
      _
    $region119: #{tpu_custom_call.1} parent=1 // pred_check_branch
      %196 = sbr.rel (0) target = $region121
    $region120: #{tpu_custom_call.1} parent=1 // pred_region
      %197 = dma.done [#allocation12], 16
    $region121: #{tpu_custom_call.1} parent=1 // pred_fallthru
      _
    // Predicated region
    $region122: #{tpu_custom_call.1} parent=1 // pred_check
      _
    $region123: #{tpu_custom_call.1} parent=1 // pred_check_branch
      %199 = sbr.rel (0) target = $region125
    $region124: #{tpu_custom_call.1} parent=1 // pred_region
      %200 = dma.done [#allocation12], 16
    $region125: #{tpu_custom_call.1} parent=1 // pred_fallthru
      _
    // Predicated region
    $region126: #{tpu_custom_call.1} parent=1 // pred_check
      _
    $region127: #{tpu_custom_call.1} parent=1 // pred_check_branch
      %202 = sbr.rel (0) target = $region129
    $region128: #{tpu_custom_call.1} parent=1 // pred_region
      %203 = dma.done [#allocation15], 16
    $region129: #{tpu_custom_call.1} parent=1 // pred_fallthru
      _
    // Predicated region
    $region130: #{tpu_custom_call.1} parent=1 // pred_check
      _
    $region131: #{tpu_custom_call.1} parent=1 // pred_check_branch
      %205 = sbr.rel (0) target = $region133
    $region132: #{tpu_custom_call.1} parent=1 // pred_region
      %206 = dma.done [#allocation15], 16
    $region133: #{tpu_custom_call.1} parent=1 // pred_fallthru
      _
    // Predicated region
    $region134: #{tpu_custom_call.1} parent=1 // pred_check
      _
    $region135: #{tpu_custom_call.1} parent=1 // pred_check_branch
      %208 = sbr.rel (0) target = $region137
    $region136: #{tpu_custom_call.1} parent=1 // pred_region
      %209 = dma.done [#allocation18], 256
    $region137: #{tpu_custom_call.1} parent=1 // pred_fallthru
      _
    // Predicated region
    $region138: #{tpu_custom_call.1} parent=1 // pred_check
      _
    $region139: #{tpu_custom_call.1} parent=1 // pred_check_branch
      %211 = sbr.rel (0) target = $region141
    $region140: #{tpu_custom_call.1} parent=1 // pred_region
      %212 = dma.done [#allocation18], 16
    $region141: #{tpu_custom_call.1} parent=1 // pred_fallthru
      _
    %v214 = vld [vmem:[%s0] sm:$0xff]
    %v215 = vld [vmem:[%s0 + $0x8] sm:$0xff]
    %v216 = vld [vmem:[%s1] sm:$0xff]
    %v217 = vld [vmem:[%s1 + $0x8] sm:$0xff]
    %v218 = vld [vmem:[%s1 + $0x10] sm:$0xf]
    %v219 = vpack.c.bf16 %v215, %v214
    %v220 = vld [vmem:[#allocation5] sm:$0xf]
    %v221 = vld [vmem:[#allocation5 + $0x4] sm:$0xf]
    %v222 = vld [vmem:[#allocation5 + $0x8] sm:$0xf]
    %v223 = vld [vmem:[#allocation5 + $0xc] sm:$0xf]
    %v224 = vld [vmem:[#allocation7] sm:$0x1]
    %v226 = vlaneseq
    %v227 = vshrl.u32 %v226, 7
    %v228 = vsub.s32 0, %v227
    %v229 = vrot.slane %v224, %v228
    %v235 = vunpack.c.l.b16 %v220
    %v236 = vunpack.c.l.b16 %v221
    %v237 = vunpack.c.l.b16 %v222
    %v238 = vunpack.c.l.b16 %v223
    %v239 = vpack.c.b16 %v236, %v235
    %v240 = vpack.c.b16 %v238, %v237
    %vm243 = vcmask 261120
    %v245 = vsel %vm243, %v219, 0
    %247 = vmatprep.subr.bf16.mxu0 0
    %248 = vmatpush1.bf16.msra.mxu0 %v239
    %249 = vmatprep.subr.bf16.mxu0 0
    %250 = vmatpush1.bf16.msra.mxu0 %v240
    %251 = vmatprep.subr.bf16.mxu0 0
    %252 = vmatpush1.bf16.msra.mxu0 0
    %253 = vmatprep.subr.bf16.mxu0 0
    %254 = vmatpush1.bf16.msra.mxu0 0
    %255 = vmatprep.subr.bf16.mxu0 0
    %256 = vmatpush1.bf16.msra.mxu0 0
    %257 = vmatprep.subr.bf16.mxu0 0
    %258 = vmatpush1.bf16.msra.mxu0 0
    %259 = vmatprep.subr.bf16.mxu0 0
    %260 = vmatpush1.bf16.msra.mxu0 0
    %261 = vmatprep.subr.bf16.mxu0 0
    %262 = vmatpush1.bf16.msra.mxu0 0
    %263 = vmatprep.subr.bf16.mxu0 0
    %264 = vmatpush1.bf16.msra.mxu0 0
    %265 = vmatprep.subr.bf16.mxu0 0
    %266 = vmatpush1.bf16.msra.mxu0 0
    %267 = vmatprep.subr.bf16.mxu0 0
    %268 = vmatpush1.bf16.msra.mxu0 0
    %269 = vmatprep.subr.bf16.mxu0 0
    %270 = vmatpush1.bf16.msra.mxu0 0
    %271 = vmatprep.subr.bf16.mxu0 0
    %272 = vmatpush1.bf16.msra.mxu0 0
    %273 = vmatprep.subr.bf16.mxu0 0
    %274 = vmatpush1.bf16.msra.mxu0 0
    %275 = vmatprep.subr.bf16.mxu0 0
    %276 = vmatpush1.bf16.msra.mxu0 0
    %277 = vmatprep.subr.bf16.mxu0 0
    %278 = vmatpush1.bf16.msra.mxu0 0
    %279 = vmatprep.mubr.bf16.mxu0 0
    %280 = vmatmul.mubr.bf16.gmra.mrb[0].mxu0 %v245
    %v281 = vpop.f32.mrb[0].mxu0
    %v282 = vadd.f32 %v229, %v281
    %v283 = vpop.f32.mrb[0].mxu0
    %v284 = vpop.f32.mrb[0].mxu0
    %v285 = vadd.f32 %v229, %v284
    %v286 = vpop.f32.mrb[0].mxu0
    %287 = vdwg.mxu0
    %v288 = vld [vmem:[#allocation8] sm:$0xf]
    %v289 = vld [vmem:[#allocation8 + $0x4] sm:$0xf]
    %v290 = vld [vmem:[#allocation8 + $0x8] sm:$0xf]
    %v291 = vld [vmem:[#allocation8 + $0xc] sm:$0xf]
    %v292 = vld [vmem:[#allocation10] sm:$0x1]
    %v293 = vld [vmem:[#allocation2] sm:$0xff]
    %v294 = vld [vmem:[#allocation2 + $0x8] sm:$0xff]
    %v295 = vpack.c.bf16 %v285, %v282
    %297 = vrot.lane.b32.xlu0 %v295, 96
    %v298 = vpop.permute.xlu0 %297
    %vm299 = vcmask 64512
    %v301 = vsel %vm299, %v295, 0
    %v304 = vsel %vm299, %v298, 0
    %306 = vmatprep.subr.bf16.mxu0 0
    %307 = vmatpush1.bf16.xpose.msra.mxu0 %v304
    %308 = vmatprep.subr.bf16.mxu0 0
    %309 = vmatpush1.bf16.xpose.msra.mxu0 0
    %310 = vmatprep.subr.bf16.mxu0 0
    %311 = vmatpush1.bf16.xpose.msra.mxu0 0
    %312 = vmatprep.subr.bf16.mxu0 0
    %313 = vmatpush1.bf16.xpose.msra.mxu0 0
    %314 = vmatprep.subr.bf16.mxu0 0
    %315 = vmatpush1.bf16.xpose.msra.mxu0 0
    %316 = vmatprep.subr.bf16.mxu0 0
    %317 = vmatpush1.bf16.xpose.msra.mxu0 0
    %318 = vmatprep.subr.bf16.mxu0 0
    %319 = vmatpush1.bf16.xpose.msra.mxu0 0
    %320 = vmatprep.subr.bf16.mxu0 0
    %321 = vmatpush1.bf16.xpose.msra.mxu0 0
    %322 = vmatprep.subr.bf16.mxu0 0
    %323 = vmatpush1.bf16.xpose.msra.mxu0 0
    %324 = vmatprep.subr.bf16.mxu0 0
    %325 = vmatpush1.bf16.xpose.msra.mxu0 0
    %326 = vmatprep.subr.bf16.mxu0 0
    %327 = vmatpush1.bf16.xpose.msra.mxu0 0
    %328 = vmatprep.subr.bf16.mxu0 0
    %329 = vmatpush1.bf16.xpose.msra.mxu0 0
    %330 = vmatprep.subr.bf16.mxu0 0
    %331 = vmatpush1.bf16.xpose.msra.mxu0 0
    %332 = vmatprep.subr.bf16.mxu0 0
    %333 = vmatpush1.bf16.xpose.msra.mxu0 0
    %334 = vmatprep.subr.bf16.mxu0 0
    %335 = vmatpush1.bf16.xpose.msra.mxu0 0
    %336 = vmatprep.subr.bf16.mxu0 0
    %337 = vmatpush1.bf16.xpose.msra.mxu0 0
    %338 = vmatprep.mubr.bf16.mxu0 0
    %339 = vmatmul.mubr.bf16.gmra.mrb[0].mxu0 %v301
    %v340 = vpop.f32.mrb[0].mxu0
    %v341 = vadd.f32 0.0, %v340
    %v342 = vpop.f32.mrb[0].mxu0
    %v343 = vpop.f32.mrb[0].mxu0
    %v344 = vadd.f32 0.0, %v343
    %v345 = vpop.f32.mrb[0].mxu0
    %346 = vdwg.mxu0
    %v347 = vmul.f32 %v341, 0.35355338
    %v348 = vmul.f32 %v344, 0.35355338
    %v349 = vadd.f32 %v347, %v293
    %v350 = vadd.f32 %v348, %v294
    %vm351 = vcmask 130048
    %v352 = vsel %vm351, %v349, -inf
    %353 = vmax.xlane.f32.xlu0 %v352
    %v354 = vpop.xlane.xlu0 %353
    %v355 = vsel %vm351, %v350, -inf
    %356 = vmax.xlane.f32.xlu0 %v355
    %v357 = vpop.xlane.xlu0 %356
    %v358 = vsub.f32 %v349, %v354
    %v359 = vsub.f32 %v350, %v357
    %v360 = vmul.f32 %v358, 1.442695
    %v361 = vpow.pop %v360
    %v362 = vmul.f32 %v359, 1.442695
    %v363 = vpow.pop %v362
    %v364 = vsel %vm351, %v361, 0.0
    %365 = vadd.xlane.f32.xlu0 %v364
    %v366 = vpop.xlane.xlu0 %365
    %v367 = vsel %vm351, %v363, 0.0
    %368 = vadd.xlane.f32.xlu0 %v367
    %v369 = vpop.xlane.xlu0 %368
    %v370 = vrcp.pop %v366
    %v371 = vrcp.pop %v369
    %v372 = vmul.f32 %v361, %v370
    %v373 = vmul.f32 %v363, %v371
    %v374 = vpack.c.bf16 %v373, %v372
    %375 = vrot.lane.b32.xlu0 %v295, 64
    %v376 = vpop.permute.xlu0 %375
    %v379 = vsel %vm351, %v374, 0
    %381 = vmatprep.subr.bf16.mxu0 0
    %382 = vmatpush1.bf16.msra.mxu0 %v376
    %383 = vmatprep.subr.bf16.mxu0 0
    %384 = vmatpush1.bf16.msra.mxu0 0
    %385 = vmatprep.subr.bf16.mxu0 0
    %386 = vmatpush1.bf16.msra.mxu0 0
    %387 = vmatprep.subr.bf16.mxu0 0
    %388 = vmatpush1.bf16.msra.mxu0 0
    %389 = vmatprep.subr.bf16.mxu0 0
    %390 = vmatpush1.bf16.msra.mxu0 0
    %391 = vmatprep.subr.bf16.mxu0 0
    %392 = vmatpush1.bf16.msra.mxu0 0
    %393 = vmatprep.subr.bf16.mxu0 0
    %394 = vmatpush1.bf16.msra.mxu0 0
    %395 = vmatprep.subr.bf16.mxu0 0
    %396 = vmatpush1.bf16.msra.mxu0 0
    %397 = vmatprep.subr.bf16.mxu0 0
    %398 = vmatpush1.bf16.msra.mxu0 0
    %399 = vmatprep.subr.bf16.mxu0 0
    %400 = vmatpush1.bf16.msra.mxu0 0
    %401 = vmatprep.subr.bf16.mxu0 0
    %402 = vmatpush1.bf16.msra.mxu0 0
    %403 = vmatprep.subr.bf16.mxu0 0
    %404 = vmatpush1.bf16.msra.mxu0 0
    %405 = vmatprep.subr.bf16.mxu0 0
    %406 = vmatpush1.bf16.msra.mxu0 0
    %407 = vmatprep.subr.bf16.mxu0 0
    %408 = vmatpush1.bf16.msra.mxu0 0
    %409 = vmatprep.subr.bf16.mxu0 0
    %410 = vmatpush1.bf16.msra.mxu0 0
    %411 = vmatprep.subr.bf16.mxu0 0
    %412 = vmatpush1.bf16.msra.mxu0 0
    %413 = vmatprep.mubr.bf16.mxu0 0
    %414 = vmatmul.mubr.bf16.gmra.mrb[0].mxu0 %v379
    %v415 = vpop.f32.mrb[0].mxu0
    %v416 = vadd.f32 0.0, %v415
    %v417 = vpop.f32.mrb[0].mxu0
    %v418 = vpop.f32.mrb[0].mxu0
    %v419 = vadd.f32 0.0, %v418
    %v420 = vpop.f32.mrb[0].mxu0
    %421 = vdwg.mxu0
    %v422 = vpack.c.bf16 %v419, %v416
    %423 = vrot.lane.b32.xlu0 %v295, 120
    %v424 = vpop.permute.xlu0 %423
    %425 = vrot.lane.b32.xlu0 %v295, 88
    %v426 = vpop.permute.xlu0 %425
    %v428 = vsel %vm299, %v424, 0
    %v431 = vsel %vm299, %v426, 0
    %433 = vmatprep.subr.bf16.mxu0 0
    %434 = vmatpush1.bf16.xpose.msra.mxu0 %v431
    %435 = vmatprep.subr.bf16.mxu0 0
    %436 = vmatpush1.bf16.xpose.msra.mxu0 0
    %437 = vmatprep.subr.bf16.mxu0 0
    %438 = vmatpush1.bf16.xpose.msra.mxu0 0
    %439 = vmatprep.subr.bf16.mxu0 0
    %440 = vmatpush1.bf16.xpose.msra.mxu0 0
    %441 = vmatprep.subr.bf16.mxu0 0
    %442 = vmatpush1.bf16.xpose.msra.mxu0 0
    %443 = vmatprep.subr.bf16.mxu0 0
    %444 = vmatpush1.bf16.xpose.msra.mxu0 0
    %445 = vmatprep.subr.bf16.mxu0 0
    %446 = vmatpush1.bf16.xpose.msra.mxu0 0
    %447 = vmatprep.subr.bf16.mxu0 0
    %448 = vmatpush1.bf16.xpose.msra.mxu0 0
    %449 = vmatprep.subr.bf16.mxu0 0
    %450 = vmatpush1.bf16.xpose.msra.mxu0 0
    %451 = vmatprep.subr.bf16.mxu0 0
    %452 = vmatpush1.bf16.xpose.msra.mxu0 0
    %453 = vmatprep.subr.bf16.mxu0 0
    %454 = vmatpush1.bf16.xpose.msra.mxu0 0
    %455 = vmatprep.subr.bf16.mxu0 0
    %456 = vmatpush1.bf16.xpose.msra.mxu0 0
    %457 = vmatprep.subr.bf16.mxu0 0
    %458 = vmatpush1.bf16.xpose.msra.mxu0 0
    %459 = vmatprep.subr.bf16.mxu0 0
    %460 = vmatpush1.bf16.xpose.msra.mxu0 0
    %461 = vmatprep.subr.bf16.mxu0 0
    %462 = vmatpush1.bf16.xpose.msra.mxu0 0
    %463 = vmatprep.subr.bf16.mxu0 0
    %464 = vmatpush1.bf16.xpose.msra.mxu0 0
    %465 = vmatprep.mubr.bf16.mxu0 0
    %466 = vmatmul.mubr.bf16.gmra.mrb[0].mxu0 %v428
    %v467 = vpop.f32.mrb[0].mxu0
    %v468 = vadd.f32 0.0, %v467
    %v469 = vpop.f32.mrb[0].mxu0
    %v470 = vpop.f32.mrb[0].mxu0
    %v471 = vadd.f32 0.0, %v470
    %v472 = vpop.f32.mrb[0].mxu0
    %473 = vdwg.mxu0
    %v474 = vmul.f32 %v468, 0.35355338
    %v475 = vmul.f32 %v471, 0.35355338
    %v476 = vadd.f32 %v474, %v293
    %v477 = vadd.f32 %v475, %v294
    %v478 = vsel %vm351, %v476, -inf
    %479 = vmax.xlane.f32.xlu0 %v478
    %v480 = vpop.xlane.xlu0 %479
    %v481 = vsel %vm351, %v477, -inf
    %482 = vmax.xlane.f32.xlu0 %v481
    %v483 = vpop.xlane.xlu0 %482
    %v484 = vsub.f32 %v476, %v480
    %v485 = vsub.f32 %v477, %v483
    %v486 = vmul.f32 %v484, 1.442695
    %v487 = vpow.pop %v486
    %v488 = vmul.f32 %v485, 1.442695
    %v489 = vpow.pop %v488
    %v490 = vsel %vm351, %v487, 0.0
    %491 = vadd.xlane.f32.xlu0 %v490
    %v492 = vpop.xlane.xlu0 %491
    %v493 = vsel %vm351, %v489, 0.0
    %494 = vadd.xlane.f32.xlu0 %v493
    %v495 = vpop.xlane.xlu0 %494
    %v496 = vrcp.pop %v492
    %v497 = vrcp.pop %v495
    %v498 = vmul.f32 %v487, %v496
    %v499 = vmul.f32 %v489, %v497
    %v500 = vpack.c.bf16 %v499, %v498
    %501 = vrot.lane.b32.xlu0 %v295, 56
    %v502 = vpop.permute.xlu0 %501
    %v505 = vsel %vm351, %v500, 0
    %507 = vmatprep.subr.bf16.mxu0 0
    %508 = vmatpush1.bf16.msra.mxu0 %v502
    %509 = vmatprep.subr.bf16.mxu0 0
    %510 = vmatpush1.bf16.msra.mxu0 0
    %511 = vmatprep.subr.bf16.mxu0 0
    %512 = vmatpush1.bf16.msra.mxu0 0
    %513 = vmatprep.subr.bf16.mxu0 0
    %514 = vmatpush1.bf16.msra.mxu0 0
    %515 = vmatprep.subr.bf16.mxu0 0
    %516 = vmatpush1.bf16.msra.mxu0 0
    %517 = vmatprep.subr.bf16.mxu0 0
    %518 = vmatpush1.bf16.msra.mxu0 0
    %519 = vmatprep.subr.bf16.mxu0 0
    %520 = vmatpush1.bf16.msra.mxu0 0
    %521 = vmatprep.subr.bf16.mxu0 0
    %522 = vmatpush1.bf16.msra.mxu0 0
    %523 = vmatprep.subr.bf16.mxu0 0
    %524 = vmatpush1.bf16.msra.mxu0 0
    %525 = vmatprep.subr.bf16.mxu0 0
    %526 = vmatpush1.bf16.msra.mxu0 0
    %527 = vmatprep.subr.bf16.mxu0 0
    %528 = vmatpush1.bf16.msra.mxu0 0
    %529 = vmatprep.subr.bf16.mxu0 0
    %530 = vmatpush1.bf16.msra.mxu0 0
    %531 = vmatprep.subr.bf16.mxu0 0
    %532 = vmatpush1.bf16.msra.mxu0 0
    %533 = vmatprep.subr.bf16.mxu0 0
    %534 = vmatpush1.bf16.msra.mxu0 0
    %535 = vmatprep.subr.bf16.mxu0 0
    %536 = vmatpush1.bf16.msra.mxu0 0
    %537 = vmatprep.subr.bf16.mxu0 0
    %538 = vmatpush1.bf16.msra.mxu0 0
    %539 = vmatprep.mubr.bf16.mxu0 0
    %540 = vmatmul.mubr.bf16.gmra.mrb[0].mxu0 %v505
    %v541 = vpop.f32.mrb[0].mxu0
    %v542 = vadd.f32 0.0, %v541
    %v543 = vpop.f32.mrb[0].mxu0
    %v544 = vpop.f32.mrb[0].mxu0
    %v545 = vadd.f32 0.0, %v544
    %v546 = vpop.f32.mrb[0].mxu0
    %547 = vdwg.mxu0
    %v548 = vpack.c.bf16 %v545, %v542
    %v550 = vsel %vm299, %v548, 0
    %vm552 = vcmask 1043456
    %v554 = vsel %vm552, %v289, 0
    %556 = vmatprep.subr.bf16.mxu0 0
    %557 = vmatpush1.bf16.msra.mxu0 %v554
    %558 = vmatprep.subr.bf16.mxu0 0
    %559 = vmatpush1.bf16.msra.mxu0 0
    %560 = vmatprep.subr.bf16.mxu0 0
    %561 = vmatpush1.bf16.msra.mxu0 0
    %562 = vmatprep.subr.bf16.mxu0 0
    %563 = vmatpush1.bf16.msra.mxu0 0
    %564 = vmatprep.subr.bf16.mxu0 0
    %565 = vmatpush1.bf16.msra.mxu0 0
    %566 = vmatprep.subr.bf16.mxu0 0
    %567 = vmatpush1.bf16.msra.mxu0 0
    %568 = vmatprep.subr.bf16.mxu0 0
    %569 = vmatpush1.bf16.msra.mxu0 0
    %570 = vmatprep.subr.bf16.mxu0 0
    %571 = vmatpush1.bf16.msra.mxu0 0
    %572 = vmatprep.subr.bf16.mxu0 0
    %573 = vmatpush1.bf16.msra.mxu0 0
    %574 = vmatprep.subr.bf16.mxu0 0
    %575 = vmatpush1.bf16.msra.mxu0 0
    %576 = vmatprep.subr.bf16.mxu0 0
    %577 = vmatpush1.bf16.msra.mxu0 0
    %578 = vmatprep.subr.bf16.mxu0 0
    %579 = vmatpush1.bf16.msra.mxu0 0
    %580 = vmatprep.subr.bf16.mxu0 0
    %581 = vmatpush1.bf16.msra.mxu0 0
    %582 = vmatprep.subr.bf16.mxu0 0
    %583 = vmatpush1.bf16.msra.mxu0 0
    %584 = vmatprep.subr.bf16.mxu0 0
    %585 = vmatpush1.bf16.msra.mxu0 0
    %586 = vmatprep.subr.bf16.mxu0 0
    %587 = vmatpush1.bf16.msra.mxu0 0
    %588 = vmatprep.mubr.bf16.mxu0 0
    %589 = vmatmul.mubr.bf16.gmra.mrb[0].mxu0 %v550
    %v590 = vpop.f32.mrb[0].mxu0
    %v591 = vadd.f32 0.0, %v590
    %v592 = vpop.f32.mrb[0].mxu0
    %v593 = vpop.f32.mrb[0].mxu0
    %v594 = vadd.f32 0.0, %v593
    %v595 = vpop.f32.mrb[0].mxu0
    %596 = vdwg.mxu0
    %v598 = vsel %vm299, %v422, 0
    %v601 = vsel %vm552, %v288, 0
    %603 = vmatprep.subr.bf16.mxu0 0
    %604 = vmatpush1.bf16.msra.mxu0 %v601
    %605 = vmatprep.subr.bf16.mxu0 0
    %606 = vmatpush1.bf16.msra.mxu0 0
    %607 = vmatprep.subr.bf16.mxu0 0
    %608 = vmatpush1.bf16.msra.mxu0 0
    %609 = vmatprep.subr.bf16.mxu0 0
    %610 = vmatpush1.bf16.msra.mxu0 0
    %611 = vmatprep.subr.bf16.mxu0 0
    %612 = vmatpush1.bf16.msra.mxu0 0
    %613 = vmatprep.subr.bf16.mxu0 0
    %614 = vmatpush1.bf16.msra.mxu0 0
    %615 = vmatprep.subr.bf16.mxu0 0
    %616 = vmatpush1.bf16.msra.mxu0 0
    %617 = vmatprep.subr.bf16.mxu0 0
    %618 = vmatpush1.bf16.msra.mxu0 0
    %619 = vmatprep.subr.bf16.mxu0 0
    %620 = vmatpush1.bf16.msra.mxu0 0
    %621 = vmatprep.subr.bf16.mxu0 0
    %622 = vmatpush1.bf16.msra.mxu0 0
    %623 = vmatprep.subr.bf16.mxu0 0
    %624 = vmatpush1.bf16.msra.mxu0 0
    %625 = vmatprep.subr.bf16.mxu0 0
    %626 = vmatpush1.bf16.msra.mxu0 0
    %627 = vmatprep.subr.bf16.mxu0 0
    %628 = vmatpush1.bf16.msra.mxu0 0
    %629 = vmatprep.subr.bf16.mxu0 0
    %630 = vmatpush1.bf16.msra.mxu0 0
    %631 = vmatprep.subr.bf16.mxu0 0
    %632 = vmatpush1.bf16.msra.mxu0 0
    %633 = vmatprep.subr.bf16.mxu0 0
    %634 = vmatpush1.bf16.msra.mxu0 0
    %635 = vmatprep.mubr.bf16.mxu0 0
    %636 = vmatmul.mubr.bf16.gmra.mrb[0].mxu0 %v598
    %v637 = vpop.f32.mrb[0].mxu0
    %v638 = vadd.f32 %v591, %v637
    %v639 = vpop.f32.mrb[0].mxu0
    %v640 = vpop.f32.mrb[0].mxu0
    %v641 = vadd.f32 %v594, %v640
    %v642 = vpop.f32.mrb[0].mxu0
    %643 = vdwg.mxu0
    %644 = vrot.lane.b32.xlu0 %v295, 112
    %v645 = vpop.permute.xlu0 %644
    %646 = vrot.lane.b32.xlu0 %v295, 80
    %v647 = vpop.permute.xlu0 %646
    %v649 = vsel %vm299, %v645, 0
    %v652 = vsel %vm299, %v647, 0
    %654 = vmatprep.subr.bf16.mxu0 0
    %655 = vmatpush1.bf16.xpose.msra.mxu0 %v652
    %656 = vmatprep.subr.bf16.mxu0 0
    %657 = vmatpush1.bf16.xpose.msra.mxu0 0
    %658 = vmatprep.subr.bf16.mxu0 0
    %659 = vmatpush1.bf16.xpose.msra.mxu0 0
    %660 = vmatprep.subr.bf16.mxu0 0
    %661 = vmatpush1.bf16.xpose.msra.mxu0 0
    %662 = vmatprep.subr.bf16.mxu0 0
    %663 = vmatpush1.bf16.xpose.msra.mxu0 0
    %664 = vmatprep.subr.bf16.mxu0 0
    %665 = vmatpush1.bf16.xpose.msra.mxu0 0
    %666 = vmatprep.subr.bf16.mxu0 0
    %667 = vmatpush1.bf16.xpose.msra.mxu0 0
    %668 = vmatprep.subr.bf16.mxu0 0
    %669 = vmatpush1.bf16.xpose.msra.mxu0 0
    %670 = vmatprep.subr.bf16.mxu0 0
    %671 = vmatpush1.bf16.xpose.msra.mxu0 0
    %672 = vmatprep.subr.bf16.mxu0 0
    %673 = vmatpush1.bf16.xpose.msra.mxu0 0
    %674 = vmatprep.subr.bf16.mxu0 0
    %675 = vmatpush1.bf16.xpose.msra.mxu0 0
    %676 = vmatprep.subr.bf16.mxu0 0
    %677 = vmatpush1.bf16.xpose.msra.mxu0 0
    %678 = vmatprep.subr.bf16.mxu0 0
    %679 = vmatpush1.bf16.xpose.msra.mxu0 0
    %680 = vmatprep.subr.bf16.mxu0 0
    %681 = vmatpush1.bf16.xpose.msra.mxu0 0
    %682 = vmatprep.subr.bf16.mxu0 0
    %683 = vmatpush1.bf16.xpose.msra.mxu0 0
    %684 = vmatprep.subr.bf16.mxu0 0
    %685 = vmatpush1.bf16.xpose.msra.mxu0 0
    %686 = vmatprep.mubr.bf16.mxu0 0
    %687 = vmatmul.mubr.bf16.gmra.mrb[0].mxu0 %v649
    %v688 = vpop.f32.mrb[0].mxu0
    %v689 = vadd.f32 0.0, %v688
    %v690 = vpop.f32.mrb[0].mxu0
    %v691 = vpop.f32.mrb[0].mxu0
    %v692 = vadd.f32 0.0, %v691
    %v693 = vpop.f32.mrb[0].mxu0
    %694 = vdwg.mxu0
    %v695 = vmul.f32 %v689, 0.35355338
    %v696 = vmul.f32 %v692, 0.35355338
    %v697 = vadd.f32 %v695, %v293
    %v698 = vadd.f32 %v696, %v294
    %v699 = vsel %vm351, %v697, -inf
    %700 = vmax.xlane.f32.xlu0 %v699
    %v701 = vpop.xlane.xlu0 %700
    %v702 = vsel %vm351, %v698, -inf
    %703 = vmax.xlane.f32.xlu0 %v702
    %v704 = vpop.xlane.xlu0 %703
    %v705 = vsub.f32 %v697, %v701
    %v706 = vsub.f32 %v698, %v704
    %v707 = vmul.f32 %v705, 1.442695
    %v708 = vpow.pop %v707
    %v709 = vmul.f32 %v706, 1.442695
    %v710 = vpow.pop %v709
    %v711 = vsel %vm351, %v708, 0.0
    %712 = vadd.xlane.f32.xlu0 %v711
    %v713 = vpop.xlane.xlu0 %712
    %v714 = vsel %vm351, %v710, 0.0
    %715 = vadd.xlane.f32.xlu0 %v714
    %v716 = vpop.xlane.xlu0 %715
    %v717 = vrcp.pop %v713
    %v718 = vrcp.pop %v716
    %v719 = vmul.f32 %v708, %v717
    %v720 = vmul.f32 %v710, %v718
    %v721 = vpack.c.bf16 %v720, %v719
    %722 = vrot.lane.b32.xlu0 %v295, 48
    %v723 = vpop.permute.xlu0 %722
    %v726 = vsel %vm351, %v721, 0
    %728 = vmatprep.subr.bf16.mxu0 0
    %729 = vmatpush1.bf16.msra.mxu0 %v723
    %730 = vmatprep.subr.bf16.mxu0 0
    %731 = vmatpush1.bf16.msra.mxu0 0
    %732 = vmatprep.subr.bf16.mxu0 0
    %733 = vmatpush1.bf16.msra.mxu0 0
    %734 = vmatprep.subr.bf16.mxu0 0
    %735 = vmatpush1.bf16.msra.mxu0 0
    %736 = vmatprep.subr.bf16.mxu0 0
    %737 = vmatpush1.bf16.msra.mxu0 0
    %738 = vmatprep.subr.bf16.mxu0 0
    %739 = vmatpush1.bf16.msra.mxu0 0
    %740 = vmatprep.subr.bf16.mxu0 0
    %741 = vmatpush1.bf16.msra.mxu0 0
    %742 = vmatprep.subr.bf16.mxu0 0
    %743 = vmatpush1.bf16.msra.mxu0 0
    %744 = vmatprep.subr.bf16.mxu0 0
    %745 = vmatpush1.bf16.msra.mxu0 0
    %746 = vmatprep.subr.bf16.mxu0 0
    %747 = vmatpush1.bf16.msra.mxu0 0
    %748 = vmatprep.subr.bf16.mxu0 0
    %749 = vmatpush1.bf16.msra.mxu0 0
    %750 = vmatprep.subr.bf16.mxu0 0
    %751 = vmatpush1.bf16.msra.mxu0 0
    %752 = vmatprep.subr.bf16.mxu0 0
    %753 = vmatpush1.bf16.msra.mxu0 0
    %754 = vmatprep.subr.bf16.mxu0 0
    %755 = vmatpush1.bf16.msra.mxu0 0
    %756 = vmatprep.subr.bf16.mxu0 0
    %757 = vmatpush1.bf16.msra.mxu0 0
    %758 = vmatprep.subr.bf16.mxu0 0
    %759 = vmatpush1.bf16.msra.mxu0 0
    %760 = vmatprep.mubr.bf16.mxu0 0
    %761 = vmatmul.mubr.bf16.gmra.mrb[0].mxu0 %v726
    %v762 = vpop.f32.mrb[0].mxu0
    %v763 = vadd.f32 0.0, %v762
    %v764 = vpop.f32.mrb[0].mxu0
    %v765 = vpop.f32.mrb[0].mxu0
    %v766 = vadd.f32 0.0, %v765
    %v767 = vpop.f32.mrb[0].mxu0
    %768 = vdwg.mxu0
    %v769 = vpack.c.bf16 %v766, %v763
    %v771 = vsel %vm299, %v769, 0
    %v774 = vsel %vm552, %v290, 0
    %776 = vmatprep.subr.bf16.mxu0 0
    %777 = vmatpush1.bf16.msra.mxu0 %v774
    %778 = vmatprep.subr.bf16.mxu0 0
    %779 = vmatpush1.bf16.msra.mxu0 0
    %780 = vmatprep.subr.bf16.mxu0 0
    %781 = vmatpush1.bf16.msra.mxu0 0
    %782 = vmatprep.subr.bf16.mxu0 0
    %783 = vmatpush1.bf16.msra.mxu0 0
    %784 = vmatprep.subr.bf16.mxu0 0
    %785 = vmatpush1.bf16.msra.mxu0 0
    %786 = vmatprep.subr.bf16.mxu0 0
    %787 = vmatpush1.bf16.msra.mxu0 0
    %788 = vmatprep.subr.bf16.mxu0 0
    %789 = vmatpush1.bf16.msra.mxu0 0
    %790 = vmatprep.subr.bf16.mxu0 0
    %791 = vmatpush1.bf16.msra.mxu0 0
    %792 = vmatprep.subr.bf16.mxu0 0
    %793 = vmatpush1.bf16.msra.mxu0 0
    %794 = vmatprep.subr.bf16.mxu0 0
    %795 = vmatpush1.bf16.msra.mxu0 0
    %796 = vmatprep.subr.bf16.mxu0 0
    %797 = vmatpush1.bf16.msra.mxu0 0
    %798 = vmatprep.subr.bf16.mxu0 0
    %799 = vmatpush1.bf16.msra.mxu0 0
    %800 = vmatprep.subr.bf16.mxu0 0
    %801 = vmatpush1.bf16.msra.mxu0 0
    %802 = vmatprep.subr.bf16.mxu0 0
    %803 = vmatpush1.bf16.msra.mxu0 0
    %804 = vmatprep.subr.bf16.mxu0 0
    %805 = vmatpush1.bf16.msra.mxu0 0
    %806 = vmatprep.subr.bf16.mxu0 0
    %807 = vmatpush1.bf16.msra.mxu0 0
    %808 = vmatprep.mubr.bf16.mxu0 0
    %809 = vmatmul.mubr.bf16.gmra.mrb[0].mxu0 %v771
    %v810 = vpop.f32.mrb[0].mxu0
    %v811 = vadd.f32 0.0, %v810
    %v812 = vpop.f32.mrb[0].mxu0
    %v813 = vpop.f32.mrb[0].mxu0
    %v814 = vadd.f32 0.0, %v813
    %v815 = vpop.f32.mrb[0].mxu0
    %816 = vdwg.mxu0
    %v817 = vadd.f32 %v638, %v811
    %v818 = vadd.f32 %v641, %v814
    %819 = vrot.lane.b32.xlu0 %v295, 104
    %v820 = vpop.permute.xlu0 %819
    %821 = vrot.lane.b32.xlu0 %v295, 72
    %v822 = vpop.permute.xlu0 %821
    %v824 = vsel %vm299, %v820, 0
    %v827 = vsel %vm299, %v822, 0
    %829 = vmatprep.subr.bf16.mxu0 0
    %830 = vmatpush1.bf16.xpose.msra.mxu0 %v827
    %831 = vmatprep.subr.bf16.mxu0 0
    %832 = vmatpush1.bf16.xpose.msra.mxu0 0
    %833 = vmatprep.subr.bf16.mxu0 0
    %834 = vmatpush1.bf16.xpose.msra.mxu0 0
    %835 = vmatprep.subr.bf16.mxu0 0
    %836 = vmatpush1.bf16.xpose.msra.mxu0 0
    %837 = vmatprep.subr.bf16.mxu0 0
    %838 = vmatpush1.bf16.xpose.msra.mxu0 0
    %839 = vmatprep.subr.bf16.mxu0 0
    %840 = vmatpush1.bf16.xpose.msra.mxu0 0
    %841 = vmatprep.subr.bf16.mxu0 0
    %842 = vmatpush1.bf16.xpose.msra.mxu0 0
    %843 = vmatprep.subr.bf16.mxu0 0
    %844 = vmatpush1.bf16.xpose.msra.mxu0 0
    %845 = vmatprep.subr.bf16.mxu0 0
    %846 = vmatpush1.bf16.xpose.msra.mxu0 0
    %847 = vmatprep.subr.bf16.mxu0 0
    %848 = vmatpush1.bf16.xpose.msra.mxu0 0
    %849 = vmatprep.subr.bf16.mxu0 0
    %850 = vmatpush1.bf16.xpose.msra.mxu0 0
    %851 = vmatprep.subr.bf16.mxu0 0
    %852 = vmatpush1.bf16.xpose.msra.mxu0 0
    %853 = vmatprep.subr.bf16.mxu0 0
    %854 = vmatpush1.bf16.xpose.msra.mxu0 0
    %855 = vmatprep.subr.bf16.mxu0 0
    %856 = vmatpush1.bf16.xpose.msra.mxu0 0
    %857 = vmatprep.subr.bf16.mxu0 0
    %858 = vmatpush1.bf16.xpose.msra.mxu0 0
    %859 = vmatprep.subr.bf16.mxu0 0
    %860 = vmatpush1.bf16.xpose.msra.mxu0 0
    %861 = vmatprep.mubr.bf16.mxu0 0
    %862 = vmatmul.mubr.bf16.gmra.mrb[0].mxu0 %v824
    %v863 = vpop.f32.mrb[0].mxu0
    %v864 = vadd.f32 0.0, %v863
    %v865 = vpop.f32.mrb[0].mxu0
    %v866 = vpop.f32.mrb[0].mxu0
    %v867 = vadd.f32 0.0, %v866
    %v868 = vpop.f32.mrb[0].mxu0
    %869 = vdwg.mxu0
    %v870 = vmul.f32 %v864, 0.35355338
    %v871 = vmul.f32 %v867, 0.35355338
    %v872 = vadd.f32 %v870, %v293
    %v873 = vadd.f32 %v871, %v294
    %v874 = vsel %vm351, %v872, -inf
    %875 = vmax.xlane.f32.xlu0 %v874
    %v876 = vpop.xlane.xlu0 %875
    %v877 = vsel %vm351, %v873, -inf
    %878 = vmax.xlane.f32.xlu0 %v877
    %v879 = vpop.xlane.xlu0 %878
    %v880 = vsub.f32 %v872, %v876
    %v881 = vsub.f32 %v873, %v879
    %v882 = vmul.f32 %v880, 1.442695
    %v883 = vpow.pop %v882
    %v884 = vmul.f32 %v881, 1.442695
    %v885 = vpow.pop %v884
    %v886 = vsel %vm351, %v883, 0.0
    %887 = vadd.xlane.f32.xlu0 %v886
    %v888 = vpop.xlane.xlu0 %887
    %v889 = vsel %vm351, %v885, 0.0
    %890 = vadd.xlane.f32.xlu0 %v889
    %v891 = vpop.xlane.xlu0 %890
    %v892 = vrcp.pop %v888
    %v893 = vrcp.pop %v891
    %v894 = vmul.f32 %v883, %v892
    %v895 = vmul.f32 %v885, %v893
    %v896 = vpack.c.bf16 %v895, %v894
    %897 = vrot.lane.b32.xlu0 %v295, 40
    %v898 = vpop.permute.xlu0 %897
    %v901 = vsel %vm351, %v896, 0
    %903 = vmatprep.subr.bf16.mxu0 0
    %904 = vmatpush1.bf16.msra.mxu0 %v898
    %905 = vmatprep.subr.bf16.mxu0 0
    %906 = vmatpush1.bf16.msra.mxu0 0
    %907 = vmatprep.subr.bf16.mxu0 0
    %908 = vmatpush1.bf16.msra.mxu0 0
    %909 = vmatprep.subr.bf16.mxu0 0
    %910 = vmatpush1.bf16.msra.mxu0 0
    %911 = vmatprep.subr.bf16.mxu0 0
    %912 = vmatpush1.bf16.msra.mxu0 0
    %913 = vmatprep.subr.bf16.mxu0 0
    %914 = vmatpush1.bf16.msra.mxu0 0
    %915 = vmatprep.subr.bf16.mxu0 0
    %916 = vmatpush1.bf16.msra.mxu0 0
    %917 = vmatprep.subr.bf16.mxu0 0
    %918 = vmatpush1.bf16.msra.mxu0 0
    %919 = vmatprep.subr.bf16.mxu0 0
    %920 = vmatpush1.bf16.msra.mxu0 0
    %921 = vmatprep.subr.bf16.mxu0 0
    %922 = vmatpush1.bf16.msra.mxu0 0
    %923 = vmatprep.subr.bf16.mxu0 0
    %924 = vmatpush1.bf16.msra.mxu0 0
    %925 = vmatprep.subr.bf16.mxu0 0
    %926 = vmatpush1.bf16.msra.mxu0 0
    %927 = vmatprep.subr.bf16.mxu0 0
    %928 = vmatpush1.bf16.msra.mxu0 0
    %929 = vmatprep.subr.bf16.mxu0 0
    %930 = vmatpush1.bf16.msra.mxu0 0
    %931 = vmatprep.subr.bf16.mxu0 0
    %932 = vmatpush1.bf16.msra.mxu0 0
    %933 = vmatprep.subr.bf16.mxu0 0
    %934 = vmatpush1.bf16.msra.mxu0 0
    %935 = vmatprep.mubr.bf16.mxu0 0
    %936 = vmatmul.mubr.bf16.gmra.mrb[0].mxu0 %v901
    %v937 = vpop.f32.mrb[0].mxu0
    %v938 = vadd.f32 0.0, %v937
    %v939 = vpop.f32.mrb[0].mxu0
    %v940 = vpop.f32.mrb[0].mxu0
    %v941 = vadd.f32 0.0, %v940
    %v942 = vpop.f32.mrb[0].mxu0
    %943 = vdwg.mxu0
    %v944 = vpack.c.bf16 %v941, %v938
    %v946 = vsel %vm299, %v944, 0
    %v949 = vsel %vm552, %v291, 0
    %951 = vmatprep.subr.bf16.mxu0 0
    %952 = vmatpush1.bf16.msra.mxu0 %v949
    %953 = vmatprep.subr.bf16.mxu0 0
    %954 = vmatpush1.bf16.msra.mxu0 0
    %955 = vmatprep.subr.bf16.mxu0 0
    %956 = vmatpush1.bf16.msra.mxu0 0
    %957 = vmatprep.subr.bf16.mxu0 0
    %958 = vmatpush1.bf16.msra.mxu0 0
    %959 = vmatprep.subr.bf16.mxu0 0
    %960 = vmatpush1.bf16.msra.mxu0 0
    %961 = vmatprep.subr.bf16.mxu0 0
    %962 = vmatpush1.bf16.msra.mxu0 0
    %963 = vmatprep.subr.bf16.mxu0 0
    %964 = vmatpush1.bf16.msra.mxu0 0
    %965 = vmatprep.subr.bf16.mxu0 0
    %966 = vmatpush1.bf16.msra.mxu0 0
    %967 = vmatprep.subr.bf16.mxu0 0
    %968 = vmatpush1.bf16.msra.mxu0 0
    %969 = vmatprep.subr.bf16.mxu0 0
    %970 = vmatpush1.bf16.msra.mxu0 0
    %971 = vmatprep.subr.bf16.mxu0 0
    %972 = vmatpush1.bf16.msra.mxu0 0
    %973 = vmatprep.subr.bf16.mxu0 0
    %974 = vmatpush1.bf16.msra.mxu0 0
    %975 = vmatprep.subr.bf16.mxu0 0
    %976 = vmatpush1.bf16.msra.mxu0 0
    %977 = vmatprep.subr.bf16.mxu0 0
    %978 = vmatpush1.bf16.msra.mxu0 0
    %979 = vmatprep.subr.bf16.mxu0 0
    %980 = vmatpush1.bf16.msra.mxu0 0
    %981 = vmatprep.subr.bf16.mxu0 0
    %982 = vmatpush1.bf16.msra.mxu0 0
    %983 = vmatprep.mubr.bf16.mxu0 0
    %984 = vmatmul.mubr.bf16.gmra.mrb[0].mxu0 %v946
    %v985 = vpop.f32.mrb[0].mxu0
    %v986 = vadd.f32 0.0, %v985
    %v987 = vpop.f32.mrb[0].mxu0
    %v988 = vpop.f32.mrb[0].mxu0
    %v989 = vadd.f32 0.0, %v988
    %v990 = vpop.f32.mrb[0].mxu0
    %991 = vdwg.mxu0
    %v992 = vadd.f32 %v817, %v986
    %v993 = vadd.f32 %v818, %v989
    %v995 = vlaneseq
    %v996 = vshrl.u32 %v995, 7
    %v997 = vsub.s32 0, %v996
    %v998 = vrot.slane %v292, %v997
    %v1000 = vadd.f32 %v992, %v998
    %v1001 = vadd.f32 %v993, %v998
    %v1002 = vadd.f32 %v214, %v1000
    %v1003 = vadd.f32 %v215, %v1001
    %v1004 = vld [vmem:[#allocation11] sm:$0x1]
    %v1005 = vld [vmem:[#allocation13] sm:$0x1]
    %v1006 = vsel %vm243, %v1002, 0.0
    %1007 = vadd.xlane.f32.xlu0 %v1006
    %v1008 = vpop.xlane.xlu0 %1007
    %v1009 = vsel %vm243, %v1003, 0.0
    %1010 = vadd.xlane.f32.xlu0 %v1009
    %v1011 = vpop.xlane.xlu0 %1010
    %v1012 = vrcp.pop 32.0
    %v1013 = vmul.f32 %v1008, %v1012
    %v1014 = vmul.f32 %v1011, %v1012
    %v1015 = vsub.f32 %v1002, %v1013
    %v1016 = vsub.f32 %v1003, %v1014
    %v1017 = vmul.f32 %v1015, %v1015
    %v1018 = vmul.f32 %v1016, %v1016
    %v1019 = vsel %vm243, %v1017, 0.0
    %1020 = vadd.xlane.f32.xlu0 %v1019
    %v1021 = vpop.xlane.xlu0 %1020
    %v1022 = vsel %vm243, %v1018, 0.0
    %1023 = vadd.xlane.f32.xlu0 %v1022
    %v1024 = vpop.xlane.xlu0 %1023
    %v1025 = vmul.f32 %v1021, %v1012
    %v1026 = vmul.f32 %v1024, %v1012
    %v1027 = vadd.f32 %v1025, 1e-05
    %v1028 = vadd.f32 %v1026, 1e-05
    %v1029 = vrsqrt.pop %v1027
    %v1030 = vrsqrt.pop %v1028
    %v1031 = vmul.f32 %v1015, %v1029
    %v1032 = vmul.f32 %v1016, %v1030
    %v1034 = vlaneseq
    %v1035 = vshrl.u32 %v1034, 7
    %v1036 = vsub.s32 0, %v1035
    %v1037 = vrot.slane %v1004, %v1036
    %v1039 = vmul.f32 %v1031, %v1037
    %v1040 = vmul.f32 %v1032, %v1037
    %v1042 = vlaneseq
    %v1043 = vshrl.u32 %v1042, 7
    %v1044 = vsub.s32 0, %v1043
    %v1045 = vrot.slane %v1005, %v1044
    %v1047 = vadd.f32 %v1039, %v1045
    %v1048 = vadd.f32 %v1040, %v1045
    %v1049 = vpack.c.bf16 %v1048, %v1047
    %v1050 = vld [vmem:[%s10] sm:$0xf]
    %v1051 = vld [vmem:[%s10 + $0x4] sm:$0xf]
    %v1052 = vld [vmem:[%s10 + $0x8] sm:$0xf]
    %v1053 = vld [vmem:[%s10 + $0xc] sm:$0xf]
    %v1054 = vld [vmem:[#allocation14] sm:$0x1]
    %v1056 = vlaneseq
    %v1057 = vshrl.u32 %v1056, 7
    %v1058 = vsub.s32 0, %v1057
    %v1059 = vrot.slane %v1054, %v1058
    %v1065 = vunpack.c.l.b16 %v1050
    %v1066 = vunpack.c.l.b16 %v1051
    %v1067 = vunpack.c.l.b16 %v1052
    %v1068 = vunpack.c.l.b16 %v1053
    %v1069 = vpack.c.b16 %v1066, %v1065
    %v1070 = vpack.c.b16 %v1068, %v1067
    %v1074 = vsel %vm243, %v1049, 0
    %1076 = vmatprep.subr.bf16.mxu0 0
    %1077 = vmatpush1.bf16.msra.mxu0 %v1069
    %1078 = vmatprep.subr.bf16.mxu0 0
    %1079 = vmatpush1.bf16.msra.mxu0 %v1070
    %1080 = vmatprep.subr.bf16.mxu0 0
    %1081 = vmatpush1.bf16.msra.mxu0 0
    %1082 = vmatprep.subr.bf16.mxu0 0
    %1083 = vmatpush1.bf16.msra.mxu0 0
    %1084 = vmatprep.subr.bf16.mxu0 0
    %1085 = vmatpush1.bf16.msra.mxu0 0
    %1086 = vmatprep.subr.bf16.mxu0 0
    %1087 = vmatpush1.bf16.msra.mxu0 0
    %1088 = vmatprep.subr.bf16.mxu0 0
    %1089 = vmatpush1.bf16.msra.mxu0 0
    %1090 = vmatprep.subr.bf16.mxu0 0
    %1091 = vmatpush1.bf16.msra.mxu0 0
    %1092 = vmatprep.subr.bf16.mxu0 0
    %1093 = vmatpush1.bf16.msra.mxu0 0
    %1094 = vmatprep.subr.bf16.mxu0 0
    %1095 = vmatpush1.bf16.msra.mxu0 0
    %1096 = vmatprep.subr.bf16.mxu0 0
    %1097 = vmatpush1.bf16.msra.mxu0 0
    %1098 = vmatprep.subr.bf16.mxu0 0
    %1099 = vmatpush1.bf16.msra.mxu0 0
    %1100 = vmatprep.subr.bf16.mxu0 0
    %1101 = vmatpush1.bf16.msra.mxu0 0
    %1102 = vmatprep.subr.bf16.mxu0 0
    %1103 = vmatpush1.bf16.msra.mxu0 0
    %1104 = vmatprep.subr.bf16.mxu0 0
    %1105 = vmatpush1.bf16.msra.mxu0 0
    %1106 = vmatprep.subr.bf16.mxu0 0
    %1107 = vmatpush1.bf16.msra.mxu0 0
    %1108 = vmatprep.mubr.bf16.mxu0 0
    %1109 = vmatmul.mubr.bf16.gmra.mrb[0].mxu0 %v1074
    %v1110 = vpop.f32.mrb[0].mxu0
    %v1111 = vadd.f32 %v1059, %v1110
    %v1112 = vpop.f32.mrb[0].mxu0
    %v1113 = vpop.f32.mrb[0].mxu0
    %v1114 = vadd.f32 %v1059, %v1113
    %v1115 = vpop.f32.mrb[0].mxu0
    %1116 = vdwg.mxu0
    %v1117 = vpack.c.bf16 %v217, %v216
    %v1118 = vpack.c.bf16 %v218, %v218
    %v1119 = vld [vmem:[%s12] sm:$0xf]
    %v1120 = vld [vmem:[%s12 + $0x4] sm:$0xf]
    %v1121 = vld [vmem:[%s12 + $0x8] sm:$0xf]
    %v1122 = vld [vmem:[%s12 + $0xc] sm:$0xf]
    %v1123 = vld [vmem:[#allocation16] sm:$0x1]
    %v1125 = vlaneseq
    %v1126 = vshrl.u32 %v1125, 7
    %v1127 = vsub.s32 0, %v1126
    %v1128 = vrot.slane %v1123, %v1127
    %v1134 = vunpack.c.l.b16 %v1119
    %v1135 = vunpack.c.l.b16 %v1120
    %v1136 = vunpack.c.l.b16 %v1121
    %v1137 = vunpack.c.l.b16 %v1122
    %v1138 = vpack.c.b16 %v1135, %v1134
    %v1139 = vpack.c.b16 %v1137, %v1136
    %v1143 = vsel %vm243, %v1117, 0
    %v1146 = vsel %vm243, %v1118, 0
    %1148 = vmatprep.subr.bf16.mxu0 0
    %1149 = vmatpush1.bf16.msra.mxu0 %v1138
    %1150 = vmatprep.subr.bf16.mxu0 0
    %1151 = vmatpush1.bf16.msra.mxu0 %v1139
    %1152 = vmatprep.subr.bf16.mxu0 0
    %1153 = vmatpush1.bf16.msra.mxu0 0
    %1154 = vmatprep.subr.bf16.mxu0 0
    %1155 = vmatpush1.bf16.msra.mxu0 0
    %1156 = vmatprep.subr.bf16.mxu0 0
    %1157 = vmatpush1.bf16.msra.mxu0 0
    %1158 = vmatprep.subr.bf16.mxu0 0
    %1159 = vmatpush1.bf16.msra.mxu0 0
    %1160 = vmatprep.subr.bf16.mxu0 0
    %1161 = vmatpush1.bf16.msra.mxu0 0
    %1162 = vmatprep.subr.bf16.mxu0 0
    %1163 = vmatpush1.bf16.msra.mxu0 0
    %1164 = vmatprep.subr.bf16.mxu0 0
    %1165 = vmatpush1.bf16.msra.mxu0 0
    %1166 = vmatprep.subr.bf16.mxu0 0
    %1167 = vmatpush1.bf16.msra.mxu0 0
    %1168 = vmatprep.subr.bf16.mxu0 0
    %1169 = vmatpush1.bf16.msra.mxu0 0
    %1170 = vmatprep.subr.bf16.mxu0 0
    %1171 = vmatpush1.bf16.msra.mxu0 0
    %1172 = vmatprep.subr.bf16.mxu0 0
    %1173 = vmatpush1.bf16.msra.mxu0 0
    %1174 = vmatprep.subr.bf16.mxu0 0
    %1175 = vmatpush1.bf16.msra.mxu0 0
    %1176 = vmatprep.subr.bf16.mxu0 0
    %1177 = vmatpush1.bf16.msra.mxu0 0
    %1178 = vmatprep.subr.bf16.mxu0 0
    %1179 = vmatpush1.bf16.msra.mxu0 0
    %1180 = vmatprep.mubr.bf16.mxu0 0
    %1181 = vmatmul.mubr.bf16.gmra.mrb[0].mxu0 %v1143
    %v1182 = vpop.f32.mrb[0].mxu0
    %v1183 = vadd.f32 %v1128, %v1182
    %v1184 = vpop.f32.mrb[0].mxu0
    %v1185 = vpop.f32.mrb[0].mxu0
    %v1186 = vadd.f32 %v1128, %v1185
    %v1187 = vpop.f32.mrb[0].mxu0
    %1188 = vmatprep.mubr.bf16.mxu0 0
    %1189 = vmatmul.mubr.bf16.gmra.mrb[0].mxu0 %v1146
    %v1190 = vpop.f32.mrb[0].mxu0
    %v1191 = vadd.f32 %v1128, %v1190
    %v1192 = vpop.f32.mrb[0].mxu0
    %v1193 = vpop.f32.mrb[0].mxu0
    %v1194 = vpop.f32.mrb[0].mxu0
    %1195 = vdwg.mxu0
    %v1196 = vld [vmem:[#allocation17] sm:$0xf]
    %v1197 = vld [vmem:[#allocation17 + $0x4] sm:$0xf]
    %v1198 = vld [vmem:[#allocation17 + $0x8] sm:$0xf]
    %v1199 = vld [vmem:[#allocation17 + $0xc] sm:$0xf]
    %v1200 = vld [vmem:[#allocation19] sm:$0x1]
    %v1201 = vld [vmem:[%s3] sm:$0xff]
    %v1202 = vld [vmem:[%s3 + $0x8] sm:$0xff]
    %v1203 = vpack.c.bf16 %v1114, %v1111
    %v1204 = vpack.c.bf16 %v1186, %v1183
    %v1205 = vpack.c.bf16 %v1191, %v1191
    %v1207 = vsel %vm299, %v1203, 0
    %v1210 = vsel %vm299, %v1204, 0
    %v1213 = vsel %vm299, %v1205, 0
    %1215 = vmatprep.subr.bf16.mxu0 0
    %1216 = vmatpush1.bf16.xpose.msra.mxu0 %v1210
    %1217 = vmatprep.subr.bf16.mxu0 0
    %1218 = vmatpush1.bf16.xpose.msra.mxu0 %v1213
    %1219 = vmatprep.subr.bf16.mxu0 0
    %1220 = vmatpush1.bf16.xpose.msra.mxu0 0
    %1221 = vmatprep.subr.bf16.mxu0 0
    %1222 = vmatpush1.bf16.xpose.msra.mxu0 0
    %1223 = vmatprep.subr.bf16.mxu0 0
    %1224 = vmatpush1.bf16.xpose.msra.mxu0 0
    %1225 = vmatprep.subr.bf16.mxu0 0
    %1226 = vmatpush1.bf16.xpose.msra.mxu0 0
    %1227 = vmatprep.subr.bf16.mxu0 0
    %1228 = vmatpush1.bf16.xpose.msra.mxu0 0
    %1229 = vmatprep.subr.bf16.mxu0 0
    %1230 = vmatpush1.bf16.xpose.msra.mxu0 0
    %1231 = vmatprep.subr.bf16.mxu0 0
    %1232 = vmatpush1.bf16.xpose.msra.mxu0 0
    %1233 = vmatprep.subr.bf16.mxu0 0
    %1234 = vmatpush1.bf16.xpose.msra.mxu0 0
    %1235 = vmatprep.subr.bf16.mxu0 0
    %1236 = vmatpush1.bf16.xpose.msra.mxu0 0
    %1237 = vmatprep.subr.bf16.mxu0 0
    %1238 = vmatpush1.bf16.xpose.msra.mxu0 0
    %1239 = vmatprep.subr.bf16.mxu0 0
    %1240 = vmatpush1.bf16.xpose.msra.mxu0 0
    %1241 = vmatprep.subr.bf16.mxu0 0
    %1242 = vmatpush1.bf16.xpose.msra.mxu0 0
    %1243 = vmatprep.subr.bf16.mxu0 0
    %1244 = vmatpush1.bf16.xpose.msra.mxu0 0
    %1245 = vmatprep.subr.bf16.mxu0 0
    %1246 = vmatpush1.bf16.xpose.msra.mxu0 0
    %1247 = vmatprep.mubr.bf16.mxu0 0
    %1248 = vmatmul.mubr.bf16.gmra.mrb[0].mxu0 %v1207
    %v1249 = vpop.f32.mrb[0].mxu0
    %v1250 = vadd.f32 0.0, %v1249
    %v1251 = vpop.f32.mrb[0].mxu0
    %v1252 = vpop.f32.mrb[0].mxu0
    %v1253 = vadd.f32 0.0, %v1252
    %v1254 = vpop.f32.mrb[0].mxu0
    %1255 = vdwg.mxu0
    %v1256 = vmul.f32 %v1250, 0.35355338
    %v1257 = vmul.f32 %v1253, 0.35355338
    %v1258 = vadd.f32 %v1256, %v1201
    %v1259 = vadd.f32 %v1257, %v1202
    %vm1260 = vcmask 162816
    %v1261 = vsel %vm1260, %v1258, -inf
    %1262 = vmax.xlane.f32.xlu0 %v1261
    %v1263 = vpop.xlane.xlu0 %1262
    %v1264 = vsel %vm1260, %v1259, -inf
    %1265 = vmax.xlane.f32.xlu0 %v1264
    %v1266 = vpop.xlane.xlu0 %1265
    %v1267 = vsub.f32 %v1258, %v1263
    %v1268 = vsub.f32 %v1259, %v1266
    %v1269 = vmul.f32 %v1267, 1.442695
    %v1270 = vpow.pop %v1269
    %v1271 = vmul.f32 %v1268, 1.442695
    %v1272 = vpow.pop %v1271
    %v1273 = vsel %vm1260, %v1270, 0.0
    %1274 = vadd.xlane.f32.xlu0 %v1273
    %v1275 = vpop.xlane.xlu0 %1274
    %v1276 = vsel %vm1260, %v1272, 0.0
    %1277 = vadd.xlane.f32.xlu0 %v1276
    %v1278 = vpop.xlane.xlu0 %1277
    %v1279 = vrcp.pop %v1275
    %v1280 = vrcp.pop %v1278
    %v1281 = vmul.f32 %v1270, %v1279
    %v1282 = vmul.f32 %v1272, %v1280
    %v1283 = vpack.c.bf16 %v1282, %v1281
    %1286 = vrot.lane.b32.xlu0 %v1204, 96
    %v1287 = vpop.permute.xlu0 %1286
    %1288 = vrot.lane.b32.xlu0 %v1205, 96
    %v1289 = vpop.permute.xlu0 %1288
    %v1292 = vsel %vm1260, %v1283, 0
    %vm1294 = vcmask 1041408
    %v1296 = vsel %vm1294, %v1289, 0
    %1298 = vmatprep.subr.bf16.mxu0 0
    %1299 = vmatpush1.bf16.msra.mxu0 %v1287
    %1300 = vmatprep.subr.bf16.mxu0 0
    %1301 = vmatpush1.bf16.msra.mxu0 %v1296
    %1302 = vmatprep.subr.bf16.mxu0 0
    %1303 = vmatpush1.bf16.msra.mxu0 0
    %1304 = vmatprep.subr.bf16.mxu0 0
    %1305 = vmatpush1.bf16.msra.mxu0 0
    %1306 = vmatprep.subr.bf16.mxu0 0
    %1307 = vmatpush1.bf16.msra.mxu0 0
    %1308 = vmatprep.subr.bf16.mxu0 0
    %1309 = vmatpush1.bf16.msra.mxu0 0
    %1310 = vmatprep.subr.bf16.mxu0 0
    %1311 = vmatpush1.bf16.msra.mxu0 0
    %1312 = vmatprep.subr.bf16.mxu0 0
    %1313 = vmatpush1.bf16.msra.mxu0 0
    %1314 = vmatprep.subr.bf16.mxu0 0
    %1315 = vmatpush1.bf16.msra.mxu0 0
    %1316 = vmatprep.subr.bf16.mxu0 0
    %1317 = vmatpush1.bf16.msra.mxu0 0
    %1318 = vmatprep.subr.bf16.mxu0 0
    %1319 = vmatpush1.bf16.msra.mxu0 0
    %1320 = vmatprep.subr.bf16.mxu0 0
    %1321 = vmatpush1.bf16.msra.mxu0 0
    %1322 = vmatprep.subr.bf16.mxu0 0
    %1323 = vmatpush1.bf16.msra.mxu0 0
    %1324 = vmatprep.subr.bf16.mxu0 0
    %1325 = vmatpush1.bf16.msra.mxu0 0
    %1326 = vmatprep.subr.bf16.mxu0 0
    %1327 = vmatpush1.bf16.msra.mxu0 0
    %1328 = vmatprep.subr.bf16.mxu0 0
    %1329 = vmatpush1.bf16.msra.mxu0 0
    %1330 = vmatprep.mubr.bf16.mxu0 0
    %1331 = vmatmul.mubr.bf16.gmra.mrb[0].mxu0 %v1292
    %v1332 = vpop.f32.mrb[0].mxu0
    %v1333 = vadd.f32 0.0, %v1332
    %v1334 = vpop.f32.mrb[0].mxu0
    %v1335 = vpop.f32.mrb[0].mxu0
    %v1336 = vadd.f32 0.0, %v1335
    %v1337 = vpop.f32.mrb[0].mxu0
    %1338 = vdwg.mxu0
    %v1339 = vpack.c.bf16 %v1336, %v1333
    %1341 = vrot.lane.b32.xlu0 %v1203, 120
    %v1342 = vpop.permute.xlu0 %1341
    %1343 = vrot.lane.b32.xlu0 %v1204, 120
    %v1344 = vpop.permute.xlu0 %1343
    %1345 = vrot.lane.b32.xlu0 %v1205, 120
    %v1346 = vpop.permute.xlu0 %1345
    %v1348 = vsel %vm299, %v1342, 0
    %v1351 = vsel %vm299, %v1344, 0
    %v1354 = vsel %vm299, %v1346, 0
    %1356 = vmatprep.subr.bf16.mxu0 0
    %1357 = vmatpush1.bf16.xpose.msra.mxu0 %v1351
    %1358 = vmatprep.subr.bf16.mxu0 0
    %1359 = vmatpush1.bf16.xpose.msra.mxu0 %v1354
    %1360 = vmatprep.subr.bf16.mxu0 0
    %1361 = vmatpush1.bf16.xpose.msra.mxu0 0
    %1362 = vmatprep.subr.bf16.mxu0 0
    %1363 = vmatpush1.bf16.xpose.msra.mxu0 0
    %1364 = vmatprep.subr.bf16.mxu0 0
    %1365 = vmatpush1.bf16.xpose.msra.mxu0 0
    %1366 = vmatprep.subr.bf16.mxu0 0
    %1367 = vmatpush1.bf16.xpose.msra.mxu0 0
    %1368 = vmatprep.subr.bf16.mxu0 0
    %1369 = vmatpush1.bf16.xpose.msra.mxu0 0
    %1370 = vmatprep.subr.bf16.mxu0 0
    %1371 = vmatpush1.bf16.xpose.msra.mxu0 0
    %1372 = vmatprep.subr.bf16.mxu0 0
    %1373 = vmatpush1.bf16.xpose.msra.mxu0 0
    %1374 = vmatprep.subr.bf16.mxu0 0
    %1375 = vmatpush1.bf16.xpose.msra.mxu0 0
    %1376 = vmatprep.subr.bf16.mxu0 0
    %1377 = vmatpush1.bf16.xpose.msra.mxu0 0
    %1378 = vmatprep.subr.bf16.mxu0 0
    %1379 = vmatpush1.bf16.xpose.msra.mxu0 0
    %1380 = vmatprep.subr.bf16.mxu0 0
    %1381 = vmatpush1.bf16.xpose.msra.mxu0 0
    %1382 = vmatprep.subr.bf16.mxu0 0
    %1383 = vmatpush1.bf16.xpose.msra.mxu0 0
    %1384 = vmatprep.subr.bf16.mxu0 0
    %1385 = vmatpush1.bf16.xpose.msra.mxu0 0
    %1386 = vmatprep.subr.bf16.mxu0 0
    %1387 = vmatpush1.bf16.xpose.msra.mxu0 0
    %1388 = vmatprep.mubr.bf16.mxu0 0
    %1389 = vmatmul.mubr.bf16.gmra.mrb[0].mxu0 %v1348
    %v1390 = vpop.f32.mrb[0].mxu0
    %v1391 = vadd.f32 0.0, %v1390
    %v1392 = vpop.f32.mrb[0].mxu0
    %v1393 = vpop.f32.mrb[0].mxu0
    %v1394 = vadd.f32 0.0, %v1393
    %v1395 = vpop.f32.mrb[0].mxu0
    %1396 = vdwg.mxu0
    %v1397 = vmul.f32 %v1391, 0.35355338
    %v1398 = vmul.f32 %v1394, 0.35355338
    %v1399 = vadd.f32 %v1397, %v1201
    %v1400 = vadd.f32 %v1398, %v1202
    %v1401 = vsel %vm1260, %v1399, -inf
    %1402 = vmax.xlane.f32.xlu0 %v1401
    %v1403 = vpop.xlane.xlu0 %1402
    %v1404 = vsel %vm1260, %v1400, -inf
    %1405 = vmax.xlane.f32.xlu0 %v1404
    %v1406 = vpop.xlane.xlu0 %1405
    %v1407 = vsub.f32 %v1399, %v1403
    %v1408 = vsub.f32 %v1400, %v1406
    %v1409 = vmul.f32 %v1407, 1.442695
    %v1410 = vpow.pop %v1409
    %v1411 = vmul.f32 %v1408, 1.442695
    %v1412 = vpow.pop %v1411
    %v1413 = vsel %vm1260, %v1410, 0.0
    %1414 = vadd.xlane.f32.xlu0 %v1413
    %v1415 = vpop.xlane.xlu0 %1414
    %v1416 = vsel %vm1260, %v1412, 0.0
    %1417 = vadd.xlane.f32.xlu0 %v1416
    %v1418 = vpop.xlane.xlu0 %1417
    %v1419 = vrcp.pop %v1415
    %v1420 = vrcp.pop %v1418
    %v1421 = vmul.f32 %v1410, %v1419
    %v1422 = vmul.f32 %v1412, %v1420
    %v1423 = vpack.c.bf16 %v1422, %v1421
    %1424 = vrot.lane.b32.xlu0 %v1204, 88
    %v1425 = vpop.permute.xlu0 %1424
    %1426 = vrot.lane.b32.xlu0 %v1205, 88
    %v1427 = vpop.permute.xlu0 %1426
    %v1430 = vsel %vm1260, %v1423, 0
    %v1433 = vsel %vm1294, %v1427, 0
    %1435 = vmatprep.subr.bf16.mxu0 0
    %1436 = vmatpush1.bf16.msra.mxu0 %v1425
    %1437 = vmatprep.subr.bf16.mxu0 0
    %1438 = vmatpush1.bf16.msra.mxu0 %v1433
    %1439 = vmatprep.subr.bf16.mxu0 0
    %1440 = vmatpush1.bf16.msra.mxu0 0
    %1441 = vmatprep.subr.bf16.mxu0 0
    %1442 = vmatpush1.bf16.msra.mxu0 0
    %1443 = vmatprep.subr.bf16.mxu0 0
    %1444 = vmatpush1.bf16.msra.mxu0 0
    %1445 = vmatprep.subr.bf16.mxu0 0
    %1446 = vmatpush1.bf16.msra.mxu0 0
    %1447 = vmatprep.subr.bf16.mxu0 0
    %1448 = vmatpush1.bf16.msra.mxu0 0
    %1449 = vmatprep.subr.bf16.mxu0 0
    %1450 = vmatpush1.bf16.msra.mxu0 0
    %1451 = vmatprep.subr.bf16.mxu0 0
    %1452 = vmatpush1.bf16.msra.mxu0 0
    %1453 = vmatprep.subr.bf16.mxu0 0
    %1454 = vmatpush1.bf16.msra.mxu0 0
    %1455 = vmatprep.subr.bf16.mxu0 0
    %1456 = vmatpush1.bf16.msra.mxu0 0
    %1457 = vmatprep.subr.bf16.mxu0 0
    %1458 = vmatpush1.bf16.msra.mxu0 0
    %1459 = vmatprep.subr.bf16.mxu0 0
    %1460 = vmatpush1.bf16.msra.mxu0 0
    %1461 = vmatprep.subr.bf16.mxu0 0
    %1462 = vmatpush1.bf16.msra.mxu0 0
    %1463 = vmatprep.subr.bf16.mxu0 0
    %1464 = vmatpush1.bf16.msra.mxu0 0
    %1465 = vmatprep.subr.bf16.mxu0 0
    %1466 = vmatpush1.bf16.msra.mxu0 0
    %1467 = vmatprep.mubr.bf16.mxu0 0
    %1468 = vmatmul.mubr.bf16.gmra.mrb[0].mxu0 %v1430
    %v1469 = vpop.f32.mrb[0].mxu0
    %v1470 = vadd.f32 0.0, %v1469
    %v1471 = vpop.f32.mrb[0].mxu0
    %v1472 = vpop.f32.mrb[0].mxu0
    %v1473 = vadd.f32 0.0, %v1472
    %v1474 = vpop.f32.mrb[0].mxu0
    %1475 = vdwg.mxu0
    %v1476 = vpack.c.bf16 %v1473, %v1470
    %v1478 = vsel %vm299, %v1476, 0
    %v1481 = vsel %vm552, %v1197, 0
    %1483 = vmatprep.subr.bf16.mxu0 0
    %1484 = vmatpush1.bf16.msra.mxu0 %v1481
    %1485 = vmatprep.subr.bf16.mxu0 0
    %1486 = vmatpush1.bf16.msra.mxu0 0
    %1487 = vmatprep.subr.bf16.mxu0 0
    %1488 = vmatpush1.bf16.msra.mxu0 0
    %1489 = vmatprep.subr.bf16.mxu0 0
    %1490 = vmatpush1.bf16.msra.mxu0 0
    %1491 = vmatprep.subr.bf16.mxu0 0
    %1492 = vmatpush1.bf16.msra.mxu0 0
    %1493 = vmatprep.subr.bf16.mxu0 0
    %1494 = vmatpush1.bf16.msra.mxu0 0
    %1495 = vmatprep.subr.bf16.mxu0 0
    %1496 = vmatpush1.bf16.msra.mxu0 0
    %1497 = vmatprep.subr.bf16.mxu0 0
    %1498 = vmatpush1.bf16.msra.mxu0 0
    %1499 = vmatprep.subr.bf16.mxu0 0
    %1500 = vmatpush1.bf16.msra.mxu0 0
    %1501 = vmatprep.subr.bf16.mxu0 0
    %1502 = vmatpush1.bf16.msra.mxu0 0
    %1503 = vmatprep.subr.bf16.mxu0 0
    %1504 = vmatpush1.bf16.msra.mxu0 0
    %1505 = vmatprep.subr.bf16.mxu0 0
    %1506 = vmatpush1.bf16.msra.mxu0 0
    %1507 = vmatprep.subr.bf16.mxu0 0
    %1508 = vmatpush1.bf16.msra.mxu0 0
    %1509 = vmatprep.subr.bf16.mxu0 0
    %1510 = vmatpush1.bf16.msra.mxu0 0
    %1511 = vmatprep.subr.bf16.mxu0 0
    %1512 = vmatpush1.bf16.msra.mxu0 0
    %1513 = vmatprep.subr.bf16.mxu0 0
    %1514 = vmatpush1.bf16.msra.mxu0 0
    %1515 = vmatprep.mubr.bf16.mxu0 0
    %1516 = vmatmul.mubr.bf16.gmra.mrb[0].mxu0 %v1478
    %v1517 = vpop.f32.mrb[0].mxu0
    %v1518 = vadd.f32 0.0, %v1517
    %v1519 = vpop.f32.mrb[0].mxu0
    %v1520 = vpop.f32.mrb[0].mxu0
    %v1521 = vadd.f32 0.0, %v1520
    %v1522 = vpop.f32.mrb[0].mxu0
    %1523 = vdwg.mxu0
    %v1525 = vsel %vm299, %v1339, 0
    %v1528 = vsel %vm552, %v1196, 0
    %1530 = vmatprep.subr.bf16.mxu0 0
    %1531 = vmatpush1.bf16.msra.mxu0 %v1528
    %1532 = vmatprep.subr.bf16.mxu0 0
    %1533 = vmatpush1.bf16.msra.mxu0 0
    %1534 = vmatprep.subr.bf16.mxu0 0
    %1535 = vmatpush1.bf16.msra.mxu0 0
    %1536 = vmatprep.subr.bf16.mxu0 0
    %1537 = vmatpush1.bf16.msra.mxu0 0
    %1538 = vmatprep.subr.bf16.mxu0 0
    %1539 = vmatpush1.bf16.msra.mxu0 0
    %1540 = vmatprep.subr.bf16.mxu0 0
    %1541 = vmatpush1.bf16.msra.mxu0 0
    %1542 = vmatprep.subr.bf16.mxu0 0
    %1543 = vmatpush1.bf16.msra.mxu0 0
    %1544 = vmatprep.subr.bf16.mxu0 0
    %1545 = vmatpush1.bf16.msra.mxu0 0
    %1546 = vmatprep.subr.bf16.mxu0 0
    %1547 = vmatpush1.bf16.msra.mxu0 0
    %1548 = vmatprep.subr.bf16.mxu0 0
    %1549 = vmatpush1.bf16.msra.mxu0 0
    %1550 = vmatprep.subr.bf16.mxu0 0
    %1551 = vmatpush1.bf16.msra.mxu0 0
    %1552 = vmatprep.subr.bf16.mxu0 0
    %1553 = vmatpush1.bf16.msra.mxu0 0
    %1554 = vmatprep.subr.bf16.mxu0 0
    %1555 = vmatpush1.bf16.msra.mxu0 0
    %1556 = vmatprep.subr.bf16.mxu0 0
    %1557 = vmatpush1.bf16.msra.mxu0 0
    %1558 = vmatprep.subr.bf16.mxu0 0
    %1559 = vmatpush1.bf16.msra.mxu0 0
    %1560 = vmatprep.subr.bf16.mxu0 0
    %1561 = vmatpush1.bf16.msra.mxu0 0
    %1562 = vmatprep.mubr.bf16.mxu0 0
    %1563 = vmatmul.mubr.bf16.gmra.mrb[0].mxu0 %v1525
    %v1564 = vpop.f32.mrb[0].mxu0
    %v1565 = vadd.f32 %v1518, %v1564
    %v1566 = vpop.f32.mrb[0].mxu0
    %v1567 = vpop.f32.mrb[0].mxu0
    %v1568 = vadd.f32 %v1521, %v1567
    %v1569 = vpop.f32.mrb[0].mxu0
    %1570 = vdwg.mxu0
    %1571 = vrot.lane.b32.xlu0 %v1203, 112
    %v1572 = vpop.permute.xlu0 %1571
    %1573 = vrot.lane.b32.xlu0 %v1204, 112
    %v1574 = vpop.permute.xlu0 %1573
    %1575 = vrot.lane.b32.xlu0 %v1205, 112
    %v1576 = vpop.permute.xlu0 %1575
    %v1578 = vsel %vm299, %v1572, 0
    %v1581 = vsel %vm299, %v1574, 0
    %v1584 = vsel %vm299, %v1576, 0
    %1586 = vmatprep.subr.bf16.mxu0 0
    %1587 = vmatpush1.bf16.xpose.msra.mxu0 %v1581
    %1588 = vmatprep.subr.bf16.mxu0 0
    %1589 = vmatpush1.bf16.xpose.msra.mxu0 %v1584
    %1590 = vmatprep.subr.bf16.mxu0 0
    %1591 = vmatpush1.bf16.xpose.msra.mxu0 0
    %1592 = vmatprep.subr.bf16.mxu0 0
    %1593 = vmatpush1.bf16.xpose.msra.mxu0 0
    %1594 = vmatprep.subr.bf16.mxu0 0
    %1595 = vmatpush1.bf16.xpose.msra.mxu0 0
    %1596 = vmatprep.subr.bf16.mxu0 0
    %1597 = vmatpush1.bf16.xpose.msra.mxu0 0
    %1598 = vmatprep.subr.bf16.mxu0 0
    %1599 = vmatpush1.bf16.xpose.msra.mxu0 0
    %1600 = vmatprep.subr.bf16.mxu0 0
    %1601 = vmatpush1.bf16.xpose.msra.mxu0 0
    %1602 = vmatprep.subr.bf16.mxu0 0
    %1603 = vmatpush1.bf16.xpose.msra.mxu0 0
    %1604 = vmatprep.subr.bf16.mxu0 0
    %1605 = vmatpush1.bf16.xpose.msra.mxu0 0
    %1606 = vmatprep.subr.bf16.mxu0 0
    %1607 = vmatpush1.bf16.xpose.msra.mxu0 0
    %1608 = vmatprep.subr.bf16.mxu0 0
    %1609 = vmatpush1.bf16.xpose.msra.mxu0 0
    %1610 = vmatprep.subr.bf16.mxu0 0
    %1611 = vmatpush1.bf16.xpose.msra.mxu0 0
    %1612 = vmatprep.subr.bf16.mxu0 0
    %1613 = vmatpush1.bf16.xpose.msra.mxu0 0
    %1614 = vmatprep.subr.bf16.mxu0 0
    %1615 = vmatpush1.bf16.xpose.msra.mxu0 0
    %1616 = vmatprep.subr.bf16.mxu0 0
    %1617 = vmatpush1.bf16.xpose.msra.mxu0 0
    %1618 = vmatprep.mubr.bf16.mxu0 0
    %1619 = vmatmul.mubr.bf16.gmra.mrb[0].mxu0 %v1578
    %v1620 = vpop.f32.mrb[0].mxu0
    %v1621 = vadd.f32 0.0, %v1620
    %v1622 = vpop.f32.mrb[0].mxu0
    %v1623 = vpop.f32.mrb[0].mxu0
    %v1624 = vadd.f32 0.0, %v1623
    %v1625 = vpop.f32.mrb[0].mxu0
    %1626 = vdwg.mxu0
    %v1627 = vmul.f32 %v1621, 0.35355338
    %v1628 = vmul.f32 %v1624, 0.35355338
    %v1629 = vadd.f32 %v1627, %v1201
    %v1630 = vadd.f32 %v1628, %v1202
    %v1631 = vsel %vm1260, %v1629, -inf
    %1632 = vmax.xlane.f32.xlu0 %v1631
    %v1633 = vpop.xlane.xlu0 %1632
    %v1634 = vsel %vm1260, %v1630, -inf
    %1635 = vmax.xlane.f32.xlu0 %v1634
    %v1636 = vpop.xlane.xlu0 %1635
    %v1637 = vsub.f32 %v1629, %v1633
    %v1638 = vsub.f32 %v1630, %v1636
    %v1639 = vmul.f32 %v1637, 1.442695
    %v1640 = vpow.pop %v1639
    %v1641 = vmul.f32 %v1638, 1.442695
    %v1642 = vpow.pop %v1641
    %v1643 = vsel %vm1260, %v1640, 0.0
    %1644 = vadd.xlane.f32.xlu0 %v1643
    %v1645 = vpop.xlane.xlu0 %1644
    %v1646 = vsel %vm1260, %v1642, 0.0
    %1647 = vadd.xlane.f32.xlu0 %v1646
    %v1648 = vpop.xlane.xlu0 %1647
    %v1649 = vrcp.pop %v1645
    %v1650 = vrcp.pop %v1648
    %v1651 = vmul.f32 %v1640, %v1649
    %v1652 = vmul.f32 %v1642, %v1650
    %v1653 = vpack.c.bf16 %v1652, %v1651
    %1654 = vrot.lane.b32.xlu0 %v1204, 80
    %v1655 = vpop.permute.xlu0 %1654
    %1656 = vrot.lane.b32.xlu0 %v1205, 80
    %v1657 = vpop.permute.xlu0 %1656
    %v1660 = vsel %vm1260, %v1653, 0
    %v1663 = vsel %vm1294, %v1657, 0
    %1665 = vmatprep.subr.bf16.mxu0 0
    %1666 = vmatpush1.bf16.msra.mxu0 %v1655
    %1667 = vmatprep.subr.bf16.mxu0 0
    %1668 = vmatpush1.bf16.msra.mxu0 %v1663
    %1669 = vmatprep.subr.bf16.mxu0 0
    %1670 = vmatpush1.bf16.msra.mxu0 0
    %1671 = vmatprep.subr.bf16.mxu0 0
    %1672 = vmatpush1.bf16.msra.mxu0 0
    %1673 = vmatprep.subr.bf16.mxu0 0
    %1674 = vmatpush1.bf16.msra.mxu0 0
    %1675 = vmatprep.subr.bf16.mxu0 0
    %1676 = vmatpush1.bf16.msra.mxu0 0
    %1677 = vmatprep.subr.bf16.mxu0 0
    %1678 = vmatpush1.bf16.msra.mxu0 0
    %1679 = vmatprep.subr.bf16.mxu0 0
    %1680 = vmatpush1.bf16.msra.mxu0 0
    %1681 = vmatprep.subr.bf16.mxu0 0
    %1682 = vmatpush1.bf16.msra.mxu0 0
    %1683 = vmatprep.subr.bf16.mxu0 0
    %1684 = vmatpush1.bf16.msra.mxu0 0
    %1685 = vmatprep.subr.bf16.mxu0 0
    %1686 = vmatpush1.bf16.msra.mxu0 0
    %1687 = vmatprep.subr.bf16.mxu0 0
    %1688 = vmatpush1.bf16.msra.mxu0 0
    %1689 = vmatprep.subr.bf16.mxu0 0
    %1690 = vmatpush1.bf16.msra.mxu0 0
    %1691 = vmatprep.subr.bf16.mxu0 0
    %1692 = vmatpush1.bf16.msra.mxu0 0
    %1693 = vmatprep.subr.bf16.mxu0 0
    %1694 = vmatpush1.bf16.msra.mxu0 0
    %1695 = vmatprep.subr.bf16.mxu0 0
    %1696 = vmatpush1.bf16.msra.mxu0 0
    %1697 = vmatprep.mubr.bf16.mxu0 0
    %1698 = vmatmul.mubr.bf16.gmra.mrb[0].mxu0 %v1660
    %v1699 = vpop.f32.mrb[0].mxu0
    %v1700 = vadd.f32 0.0, %v1699
    %v1701 = vpop.f32.mrb[0].mxu0
    %v1702 = vpop.f32.mrb[0].mxu0
    %v1703 = vadd.f32 0.0, %v1702
    %v1704 = vpop.f32.mrb[0].mxu0
    %1705 = vdwg.mxu0
    %v1706 = vpack.c.bf16 %v1703, %v1700
    %v1708 = vsel %vm299, %v1706, 0
    %v1711 = vsel %vm552, %v1198, 0
    %1713 = vmatprep.subr.bf16.mxu0 0
    %1714 = vmatpush1.bf16.msra.mxu0 %v1711
    %1715 = vmatprep.subr.bf16.mxu0 0
    %1716 = vmatpush1.bf16.msra.mxu0 0
    %1717 = vmatprep.subr.bf16.mxu0 0
    %1718 = vmatpush1.bf16.msra.mxu0 0
    %1719 = vmatprep.subr.bf16.mxu0 0
    %1720 = vmatpush1.bf16.msra.mxu0 0
    %1721 = vmatprep.subr.bf16.mxu0 0
    %1722 = vmatpush1.bf16.msra.mxu0 0
    %1723 = vmatprep.subr.bf16.mxu0 0
    %1724 = vmatpush1.bf16.msra.mxu0 0
    %1725 = vmatprep.subr.bf16.mxu0 0
    %1726 = vmatpush1.bf16.msra.mxu0 0
    %1727 = vmatprep.subr.bf16.mxu0 0
    %1728 = vmatpush1.bf16.msra.mxu0 0
    %1729 = vmatprep.subr.bf16.mxu0 0
    %1730 = vmatpush1.bf16.msra.mxu0 0
    %1731 = vmatprep.subr.bf16.mxu0 0
    %1732 = vmatpush1.bf16.msra.mxu0 0
    %1733 = vmatprep.subr.bf16.mxu0 0
    %1734 = vmatpush1.bf16.msra.mxu0 0
    %1735 = vmatprep.subr.bf16.mxu0 0
    %1736 = vmatpush1.bf16.msra.mxu0 0
    %1737 = vmatprep.subr.bf16.mxu0 0
    %1738 = vmatpush1.bf16.msra.mxu0 0
    %1739 = vmatprep.subr.bf16.mxu0 0
    %1740 = vmatpush1.bf16.msra.mxu0 0
    %1741 = vmatprep.subr.bf16.mxu0 0
    %1742 = vmatpush1.bf16.msra.mxu0 0
    %1743 = vmatprep.subr.bf16.mxu0 0
    %1744 = vmatpush1.bf16.msra.mxu0 0
    %1745 = vmatprep.mubr.bf16.mxu0 0
    %1746 = vmatmul.mubr.bf16.gmra.mrb[0].mxu0 %v1708
    %v1747 = vpop.f32.mrb[0].mxu0
    %v1748 = vadd.f32 0.0, %v1747
    %v1749 = vpop.f32.mrb[0].mxu0
    %v1750 = vpop.f32.mrb[0].mxu0
    %v1751 = vadd.f32 0.0, %v1750
    %v1752 = vpop.f32.mrb[0].mxu0
    %1753 = vdwg.mxu0
    %v1754 = vadd.f32 %v1565, %v1748
    %v1755 = vadd.f32 %v1568, %v1751
    %1756 = vrot.lane.b32.xlu0 %v1203, 104
    %v1757 = vpop.permute.xlu0 %1756
    %1758 = vrot.lane.b32.xlu0 %v1204, 104
    %v1759 = vpop.permute.xlu0 %1758
    %1760 = vrot.lane.b32.xlu0 %v1205, 104
    %v1761 = vpop.permute.xlu0 %1760
    %v1763 = vsel %vm299, %v1757, 0
    %v1766 = vsel %vm299, %v1759, 0
    %v1769 = vsel %vm299, %v1761, 0
    %1771 = vmatprep.subr.bf16.mxu0 0
    %1772 = vmatpush1.bf16.xpose.msra.mxu0 %v1766
    %1773 = vmatprep.subr.bf16.mxu0 0
    %1774 = vmatpush1.bf16.xpose.msra.mxu0 %v1769
    %1775 = vmatprep.subr.bf16.mxu0 0
    %1776 = vmatpush1.bf16.xpose.msra.mxu0 0
    %1777 = vmatprep.subr.bf16.mxu0 0
    %1778 = vmatpush1.bf16.xpose.msra.mxu0 0
    %1779 = vmatprep.subr.bf16.mxu0 0
    %1780 = vmatpush1.bf16.xpose.msra.mxu0 0
    %1781 = vmatprep.subr.bf16.mxu0 0
    %1782 = vmatpush1.bf16.xpose.msra.mxu0 0
    %1783 = vmatprep.subr.bf16.mxu0 0
    %1784 = vmatpush1.bf16.xpose.msra.mxu0 0
    %1785 = vmatprep.subr.bf16.mxu0 0
    %1786 = vmatpush1.bf16.xpose.msra.mxu0 0
    %1787 = vmatprep.subr.bf16.mxu0 0
    %1788 = vmatpush1.bf16.xpose.msra.mxu0 0
    %1789 = vmatprep.subr.bf16.mxu0 0
    %1790 = vmatpush1.bf16.xpose.msra.mxu0 0
    %1791 = vmatprep.subr.bf16.mxu0 0
    %1792 = vmatpush1.bf16.xpose.msra.mxu0 0
    %1793 = vmatprep.subr.bf16.mxu0 0
    %1794 = vmatpush1.bf16.xpose.msra.mxu0 0
    %1795 = vmatprep.subr.bf16.mxu0 0
    %1796 = vmatpush1.bf16.xpose.msra.mxu0 0
    %1797 = vmatprep.subr.bf16.mxu0 0
    %1798 = vmatpush1.bf16.xpose.msra.mxu0 0
    %1799 = vmatprep.subr.bf16.mxu0 0
    %1800 = vmatpush1.bf16.xpose.msra.mxu0 0
    %1801 = vmatprep.subr.bf16.mxu0 0
    %1802 = vmatpush1.bf16.xpose.msra.mxu0 0
    %1803 = vmatprep.mubr.bf16.mxu0 0
    %1804 = vmatmul.mubr.bf16.gmra.mrb[0].mxu0 %v1763
    %v1805 = vpop.f32.mrb[0].mxu0
    %v1806 = vadd.f32 0.0, %v1805
    %v1807 = vpop.f32.mrb[0].mxu0
    %v1808 = vpop.f32.mrb[0].mxu0
    %v1809 = vadd.f32 0.0, %v1808
    %v1810 = vpop.f32.mrb[0].mxu0
    %1811 = vdwg.mxu0
    %v1812 = vmul.f32 %v1806, 0.35355338
    %v1813 = vmul.f32 %v1809, 0.35355338
    %v1814 = vadd.f32 %v1812, %v1201
    %v1815 = vadd.f32 %v1813, %v1202
    %v1816 = vsel %vm1260, %v1814, -inf
    %1817 = vmax.xlane.f32.xlu0 %v1816
    %v1818 = vpop.xlane.xlu0 %1817
    %v1819 = vsel %vm1260, %v1815, -inf
    %1820 = vmax.xlane.f32.xlu0 %v1819
    %v1821 = vpop.xlane.xlu0 %1820
    %v1822 = vsub.f32 %v1814, %v1818
    %v1823 = vsub.f32 %v1815, %v1821
    %v1824 = vmul.f32 %v1822, 1.442695
    %v1825 = vpow.pop %v1824
    %v1826 = vmul.f32 %v1823, 1.442695
    %v1827 = vpow.pop %v1826
    %v1828 = vsel %vm1260, %v1825, 0.0
    %1829 = vadd.xlane.f32.xlu0 %v1828
    %v1830 = vpop.xlane.xlu0 %1829
    %v1831 = vsel %vm1260, %v1827, 0.0
    %1832 = vadd.xlane.f32.xlu0 %v1831
    %v1833 = vpop.xlane.xlu0 %1832
    %v1834 = vrcp.pop %v1830
    %v1835 = vrcp.pop %v1833
    %v1836 = vmul.f32 %v1825, %v1834
    %v1837 = vmul.f32 %v1827, %v1835
    %v1838 = vpack.c.bf16 %v1837, %v1836
    %1839 = vrot.lane.b32.xlu0 %v1204, 72
    %v1840 = vpop.permute.xlu0 %1839
    %1841 = vrot.lane.b32.xlu0 %v1205, 72
    %v1842 = vpop.permute.xlu0 %1841
    %v1845 = vsel %vm1260, %v1838, 0
    %v1848 = vsel %vm1294, %v1842, 0
    %1850 = vmatprep.subr.bf16.mxu0 0
    %1851 = vmatpush1.bf16.msra.mxu0 %v1840
    %1852 = vmatprep.subr.bf16.mxu0 0
    %1853 = vmatpush1.bf16.msra.mxu0 %v1848
    %1854 = vmatprep.subr.bf16.mxu0 0
    %1855 = vmatpush1.bf16.msra.mxu0 0
    %1856 = vmatprep.subr.bf16.mxu0 0
    %1857 = vmatpush1.bf16.msra.mxu0 0
    %1858 = vmatprep.subr.bf16.mxu0 0
    %1859 = vmatpush1.bf16.msra.mxu0 0
    %1860 = vmatprep.subr.bf16.mxu0 0
    %1861 = vmatpush1.bf16.msra.mxu0 0
    %1862 = vmatprep.subr.bf16.mxu0 0
    %1863 = vmatpush1.bf16.msra.mxu0 0
    %1864 = vmatprep.subr.bf16.mxu0 0
    %1865 = vmatpush1.bf16.msra.mxu0 0
    %1866 = vmatprep.subr.bf16.mxu0 0
    %1867 = vmatpush1.bf16.msra.mxu0 0
    %1868 = vmatprep.subr.bf16.mxu0 0
    %1869 = vmatpush1.bf16.msra.mxu0 0
    %1870 = vmatprep.subr.bf16.mxu0 0
    %1871 = vmatpush1.bf16.msra.mxu0 0
    %1872 = vmatprep.subr.bf16.mxu0 0
    %1873 = vmatpush1.bf16.msra.mxu0 0
    %1874 = vmatprep.subr.bf16.mxu0 0
    %1875 = vmatpush1.bf16.msra.mxu0 0
    %1876 = vmatprep.subr.bf16.mxu0 0
    %1877 = vmatpush1.bf16.msra.mxu0 0
    %1878 = vmatprep.subr.bf16.mxu0 0
    %1879 = vmatpush1.bf16.msra.mxu0 0
    %1880 = vmatprep.subr.bf16.mxu0 0
    %1881 = vmatpush1.bf16.msra.mxu0 0
    %1882 = vmatprep.mubr.bf16.mxu0 0
    %1883 = vmatmul.mubr.bf16.gmra.mrb[0].mxu0 %v1845
    %v1884 = vpop.f32.mrb[0].mxu0
    %v1885 = vadd.f32 0.0, %v1884
    %v1886 = vpop.f32.mrb[0].mxu0
    %v1887 = vpop.f32.mrb[0].mxu0
    %v1888 = vadd.f32 0.0, %v1887
    %v1889 = vpop.f32.mrb[0].mxu0
    %1890 = vdwg.mxu0
    %v1891 = vpack.c.bf16 %v1888, %v1885
    %v1893 = vsel %vm299, %v1891, 0
    %v1896 = vsel %vm552, %v1199, 0
    %1898 = vmatprep.subr.bf16.mxu0 0
    %1899 = vmatpush1.bf16.msra.mxu0 %v1896
    %1900 = vmatprep.subr.bf16.mxu0 0
    %1901 = vmatpush1.bf16.msra.mxu0 0
    %1902 = vmatprep.subr.bf16.mxu0 0
    %1903 = vmatpush1.bf16.msra.mxu0 0
    %1904 = vmatprep.subr.bf16.mxu0 0
    %1905 = vmatpush1.bf16.msra.mxu0 0
    %1906 = vmatprep.subr.bf16.mxu0 0
    %1907 = vmatpush1.bf16.msra.mxu0 0
    %1908 = vmatprep.subr.bf16.mxu0 0
    %1909 = vmatpush1.bf16.msra.mxu0 0
    %1910 = vmatprep.subr.bf16.mxu0 0
    %1911 = vmatpush1.bf16.msra.mxu0 0
    %1912 = vmatprep.subr.bf16.mxu0 0
    %1913 = vmatpush1.bf16.msra.mxu0 0
    %1914 = vmatprep.subr.bf16.mxu0 0
    %1915 = vmatpush1.bf16.msra.mxu0 0
    %1916 = vmatprep.subr.bf16.mxu0 0
    %1917 = vmatpush1.bf16.msra.mxu0 0
    %1918 = vmatprep.subr.bf16.mxu0 0
    %1919 = vmatpush1.bf16.msra.mxu0 0
    %1920 = vmatprep.subr.bf16.mxu0 0
    %1921 = vmatpush1.bf16.msra.mxu0 0
    %1922 = vmatprep.subr.bf16.mxu0 0
    %1923 = vmatpush1.bf16.msra.mxu0 0
    %1924 = vmatprep.subr.bf16.mxu0 0
    %1925 = vmatpush1.bf16.msra.mxu0 0
    %1926 = vmatprep.subr.bf16.mxu0 0
    %1927 = vmatpush1.bf16.msra.mxu0 0
    %1928 = vmatprep.subr.bf16.mxu0 0
    %1929 = vmatpush1.bf16.msra.mxu0 0
    %1930 = vmatprep.mubr.bf16.mxu0 0
    %1931 = vmatmul.mubr.bf16.gmra.mrb[0].mxu0 %v1893
    %v1932 = vpop.f32.mrb[0].mxu0
    %v1933 = vadd.f32 0.0, %v1932
    %v1934 = vpop.f32.mrb[0].mxu0
    %v1935 = vpop.f32.mrb[0].mxu0
    %v1936 = vadd.f32 0.0, %v1935
    %v1937 = vpop.f32.mrb[0].mxu0
    %1938 = vdwg.mxu0
    %v1939 = vadd.f32 %v1754, %v1933
    %v1940 = vadd.f32 %v1755, %v1936
    %v1942 = vlaneseq
    %v1943 = vshrl.u32 %v1942, 7
    %v1944 = vsub.s32 0, %v1943
    %v1945 = vrot.slane %v1200, %v1944
    %v1947 = vadd.f32 %v1939, %v1945
    %v1948 = vadd.f32 %v1940, %v1945
    %v1949 = vadd.f32 %v1047, %v1947
    %v1950 = vadd.f32 %v1048, %v1948
    %v1951 = vld [vmem:[%s16] sm:$0x1]
    %v1952 = vld [vmem:[%s17] sm:$0x1]
    %v1953 = vsel %vm243, %v1949, 0.0
    %1954 = vadd.xlane.f32.xlu0 %v1953
    %v1955 = vpop.xlane.xlu0 %1954
    %v1956 = vsel %vm243, %v1950, 0.0
    %1957 = vadd.xlane.f32.xlu0 %v1956
    %v1958 = vpop.xlane.xlu0 %1957
    %v1959 = vmul.f32 %v1955, %v1012
    %v1960 = vmul.f32 %v1958, %v1012
    %v1961 = vsub.f32 %v1949, %v1959
    %v1962 = vsub.f32 %v1950, %v1960
    %v1963 = vmul.f32 %v1961, %v1961
    %v1964 = vmul.f32 %v1962, %v1962
    %v1965 = vsel %vm243, %v1963, 0.0
    %1966 = vadd.xlane.f32.xlu0 %v1965
    %v1967 = vpop.xlane.xlu0 %1966
    %v1968 = vsel %vm243, %v1964, 0.0
    %1969 = vadd.xlane.f32.xlu0 %v1968
    %v1970 = vpop.xlane.xlu0 %1969
    %v1971 = vmul.f32 %v1967, %v1012
    %v1972 = vmul.f32 %v1970, %v1012
    %v1973 = vadd.f32 %v1971, 1e-05
    %v1974 = vadd.f32 %v1972, 1e-05
    %v1975 = vrsqrt.pop %v1973
    %v1976 = vrsqrt.pop %v1974
    %v1977 = vmul.f32 %v1961, %v1975
    %v1978 = vmul.f32 %v1962, %v1976
    %v1980 = vlaneseq
    %v1981 = vshrl.u32 %v1980, 7
    %v1982 = vsub.s32 0, %v1981
    %v1983 = vrot.slane %v1951, %v1982
    %v1985 = vmul.f32 %v1977, %v1983
    %v1986 = vmul.f32 %v1978, %v1983
    %v1988 = vlaneseq
    %v1989 = vshrl.u32 %v1988, 7
    %v1990 = vsub.s32 0, %v1989
    %v1991 = vrot.slane %v1952, %v1990
    %v1993 = vadd.f32 %v1985, %v1991
    %v1994 = vadd.f32 %v1986, %v1991
    %v1995 = vpack.c.bf16 %v1994, %v1993
    %v1996 = vld [vmem:[%s18] sm:$0xf]
    %v1997 = vld [vmem:[%s18 + $0x4] sm:$0xf]
    %v1998 = vld [vmem:[%s18 + $0x8] sm:$0xf]
    %v1999 = vld [vmem:[%s18 + $0xc] sm:$0xf]
    %v2000 = vld [vmem:[%s19] sm:$0x1]
    %v2002 = vlaneseq
    %v2003 = vshrl.u32 %v2002, 7
    %v2004 = vsub.s32 0, %v2003
    %v2005 = vrot.slane %v2000, %v2004
    %v2011 = vunpack.c.l.b16 %v1996
    %v2012 = vunpack.c.l.b16 %v1997
    %v2013 = vunpack.c.l.b16 %v1998
    %v2014 = vunpack.c.l.b16 %v1999
    %v2015 = vpack.c.b16 %v2012, %v2011
    %v2016 = vpack.c.b16 %v2014, %v2013
    %v2020 = vsel %vm243, %v1995, 0
    %2022 = vmatprep.subr.bf16.mxu0 0
    %2023 = vmatpush1.bf16.msra.mxu0 %v2015
    %2024 = vmatprep.subr.bf16.mxu0 0
    %2025 = vmatpush1.bf16.msra.mxu0 %v2016
    %2026 = vmatprep.subr.bf16.mxu0 0
    %2027 = vmatpush1.bf16.msra.mxu0 0
    %2028 = vmatprep.subr.bf16.mxu0 0
    %2029 = vmatpush1.bf16.msra.mxu0 0
    %2030 = vmatprep.subr.bf16.mxu0 0
    %2031 = vmatpush1.bf16.msra.mxu0 0
    %2032 = vmatprep.subr.bf16.mxu0 0
    %2033 = vmatpush1.bf16.msra.mxu0 0
    %2034 = vmatprep.subr.bf16.mxu0 0
    %2035 = vmatpush1.bf16.msra.mxu0 0
    %2036 = vmatprep.subr.bf16.mxu0 0
    %2037 = vmatpush1.bf16.msra.mxu0 0
    %2038 = vmatprep.subr.bf16.mxu0 0
    %2039 = vmatpush1.bf16.msra.mxu0 0
    %2040 = vmatprep.subr.bf16.mxu0 0
    %2041 = vmatpush1.bf16.msra.mxu0 0
    %2042 = vmatprep.subr.bf16.mxu0 0
    %2043 = vmatpush1.bf16.msra.mxu0 0
    %2044 = vmatprep.subr.bf16.mxu0 0
    %2045 = vmatpush1.bf16.msra.mxu0 0
    %2046 = vmatprep.subr.bf16.mxu0 0
    %2047 = vmatpush1.bf16.msra.mxu0 0
    %2048 = vmatprep.subr.bf16.mxu0 0
    %2049 = vmatpush1.bf16.msra.mxu0 0
    %2050 = vmatprep.subr.bf16.mxu0 0
    %2051 = vmatpush1.bf16.msra.mxu0 0
    %2052 = vmatprep.subr.bf16.mxu0 0
    %2053 = vmatpush1.bf16.msra.mxu0 0
    %2054 = vmatprep.mubr.bf16.mxu0 0
    %2055 = vmatmul.mubr.bf16.gmra.mrb[0].mxu0 %v2020
    %v2056 = vpop.f32.mrb[0].mxu0
    %v2057 = vadd.f32 %v2005, %v2056
    %v2058 = vpop.f32.mrb[0].mxu0
    %v2059 = vpop.f32.mrb[0].mxu0
    %v2060 = vadd.f32 %v2005, %v2059
    %v2061 = vpop.f32.mrb[0].mxu0
    %2062 = vdwg.mxu0
    %v2063 = vmax.f32 %v2057, 0.0
    %v2064 = vmax.f32 %v2060, 0.0
    %v2065 = vpack.c.bf16 %v2064, %v2063
    %v2066 = vld [vmem:[%s20] sm:$0xf]
    %v2067 = vld [vmem:[%s20 + $0x4] sm:$0xf]
    %v2068 = vld [vmem:[%s20 + $0x8] sm:$0xf]
    %v2069 = vld [vmem:[%s20 + $0xc] sm:$0xf]
    %v2070 = vld [vmem:[%s20 + $0x10] sm:$0xf]
    %v2071 = vld [vmem:[%s20 + $0x14] sm:$0xf]
    %v2072 = vld [vmem:[%s20 + $0x18] sm:$0xf]
    %v2073 = vld [vmem:[%s20 + $0x1c] sm:$0xf]
    %v2074 = vld [vmem:[%s21] sm:$0x1]
    %v2076 = vlaneseq
    %v2077 = vshrl.u32 %v2076, 7
    %v2078 = vsub.s32 0, %v2077
    %v2079 = vrot.slane %v2074, %v2078
    %v2089 = vunpack.c.l.b16 %v2066
    %v2090 = vunpack.c.l.b16 %v2067
    %v2091 = vunpack.c.l.b16 %v2068
    %v2092 = vunpack.c.l.b16 %v2069
    %v2093 = vunpack.c.l.b16 %v2070
    %v2094 = vunpack.c.l.b16 %v2071
    %v2095 = vunpack.c.l.b16 %v2072
    %v2096 = vunpack.c.l.b16 %v2073
    %v2097 = vpack.c.b16 %v2090, %v2089
    %v2098 = vpack.c.b16 %v2092, %v2091
    %v2099 = vpack.c.b16 %v2094, %v2093
    %v2100 = vpack.c.b16 %v2096, %v2095
    %vm2105 = vcmask 523264
    %v2107 = vsel %vm2105, %v2065, 0
    %2109 = vmatprep.subr.bf16.mxu0 0
    %2110 = vmatpush1.bf16.msra.mxu0 %v2097
    %2111 = vmatprep.subr.bf16.mxu0 0
    %2112 = vmatpush1.bf16.msra.mxu0 %v2098
    %2113 = vmatprep.subr.bf16.mxu0 0
    %2114 = vmatpush1.bf16.msra.mxu0 %v2099
    %2115 = vmatprep.subr.bf16.mxu0 0
    %2116 = vmatpush1.bf16.msra.mxu0 %v2100
    %2117 = vmatprep.subr.bf16.mxu0 0
    %2118 = vmatpush1.bf16.msra.mxu0 0
    %2119 = vmatprep.subr.bf16.mxu0 0
    %2120 = vmatpush1.bf16.msra.mxu0 0
    %2121 = vmatprep.subr.bf16.mxu0 0
    %2122 = vmatpush1.bf16.msra.mxu0 0
    %2123 = vmatprep.subr.bf16.mxu0 0
    %2124 = vmatpush1.bf16.msra.mxu0 0
    %2125 = vmatprep.subr.bf16.mxu0 0
    %2126 = vmatpush1.bf16.msra.mxu0 0
    %2127 = vmatprep.subr.bf16.mxu0 0
    %2128 = vmatpush1.bf16.msra.mxu0 0
    %2129 = vmatprep.subr.bf16.mxu0 0
    %2130 = vmatpush1.bf16.msra.mxu0 0
    %2131 = vmatprep.subr.bf16.mxu0 0
    %2132 = vmatpush1.bf16.msra.mxu0 0
    %2133 = vmatprep.subr.bf16.mxu0 0
    %2134 = vmatpush1.bf16.msra.mxu0 0
    %2135 = vmatprep.subr.bf16.mxu0 0
    %2136 = vmatpush1.bf16.msra.mxu0 0
    %2137 = vmatprep.subr.bf16.mxu0 0
    %2138 = vmatpush1.bf16.msra.mxu0 0
    %2139 = vmatprep.subr.bf16.mxu0 0
    %2140 = vmatpush1.bf16.msra.mxu0 0
    %2141 = vmatprep.mubr.bf16.mxu0 0
    %2142 = vmatmul.mubr.bf16.gmra.mrb[0].mxu0 %v2107
    %v2143 = vpop.f32.mrb[0].mxu0
    %v2144 = vadd.f32 %v2079, %v2143
    %v2145 = vpop.f32.mrb[0].mxu0
    %v2146 = vpop.f32.mrb[0].mxu0
    %v2147 = vadd.f32 %v2079, %v2146
    %v2148 = vpop.f32.mrb[0].mxu0
    %2149 = vdwg.mxu0
    %v2150 = vadd.f32 %v1993, %v2144
    %v2151 = vadd.f32 %v1994, %v2147
    %v2152 = vld [vmem:[%s22] sm:$0x1]
    %v2153 = vld [vmem:[%s23] sm:$0x1]
    %v2154 = vsel %vm243, %v2150, 0.0
    %2155 = vadd.xlane.f32.xlu0 %v2154
    %v2156 = vpop.xlane.xlu0 %2155
    %v2157 = vsel %vm243, %v2151, 0.0
    %2158 = vadd.xlane.f32.xlu0 %v2157
    %v2159 = vpop.xlane.xlu0 %2158
    %v2160 = vmul.f32 %v2156, %v1012
    %v2161 = vmul.f32 %v2159, %v1012
    %v2162 = vsub.f32 %v2150, %v2160
    %v2163 = vsub.f32 %v2151, %v2161
    %v2164 = vmul.f32 %v2162, %v2162
    %v2165 = vmul.f32 %v2163, %v2163
    %v2166 = vsel %vm243, %v2164, 0.0
    %2167 = vadd.xlane.f32.xlu0 %v2166
    %v2168 = vpop.xlane.xlu0 %2167
    %v2169 = vsel %vm243, %v2165, 0.0
    %2170 = vadd.xlane.f32.xlu0 %v2169
    %v2171 = vpop.xlane.xlu0 %2170
    %v2172 = vmul.f32 %v2168, %v1012
    %v2173 = vmul.f32 %v2171, %v1012
    %v2174 = vadd.f32 %v2172, 1e-05
    %v2175 = vadd.f32 %v2173, 1e-05
    %v2176 = vrsqrt.pop %v2174
    %v2177 = vrsqrt.pop %v2175
    %v2178 = vmul.f32 %v2162, %v2176
    %v2179 = vmul.f32 %v2163, %v2177
    %v2181 = vlaneseq
    %v2182 = vshrl.u32 %v2181, 7
    %v2183 = vsub.s32 0, %v2182
    %v2184 = vrot.slane %v2152, %v2183
    %v2186 = vmul.f32 %v2178, %v2184
    %v2187 = vmul.f32 %v2179, %v2184
    %v2189 = vlaneseq
    %v2190 = vshrl.u32 %v2189, 7
    %v2191 = vsub.s32 0, %v2190
    %v2192 = vrot.slane %v2153, %v2191
    %v2194 = vadd.f32 %v2186, %v2192
    %v2195 = vadd.f32 %v2187, %v2192
    %2196 = vst.msk [vmem:[#allocation20] sm:$0xff] %vm243, %v2194
    %2197 = vst.msk [vmem:[#allocation20 + $0x8] sm:$0xff] %vm243, %v2195
    // Predicated region
    $region142: #{tpu_custom_call.1} parent=1 // pred_check
      _
    $region143: #{tpu_custom_call.1} parent=1 // pred_check_branch
      %2199 = sbr.rel (0) target = $region145
    $region144: #{tpu_custom_call.1} parent=1 // pred_region
      %s2201 = ssub.s32 256, 256
      %2202 = vsyncadd [#allocation4], %s2201
      %s2203 = sshll.u32 [#allocation20], 4
      %s2204 = int_to_ptr.vmem [resolvable:$true] %s2203
      %2209 = dma.vmem_to_hbm [thread:$0]  %s2204, 256, %s24, [#allocation4], 128, 128, 8
    $region145: #{tpu_custom_call.1} parent=1 // pred_fallthru
      _
    // Predicated region
    $region146: #{tpu_custom_call.1} parent=1 // pred_check
      _
    $region147: #{tpu_custom_call.1} parent=1 // pred_check_branch
      %2211 = sbr.rel (0) target = $region149
    $region148: #{tpu_custom_call.1} parent=1 // pred_region
      %2212 = dma.done [#allocation4], 256
    $region149: #{tpu_custom_call.1} parent=1 // pred_fallthru
      _
    %2213 = vsyncpa [#allocation3], 1
    %2214 = vsyncpa [#allocation6], 1
    %2215 = vsyncpa [#allocation9], 1
    %2216 = vsyncpa [#allocation12], 1
    %2217 = vsyncpa [#allocation15], 1
    %2218 = vsyncpa [#allocation18], 1
    %2219 = vsyncpa [#allocation4], 1

</llo_original>
